<compile_context>
chip_gen: v6e
topology: v6e:2x2x1
jax: 0.10.0
libtpu: 0.0.40
codegen_flags: <defaults>
</compile_context>

<pallas_src>
import functools

import jax
import jax.numpy as jnp
import numpy as np
from jax.experimental import pallas as pl
from jax.experimental.pallas import tpu as pltpu

# ----------------------------- problem sizes --------------------------------
DIM = 32                 # win_att.dim
NUM_HEADS = 4            # win_att.num_heads
HEAD_DIM = DIM // NUM_HEADS
WINDOW = 4               # window size
N = WINDOW * WINDOW      # tokens per window = 16
BATCH = 2
NW = 4                   # windows per image (shift-mask count)
B_ = BATCH * NW          # 8 windows total
CHANNEL_OPTIONS = (4, 8) # head-channel counts searched over


# ------------------------------- kernel -------------------------------------
def _swa_kernel(x_cm_ref, x_tm_ref, wqv_ref, bqv_ref, wkt_ref, bk_ref,
                bias_ref, qmask_ref, wfused_ref, bout_ref, o_ref,
                *, dim, num_heads, head_dim, channel_options):
    num_opt = len(channel_options)
    x_cm = x_cm_ref[0]                     # (C, bn)   channels x tokens
    x_tm = x_tm_ref[0]                     # (bn, C)   tokens x channels

    # q/v projection, channel-major (channels on sublanes, tokens on lanes).
    # The 1/sqrt(hd) scale is already folded into the q rows of wqv / bqv.
    qv = jnp.dot(wqv_ref[...], x_cm,
                 preferred_element_type=jnp.float32) + bqv_ref[...]      # (2C, bn)
    # k projection, token-major, so each head's (bn, hd) score-matmul LHS is a
    # static lane slice instead of an in-kernel transpose.
    k_tm = jnp.dot(x_tm, wkt_ref[...],
                   preferred_element_type=jnp.float32) + bk_ref[...]     # (bn, C)

    head_outs = [[None] * num_heads for _ in range(num_opt)]
    for h in range(num_heads):                          # unrolled (4 heads)
        qh = qv[h * head_dim:(h + 1) * head_dim, :]                      # (hd, bn)
        vh = qv[dim + h * head_dim:dim + (h + 1) * head_dim, :]          # (hd, bn)
        kh_bf = k_tm[:, h * head_dim:(h + 1) * head_dim].astype(jnp.bfloat16)
        vh_bf = vh.astype(jnp.bfloat16)
        bias_h = bias_ref[0, h]                         # (bn_keys, bn_queries), f32

        for opt in range(num_opt):                      # unrolled (2 options)
            if channel_options[opt] >= head_dim:        # all-ones mask: skip it
                q_opt = qh
            else:
                q_opt = qh * qmask_ref[opt]             # (hd,1) channel mask column
            # scores with keys on sublanes / queries on lanes; f32 accumulate.
            s = jnp.dot(kh_bf, q_opt.astype(jnp.bfloat16),
                        preferred_element_type=jnp.float32) + bias_h     # (bn, bn)
            s = s - jnp.max(s, axis=0, keepdims=True)
            p = jnp.exp(s)
            rl = pl.reciprocal(jnp.sum(p, axis=0, keepdims=True), approx=True)
            ov = jnp.dot(vh_bf, p.astype(jnp.bfloat16),
                         preferred_element_type=jnp.float32)             # (hd, bn)
            head_outs[opt][h] = ov * rl                 # normalise after the AV dot

    # (num_opt*C, bn): options stacked on sublanes, heads already contiguous.
    stacked = jnp.concatenate(
        [head_outs[opt][h] for opt in range(num_opt) for h in range(num_heads)],
        axis=0)
    # Single fused output projection for all options: per-option alpha, proj
    # output-channel mask and v-channel (input) mask are folded into wfused;
    # the per-option biases collapse to one precomputed column.
    out = jnp.dot(wfused_ref[...].astype(jnp.bfloat16),
                  stacked.astype(jnp.bfloat16),
                  preferred_element_type=jnp.float32) + bout_ref[...]    # (C, bn)
    o_ref[0] = out


# ------------------------------- wrapper -------------------------------------
def _default_windows_per_block(total_windows):
    """grid=(1,) on single-TC v5e/v6e; two parallel groups on dual-TC v7x."""
    try:
        kind = jax.devices()[0].device_kind.lower()
    except Exception:
        kind = ""
    if ("v7" in kind or "tpu7" in kind) and total_windows % 2 == 0:
        return max(total_windows // 2, 1)
    return total_windows


def search_window_attention(x, wqkv, bqkv, wproj, bproj, rel_bias, attn_mask,
                            alpha, channel_options, windows_per_block=None):
    B_w, n, c = x.shape
    nH = rel_bias.shape[0]
    hd = c // nH
    nW = attn_mask.shape[0]
    num_opt = len(channel_options)
    scale = hd ** -0.5

    if windows_per_block is None:
        windows_per_block = _default_windows_per_block(B_w)
    assert B_w % windows_per_block == 0
    wpb = windows_per_block
    num_blocks = B_w // wpb
    bn = wpb * n                                        # tokens per grid step

    # get_weight_indices(): |proj weight| summed over (dim, heads), descending.
    imp = jnp.abs(wproj.reshape(c, nH, hd)).sum(axis=(0, 1))
    order = jnp.argsort(-imp)

    # set_channel_weights() per option: binary head-channel mask.
    hd_masks, c_masks = [], []
    for nch in channel_options:
        sel = order[:nch]
        m_hd = (jax.nn.one_hot(sel, hd, dtype=jnp.float32).sum(0) > 0)
        m_hd = m_hd.astype(jnp.float32)                 # (hd,)
        hd_masks.append(m_hd)
        c_masks.append(jnp.tile(m_hd[None, :], (nH, 1)).reshape(c))
    q_mask_cols = jnp.stack(hd_masks).reshape(num_opt, hd, 1)

    # Fused output projection: fold alpha + output-channel mask (rows) and the
    # v-channel / proj-input mask (cols) into Wproj per option; concat options
    # along the input dim.  Per-option biases collapse to a single column.
    w_opts, b_out = [], jnp.zeros((c,), jnp.float32)
    for i in range(num_opt):
        mc = c_masks[i]
        w_opts.append((alpha[i] * mc)[:, None] * wproj * mc[None, :])
        b_out = b_out + alpha[i] * mc * bproj
    w_fused = jnp.concatenate(w_opts, axis=1)           # (C, num_opt*C)
    b_out_col = b_out.reshape(c, 1)

    # qkv split; fold 1/sqrt(hd) into the q rows; k kept separate (token-major).
    w_qv = jnp.concatenate([wqkv[:c] * scale, wqkv[2 * c:]], axis=0)       # (2C, C)
    b_qv_col = jnp.concatenate([bqkv[:c] * scale, bqkv[2 * c:]]).reshape(2 * c, 1)
    w_k_t = wqkv[c:2 * c].T                             # (C, C): k_tok = x_tok @ w_k_t
    b_k_row = bqkv[c:2 * c].reshape(1, c)

    # Per-window additive bias (rel-pos + shift mask), block-diagonal per
    # window group and transposed to (keys, queries) to match the score layout.
    win_bias = (rel_bias[None, :, :, :]
                + jnp.tile(attn_mask, (B_w // nW, 1, 1))[:, None, :, :])   # (B_, nH, n, n)
    eye = jnp.eye(wpb, dtype=bool)
    groups = []
    for g in range(num_blocks):
        wb = win_bias[g * wpb:(g + 1) * wpb].transpose(1, 0, 2, 3)         # (nH, wpb, n, n)
        gb = jnp.where(eye[None, :, None, :, None],
                       wb[:, :, :, None, :], -1e30)                        # (nH, wpb, n, wpb, n)
        groups.append(gb.reshape(nH, bn, bn))
    group_bias_t = jnp.stack(groups).transpose(0, 1, 3, 2).astype(jnp.float32)

    # Token layouts per group: channel-major for q/v & output, token-major for k.
    x_tm = x.reshape(num_blocks, bn, c)
    x_cm = x_tm.transpose(0, 2, 1)

    kernel = functools.partial(_swa_kernel, dim=c, num_heads=nH, head_dim=hd,
                               channel_options=tuple(channel_options))

    out_cm = pl.pallas_call(
        kernel,
        out_shape=jax.ShapeDtypeStruct((num_blocks, c, bn), jnp.float32),
        grid_spec=pltpu.PrefetchScalarGridSpec(
            num_scalar_prefetch=0,
            grid=(num_blocks,),
            in_specs=[
                pl.BlockSpec((1, c, bn), lambda g: (g, 0, 0)),          # x channel-major
                pl.BlockSpec((1, bn, c), lambda g: (g, 0, 0)),          # x token-major
                pl.BlockSpec((2 * c, c), lambda g: (0, 0)),             # W_{q,v} (q pre-scaled)
                pl.BlockSpec((2 * c, 1), lambda g: (0, 0)),             # b_{q,v} column
                pl.BlockSpec((c, c), lambda g: (0, 0)),                 # W_k^T
                pl.BlockSpec((1, c), lambda g: (0, 0)),                 # b_k row
                pl.BlockSpec((1, nH, bn, bn), lambda g: (g, 0, 0, 0)),  # block-diag bias^T
                pl.BlockSpec((num_opt, hd, 1), lambda g: (0, 0, 0)),    # per-option q mask
                pl.BlockSpec((c, num_opt * c), lambda g: (0, 0)),       # fused proj weight
                pl.BlockSpec((c, 1), lambda g: (0, 0)),                 # fused proj bias
            ],
            out_specs=pl.BlockSpec((1, c, bn), lambda g: (g, 0, 0)),
        ),
        compiler_params=pltpu.CompilerParams(
            dimension_semantics=("parallel",)),
    )(x_cm, x_tm, w_qv, b_qv_col, w_k_t, b_k_row,
      group_bias_t, q_mask_cols, w_fused, b_out_col)

    # (num_blocks, C, bn) -> (B_, n, C)
    return out_cm.transpose(0, 2, 1).reshape(B_w, n, c)


# ------------------------- pure-JAX reference --------------------------------
def reference(x, wqkv, bqkv, wproj, bproj, rel_bias, attn_mask, alpha,
              channel_options):
    B_w, n, c = x.shape
    nH = rel_bias.shape[0]
    hd = c // nH
    nW = attn_mask.shape[0]
    scale = hd ** -0.5

    imp = jnp.abs(wproj.reshape(c, nH, hd)).sum(axis=(0, 1))
    order = jnp.argsort(-imp)

    out = jnp.zeros_like(x)
    for i, nch in enumerate(channel_options):
        sel = order[:nch]
        m_hd = (jax.nn.one_hot(sel, hd, dtype=jnp.float32).sum(0) > 0)
        m_hd = m_hd.astype(jnp.float32)
        m_c = jnp.tile(m_hd[None, :], (nH, 1)).reshape(c)
        m_qkv = jnp.tile(m_c[None, :], (3, 1)).reshape(3 * c)

        qkv = (x @ wqkv.T + bqkv) * m_qkv
        qkv = qkv.reshape(B_w, n, 3, nH, hd).transpose(2, 0, 3, 1, 4)
        q, k, v = qkv[0] * scale, qkv[1], qkv[2]
        attn = jnp.einsum('bhnd,bhmd->bhnm', q, k)
        attn = attn + rel_bias[None]
        attn = attn.reshape(B_w // nW, nW, nH, n, n) + attn_mask[None, :, None]
        attn = attn.reshape(B_w, nH, n, n)
        attn = jax.nn.softmax(attn, axis=-1)
        o = jnp.einsum('bhnm,bhmd->bhnd', attn, v)
        o = o.transpose(0, 2, 1, 3).reshape(B_w, n, c)
        o = (o @ wproj.T + bproj) * m_c
        out = out + alpha[i] * o
    return out


def make_relative_position_bias(key, window_size, num_heads):
    table = jax.random.normal(
        key, ((2 * window_size - 1) ** 2, num_heads), jnp.float32) * 0.02
    coords = np.stack(np.meshgrid(np.arange(window_size),
                                  np.arange(window_size), indexing='ij'))
    coords_flat = coords.reshape(2, -1)
    rel = (coords_flat[:, :, None] - coords_flat[:, None, :]).transpose(1, 2, 0)
    rel = rel.astype(np.int64)
    rel[:, :, 0] += window_size - 1
    rel[:, :, 1] += window_size - 1
    rel[:, :, 0] *= 2 * window_size - 1
    index = rel.sum(-1)                                   # (N, N)
    bias = table[jnp.asarray(index.reshape(-1))].reshape(
        window_size * window_size, window_size * window_size, num_heads)
    return jnp.transpose(bias, (2, 0, 1))                 # (nH, N, N)


if __name__ == "__main__":
    key = jax.random.PRNGKey(0)
    ks = jax.random.split(key, 8)

    x = jax.random.normal(ks[0], (B_, N, DIM), jnp.float32)
    wqkv = jax.random.normal(ks[1], (3 * DIM, DIM), jnp.float32) * 0.05
    bqkv = jax.random.normal(ks[2], (3 * DIM,), jnp.float32) * 0.02
    wproj = jax.random.normal(ks[3], (DIM, DIM), jnp.float32) * 0.05
    bproj = jax.random.normal(ks[4], (DIM,), jnp.float32) * 0.02
    rel_bias = make_relative_position_bias(ks[5], WINDOW, NUM_HEADS)
    attn_mask = jnp.where(jax.random.uniform(ks[6], (NW, N, N)) < 0.2,
                          -100.0, 0.0).astype(jnp.float32)
    alpha = jnp.array([0.3, 0.7], jnp.float32)

    out = search_window_attention(x, wqkv, bqkv, wproj, bproj, rel_bias,
                                  attn_mask, alpha, CHANNEL_OPTIONS)
    out = jax.block_until_ready(out)

    ref = reference(x, wqkv, bqkv, wproj, bproj, rel_bias, attn_mask, alpha,
                    CHANNEL_OPTIONS)
    # Tolerance covers bf16 MXU operands (scores / AV / fused-proj dots) and
    # the EUP approximate reciprocal; all softmax math stays f32.
    np.testing.assert_allclose(np.asarray(out), np.asarray(ref),
                               rtol=2e-2, atol=2e-3)
    print("KERNEL_OK")
</pallas_src>

<mosaic_0001>
module attributes {stable_mosaic.version = 11 : i64} {
  func.func @_swa_kernel(%arg0: i32, %arg1: memref<1x32x128xf32, #tpu.memory_space<vmem>>, %arg2: memref<1x128x32xf32, #tpu.memory_space<vmem>>, %arg3: memref<64x32xf32, #tpu.memory_space<vmem>>, %arg4: memref<64x1xf32, #tpu.memory_space<vmem>>, %arg5: memref<32x32xf32, #tpu.memory_space<vmem>>, %arg6: memref<1x32xf32, #tpu.memory_space<vmem>>, %arg7: memref<1x4x128x128xf32, #tpu.memory_space<vmem>>, %arg8: memref<2x8x1xf32, #tpu.memory_space<vmem>>, %arg9: memref<32x64xf32, #tpu.memory_space<vmem>>, %arg10: memref<32x1xf32, #tpu.memory_space<vmem>>, %arg11: memref<1x32x128xf32, #tpu.memory_space<vmem>>) attributes {dimension_semantics = [#tpu.dimension_semantics<parallel>], iteration_bounds = array<i64: 1>, scalar_prefetch = 0 : i64, scratch_operands = 0 : i64, tpu.core_type = #tpu.core_type<tc>, window_params = [{transform_indices = @transform_0, window_bounds = array<i64: 1, 32, 128>}, {transform_indices = @transform_1, window_bounds = array<i64: 1, 128, 32>}, {pipeline_mode = #tpu.pipeline_mode<synchronous>, transform_indices = @transform_2, window_bounds = array<i64: 64, 32>}, {pipeline_mode = #tpu.pipeline_mode<synchronous>, transform_indices = @transform_3, window_bounds = array<i64: 64, 1>}, {pipeline_mode = #tpu.pipeline_mode<synchronous>, transform_indices = @transform_4, window_bounds = array<i64: 32, 32>}, {pipeline_mode = #tpu.pipeline_mode<synchronous>, transform_indices = @transform_5, window_bounds = array<i64: 1, 32>}, {transform_indices = @transform_6, window_bounds = array<i64: 1, 4, 128, 128>}, {pipeline_mode = #tpu.pipeline_mode<synchronous>, transform_indices = @transform_7, window_bounds = array<i64: 2, 8, 1>}, {pipeline_mode = #tpu.pipeline_mode<synchronous>, transform_indices = @transform_8, window_bounds = array<i64: 32, 64>}, {pipeline_mode = #tpu.pipeline_mode<synchronous>, transform_indices = @transform_9, window_bounds = array<i64: 32, 1>}, {transform_indices = @transform_10, window_bounds = array<i64: 1, 32, 128>}]} {
    %c0 = arith.constant 0 : index
    %c0_0 = arith.constant 0 : index
    %c0_1 = arith.constant 0 : index
    %0 = vector.load %arg1[%c0, %c0_0, %c0_1] : memref<1x32x128xf32, #tpu.memory_space<vmem>>, vector<1x32x128xf32>
    %1 = vector.shape_cast %0 : vector<1x32x128xf32> to vector<32x128xf32>
    %c0_2 = arith.constant 0 : index
    %c0_3 = arith.constant 0 : index
    %c0_4 = arith.constant 0 : index
    %2 = vector.load %arg2[%c0_2, %c0_3, %c0_4] : memref<1x128x32xf32, #tpu.memory_space<vmem>>, vector<1x128x32xf32>
    %3 = vector.shape_cast %2 : vector<1x128x32xf32> to vector<128x32xf32>
    %c0_5 = arith.constant 0 : index
    %c0_6 = arith.constant 0 : index
    %4 = vector.load %arg3[%c0_5, %c0_6] : memref<64x32xf32, #tpu.memory_space<vmem>>, vector<64x32xf32>
    %cst = arith.constant dense<0.000000e+00> : vector<64x128xf32>
    %5 = tpu.matmul %4, %1, %cst {dimension_numbers = #tpu.dot_dimension_numbers<[1], [0], [0], [1], [0, 0, 1, 1], [], []>} : vector<64x32xf32>, vector<32x128xf32>, vector<64x128xf32> -> vector<64x128xf32>
    %c0_7 = arith.constant 0 : index
    %c0_8 = arith.constant 0 : index
    %6 = vector.load %arg4[%c0_7, %c0_8] : memref<64x1xf32, #tpu.memory_space<vmem>>, vector<64x1xf32>
    %7 = vector.broadcast %6 : vector<64x1xf32> to vector<64x128xf32>
    %8 = arith.addf %5, %7 : vector<64x128xf32>
    %c0_9 = arith.constant 0 : index
    %c0_10 = arith.constant 0 : index
    %9 = vector.load %arg5[%c0_9, %c0_10] : memref<32x32xf32, #tpu.memory_space<vmem>>, vector<32x32xf32>
    %cst_11 = arith.constant dense<0.000000e+00> : vector<128x32xf32>
    %10 = tpu.matmul %3, %9, %cst_11 {dimension_numbers = #tpu.dot_dimension_numbers<[1], [0], [0], [1], [0, 0, 1, 1], [], []>} : vector<128x32xf32>, vector<32x32xf32>, vector<128x32xf32> -> vector<128x32xf32>
    %c0_12 = arith.constant 0 : index
    %c0_13 = arith.constant 0 : index
    %11 = vector.load %arg6[%c0_12, %c0_13] : memref<1x32xf32, #tpu.memory_space<vmem>>, vector<1x32xf32>
    %12 = vector.broadcast %11 : vector<1x32xf32> to vector<128x32xf32>
    %13 = arith.addf %10, %12 : vector<128x32xf32>
    %14 = vector.extract_strided_slice %8 {offsets = [0, 0], sizes = [8, 128], strides = [1, 1]} : vector<64x128xf32> to vector<8x128xf32>
    %15 = vector.extract_strided_slice %8 {offsets = [32, 0], sizes = [8, 128], strides = [1, 1]} : vector<64x128xf32> to vector<8x128xf32>
    %16 = vector.extract_strided_slice %13 {offsets = [0, 0], sizes = [128, 8], strides = [1, 1]} : vector<128x32xf32> to vector<128x8xf32>
    %17 = arith.truncf %16 : vector<128x8xf32> to vector<128x8xbf16>
    %18 = arith.truncf %15 : vector<8x128xf32> to vector<8x128xbf16>
    %c0_14 = arith.constant 0 : index
    %c0_15 = arith.constant 0 : index
    %c0_16 = arith.constant 0 : index
    %c0_17 = arith.constant 0 : index
    %19 = vector.load %arg7[%c0_14, %c0_15, %c0_16, %c0_17] : memref<1x4x128x128xf32, #tpu.memory_space<vmem>>, vector<1x1x128x128xf32>
    %20 = vector.shape_cast %19 : vector<1x1x128x128xf32> to vector<128x128xf32>
    %c0_18 = arith.constant 0 : index
    %c0_19 = arith.constant 0 : index
    %c0_20 = arith.constant 0 : index
    %21 = vector.load %arg8[%c0_18, %c0_19, %c0_20] : memref<2x8x1xf32, #tpu.memory_space<vmem>>, vector<1x8x1xf32>
    %22 = vector.shape_cast %21 : vector<1x8x1xf32> to vector<8x1xf32>
    %23 = vector.broadcast %22 : vector<8x1xf32> to vector<8x128xf32>
    %24 = arith.mulf %14, %23 : vector<8x128xf32>
    %25 = arith.truncf %24 : vector<8x128xf32> to vector<8x128xbf16>
    %cst_21 = arith.constant dense<0.000000e+00> : vector<128x128xf32>
    %26 = tpu.matmul %17, %25, %cst_21 {dimension_numbers = #tpu.dot_dimension_numbers<[1], [0], [0], [1], [0, 0, 1, 1], [], []>} : vector<128x8xbf16>, vector<8x128xbf16>, vector<128x128xf32> -> vector<128x128xf32>
    %27 = arith.addf %26, %20 : vector<128x128xf32>
    %cst_22 = arith.constant dense<0xFF800000> : vector<128xf32>
    %28 = vector.multi_reduction <maximumf>, %27, %cst_22 [0] : vector<128x128xf32> to vector<128xf32>
    %29 = vector.shape_cast %28 : vector<128xf32> to vector<1x128xf32>
    %30 = vector.broadcast %29 : vector<1x128xf32> to vector<128x128xf32>
    %31 = arith.subf %27, %30 : vector<128x128xf32>
    %32 = math.exp %31 : vector<128x128xf32>
    %cst_23 = arith.constant dense<0.000000e+00> : vector<128xf32>
    %33 = vector.multi_reduction <add>, %32, %cst_23 [0] : vector<128x128xf32> to vector<128xf32>
    %34 = vector.shape_cast %33 : vector<128xf32> to vector<1x128xf32>
    %35 = tpu.reciprocal %34 {approx = true} : vector<1x128xf32> -> vector<1x128xf32>
    %36 = arith.truncf %32 : vector<128x128xf32> to vector<128x128xbf16>
    %cst_24 = arith.constant dense<0.000000e+00> : vector<8x128xf32>
    %37 = tpu.matmul %18, %36, %cst_24 {dimension_numbers = #tpu.dot_dimension_numbers<[1], [0], [0], [1], [0, 0, 1, 1], [], []>} : vector<8x128xbf16>, vector<128x128xbf16>, vector<8x128xf32> -> vector<8x128xf32>
    %38 = vector.broadcast %35 : vector<1x128xf32> to vector<8x128xf32>
    %39 = arith.mulf %37, %38 : vector<8x128xf32>
    %40 = arith.truncf %14 : vector<8x128xf32> to vector<8x128xbf16>
    %cst_25 = arith.constant dense<0.000000e+00> : vector<128x128xf32>
    %41 = tpu.matmul %17, %40, %cst_25 {dimension_numbers = #tpu.dot_dimension_numbers<[1], [0], [0], [1], [0, 0, 1, 1], [], []>} : vector<128x8xbf16>, vector<8x128xbf16>, vector<128x128xf32> -> vector<128x128xf32>
    %42 = arith.addf %41, %20 : vector<128x128xf32>
    %cst_26 = arith.constant dense<0xFF800000> : vector<128xf32>
    %43 = vector.multi_reduction <maximumf>, %42, %cst_26 [0] : vector<128x128xf32> to vector<128xf32>
    %44 = vector.shape_cast %43 : vector<128xf32> to vector<1x128xf32>
    %45 = vector.broadcast %44 : vector<1x128xf32> to vector<128x128xf32>
    %46 = arith.subf %42, %45 : vector<128x128xf32>
    %47 = math.exp %46 : vector<128x128xf32>
    %cst_27 = arith.constant dense<0.000000e+00> : vector<128xf32>
    %48 = vector.multi_reduction <add>, %47, %cst_27 [0] : vector<128x128xf32> to vector<128xf32>
    %49 = vector.shape_cast %48 : vector<128xf32> to vector<1x128xf32>
    %50 = tpu.reciprocal %49 {approx = true} : vector<1x128xf32> -> vector<1x128xf32>
    %51 = arith.truncf %47 : vector<128x128xf32> to vector<128x128xbf16>
    %cst_28 = arith.constant dense<0.000000e+00> : vector<8x128xf32>
    %52 = tpu.matmul %18, %51, %cst_28 {dimension_numbers = #tpu.dot_dimension_numbers<[1], [0], [0], [1], [0, 0, 1, 1], [], []>} : vector<8x128xbf16>, vector<128x128xbf16>, vector<8x128xf32> -> vector<8x128xf32>
    %53 = vector.broadcast %50 : vector<1x128xf32> to vector<8x128xf32>
    %54 = arith.mulf %52, %53 : vector<8x128xf32>
    %55 = vector.extract_strided_slice %8 {offsets = [8, 0], sizes = [8, 128], strides = [1, 1]} : vector<64x128xf32> to vector<8x128xf32>
    %56 = vector.extract_strided_slice %8 {offsets = [40, 0], sizes = [8, 128], strides = [1, 1]} : vector<64x128xf32> to vector<8x128xf32>
    %57 = vector.extract_strided_slice %13 {offsets = [0, 8], sizes = [128, 8], strides = [1, 1]} : vector<128x32xf32> to vector<128x8xf32>
    %58 = arith.truncf %57 : vector<128x8xf32> to vector<128x8xbf16>
    %59 = arith.truncf %56 : vector<8x128xf32> to vector<8x128xbf16>
    %c0_29 = arith.constant 0 : index
    %c1 = arith.constant 1 : index
    %c0_30 = arith.constant 0 : index
    %c0_31 = arith.constant 0 : index
    %60 = vector.load %arg7[%c0_29, %c1, %c0_30, %c0_31] : memref<1x4x128x128xf32, #tpu.memory_space<vmem>>, vector<1x1x128x128xf32>
    %61 = vector.shape_cast %60 : vector<1x1x128x128xf32> to vector<128x128xf32>
    %c0_32 = arith.constant 0 : index
    %c0_33 = arith.constant 0 : index
    %c0_34 = arith.constant 0 : index
    %62 = vector.load %arg8[%c0_32, %c0_33, %c0_34] : memref<2x8x1xf32, #tpu.memory_space<vmem>>, vector<1x8x1xf32>
    %63 = vector.shape_cast %62 : vector<1x8x1xf32> to vector<8x1xf32>
    %64 = vector.broadcast %63 : vector<8x1xf32> to vector<8x128xf32>
    %65 = arith.mulf %55, %64 : vector<8x128xf32>
    %66 = arith.truncf %65 : vector<8x128xf32> to vector<8x128xbf16>
    %cst_35 = arith.constant dense<0.000000e+00> : vector<128x128xf32>
    %67 = tpu.matmul %58, %66, %cst_35 {dimension_numbers = #tpu.dot_dimension_numbers<[1], [0], [0], [1], [0, 0, 1, 1], [], []>} : vector<128x8xbf16>, vector<8x128xbf16>, vector<128x128xf32> -> vector<128x128xf32>
    %68 = arith.addf %67, %61 : vector<128x128xf32>
    %cst_36 = arith.constant dense<0xFF800000> : vector<128xf32>
    %69 = vector.multi_reduction <maximumf>, %68, %cst_36 [0] : vector<128x128xf32> to vector<128xf32>
    %70 = vector.shape_cast %69 : vector<128xf32> to vector<1x128xf32>
    %71 = vector.broadcast %70 : vector<1x128xf32> to vector<128x128xf32>
    %72 = arith.subf %68, %71 : vector<128x128xf32>
    %73 = math.exp %72 : vector<128x128xf32>
    %cst_37 = arith.constant dense<0.000000e+00> : vector<128xf32>
    %74 = vector.multi_reduction <add>, %73, %cst_37 [0] : vector<128x128xf32> to vector<128xf32>
    %75 = vector.shape_cast %74 : vector<128xf32> to vector<1x128xf32>
    %76 = tpu.reciprocal %75 {approx = true} : vector<1x128xf32> -> vector<1x128xf32>
    %77 = arith.truncf %73 : vector<128x128xf32> to vector<128x128xbf16>
    %cst_38 = arith.constant dense<0.000000e+00> : vector<8x128xf32>
    %78 = tpu.matmul %59, %77, %cst_38 {dimension_numbers = #tpu.dot_dimension_numbers<[1], [0], [0], [1], [0, 0, 1, 1], [], []>} : vector<8x128xbf16>, vector<128x128xbf16>, vector<8x128xf32> -> vector<8x128xf32>
    %79 = vector.broadcast %76 : vector<1x128xf32> to vector<8x128xf32>
    %80 = arith.mulf %78, %79 : vector<8x128xf32>
    %81 = arith.truncf %55 : vector<8x128xf32> to vector<8x128xbf16>
    %cst_39 = arith.constant dense<0.000000e+00> : vector<128x128xf32>
    %82 = tpu.matmul %58, %81, %cst_39 {dimension_numbers = #tpu.dot_dimension_numbers<[1], [0], [0], [1], [0, 0, 1, 1], [], []>} : vector<128x8xbf16>, vector<8x128xbf16>, vector<128x128xf32> -> vector<128x128xf32>
    %83 = arith.addf %82, %61 : vector<128x128xf32>
    %cst_40 = arith.constant dense<0xFF800000> : vector<128xf32>
    %84 = vector.multi_reduction <maximumf>, %83, %cst_40 [0] : vector<128x128xf32> to vector<128xf32>
    %85 = vector.shape_cast %84 : vector<128xf32> to vector<1x128xf32>
    %86 = vector.broadcast %85 : vector<1x128xf32> to vector<128x128xf32>
    %87 = arith.subf %83, %86 : vector<128x128xf32>
    %88 = math.exp %87 : vector<128x128xf32>
    %cst_41 = arith.constant dense<0.000000e+00> : vector<128xf32>
    %89 = vector.multi_reduction <add>, %88, %cst_41 [0] : vector<128x128xf32> to vector<128xf32>
    %90 = vector.shape_cast %89 : vector<128xf32> to vector<1x128xf32>
    %91 = tpu.reciprocal %90 {approx = true} : vector<1x128xf32> -> vector<1x128xf32>
    %92 = arith.truncf %88 : vector<128x128xf32> to vector<128x128xbf16>
    %cst_42 = arith.constant dense<0.000000e+00> : vector<8x128xf32>
    %93 = tpu.matmul %59, %92, %cst_42 {dimension_numbers = #tpu.dot_dimension_numbers<[1], [0], [0], [1], [0, 0, 1, 1], [], []>} : vector<8x128xbf16>, vector<128x128xbf16>, vector<8x128xf32> -> vector<8x128xf32>
    %94 = vector.broadcast %91 : vector<1x128xf32> to vector<8x128xf32>
    %95 = arith.mulf %93, %94 : vector<8x128xf32>
    %96 = vector.extract_strided_slice %8 {offsets = [16, 0], sizes = [8, 128], strides = [1, 1]} : vector<64x128xf32> to vector<8x128xf32>
    %97 = vector.extract_strided_slice %8 {offsets = [48, 0], sizes = [8, 128], strides = [1, 1]} : vector<64x128xf32> to vector<8x128xf32>
    %98 = vector.extract_strided_slice %13 {offsets = [0, 16], sizes = [128, 8], strides = [1, 1]} : vector<128x32xf32> to vector<128x8xf32>
    %99 = arith.truncf %98 : vector<128x8xf32> to vector<128x8xbf16>
    %100 = arith.truncf %97 : vector<8x128xf32> to vector<8x128xbf16>
    %c0_43 = arith.constant 0 : index
    %c2 = arith.constant 2 : index
    %c0_44 = arith.constant 0 : index
    %c0_45 = arith.constant 0 : index
    %101 = vector.load %arg7[%c0_43, %c2, %c0_44, %c0_45] : memref<1x4x128x128xf32, #tpu.memory_space<vmem>>, vector<1x1x128x128xf32>
    %102 = vector.shape_cast %101 : vector<1x1x128x128xf32> to vector<128x128xf32>
    %c0_46 = arith.constant 0 : index
    %c0_47 = arith.constant 0 : index
    %c0_48 = arith.constant 0 : index
    %103 = vector.load %arg8[%c0_46, %c0_47, %c0_48] : memref<2x8x1xf32, #tpu.memory_space<vmem>>, vector<1x8x1xf32>
    %104 = vector.shape_cast %103 : vector<1x8x1xf32> to vector<8x1xf32>
    %105 = vector.broadcast %104 : vector<8x1xf32> to vector<8x128xf32>
    %106 = arith.mulf %96, %105 : vector<8x128xf32>
    %107 = arith.truncf %106 : vector<8x128xf32> to vector<8x128xbf16>
    %cst_49 = arith.constant dense<0.000000e+00> : vector<128x128xf32>
    %108 = tpu.matmul %99, %107, %cst_49 {dimension_numbers = #tpu.dot_dimension_numbers<[1], [0], [0], [1], [0, 0, 1, 1], [], []>} : vector<128x8xbf16>, vector<8x128xbf16>, vector<128x128xf32> -> vector<128x128xf32>
    %109 = arith.addf %108, %102 : vector<128x128xf32>
    %cst_50 = arith.constant dense<0xFF800000> : vector<128xf32>
    %110 = vector.multi_reduction <maximumf>, %109, %cst_50 [0] : vector<128x128xf32> to vector<128xf32>
    %111 = vector.shape_cast %110 : vector<128xf32> to vector<1x128xf32>
    %112 = vector.broadcast %111 : vector<1x128xf32> to vector<128x128xf32>
    %113 = arith.subf %109, %112 : vector<128x128xf32>
    %114 = math.exp %113 : vector<128x128xf32>
    %cst_51 = arith.constant dense<0.000000e+00> : vector<128xf32>
    %115 = vector.multi_reduction <add>, %114, %cst_51 [0] : vector<128x128xf32> to vector<128xf32>
    %116 = vector.shape_cast %115 : vector<128xf32> to vector<1x128xf32>
    %117 = tpu.reciprocal %116 {approx = true} : vector<1x128xf32> -> vector<1x128xf32>
    %118 = arith.truncf %114 : vector<128x128xf32> to vector<128x128xbf16>
    %cst_52 = arith.constant dense<0.000000e+00> : vector<8x128xf32>
    %119 = tpu.matmul %100, %118, %cst_52 {dimension_numbers = #tpu.dot_dimension_numbers<[1], [0], [0], [1], [0, 0, 1, 1], [], []>} : vector<8x128xbf16>, vector<128x128xbf16>, vector<8x128xf32> -> vector<8x128xf32>
    %120 = vector.broadcast %117 : vector<1x128xf32> to vector<8x128xf32>
    %121 = arith.mulf %119, %120 : vector<8x128xf32>
    %122 = arith.truncf %96 : vector<8x128xf32> to vector<8x128xbf16>
    %cst_53 = arith.constant dense<0.000000e+00> : vector<128x128xf32>
    %123 = tpu.matmul %99, %122, %cst_53 {dimension_numbers = #tpu.dot_dimension_numbers<[1], [0], [0], [1], [0, 0, 1, 1], [], []>} : vector<128x8xbf16>, vector<8x128xbf16>, vector<128x128xf32> -> vector<128x128xf32>
    %124 = arith.addf %123, %102 : vector<128x128xf32>
    %cst_54 = arith.constant dense<0xFF800000> : vector<128xf32>
    %125 = vector.multi_reduction <maximumf>, %124, %cst_54 [0] : vector<128x128xf32> to vector<128xf32>
    %126 = vector.shape_cast %125 : vector<128xf32> to vector<1x128xf32>
    %127 = vector.broadcast %126 : vector<1x128xf32> to vector<128x128xf32>
    %128 = arith.subf %124, %127 : vector<128x128xf32>
    %129 = math.exp %128 : vector<128x128xf32>
    %cst_55 = arith.constant dense<0.000000e+00> : vector<128xf32>
    %130 = vector.multi_reduction <add>, %129, %cst_55 [0] : vector<128x128xf32> to vector<128xf32>
    %131 = vector.shape_cast %130 : vector<128xf32> to vector<1x128xf32>
    %132 = tpu.reciprocal %131 {approx = true} : vector<1x128xf32> -> vector<1x128xf32>
    %133 = arith.truncf %129 : vector<128x128xf32> to vector<128x128xbf16>
    %cst_56 = arith.constant dense<0.000000e+00> : vector<8x128xf32>
    %134 = tpu.matmul %100, %133, %cst_56 {dimension_numbers = #tpu.dot_dimension_numbers<[1], [0], [0], [1], [0, 0, 1, 1], [], []>} : vector<8x128xbf16>, vector<128x128xbf16>, vector<8x128xf32> -> vector<8x128xf32>
    %135 = vector.broadcast %132 : vector<1x128xf32> to vector<8x128xf32>
    %136 = arith.mulf %134, %135 : vector<8x128xf32>
    %137 = vector.extract_strided_slice %8 {offsets = [24, 0], sizes = [8, 128], strides = [1, 1]} : vector<64x128xf32> to vector<8x128xf32>
    %138 = vector.extract_strided_slice %8 {offsets = [56, 0], sizes = [8, 128], strides = [1, 1]} : vector<64x128xf32> to vector<8x128xf32>
    %139 = vector.extract_strided_slice %13 {offsets = [0, 24], sizes = [128, 8], strides = [1, 1]} : vector<128x32xf32> to vector<128x8xf32>
    %140 = arith.truncf %139 : vector<128x8xf32> to vector<128x8xbf16>
    %141 = arith.truncf %138 : vector<8x128xf32> to vector<8x128xbf16>
    %c0_57 = arith.constant 0 : index
    %c3 = arith.constant 3 : index
    %c0_58 = arith.constant 0 : index
    %c0_59 = arith.constant 0 : index
    %142 = vector.load %arg7[%c0_57, %c3, %c0_58, %c0_59] : memref<1x4x128x128xf32, #tpu.memory_space<vmem>>, vector<1x1x128x128xf32>
    %143 = vector.shape_cast %142 : vector<1x1x128x128xf32> to vector<128x128xf32>
    %c0_60 = arith.constant 0 : index
    %c0_61 = arith.constant 0 : index
    %c0_62 = arith.constant 0 : index
    %144 = vector.load %arg8[%c0_60, %c0_61, %c0_62] : memref<2x8x1xf32, #tpu.memory_space<vmem>>, vector<1x8x1xf32>
    %145 = vector.shape_cast %144 : vector<1x8x1xf32> to vector<8x1xf32>
    %146 = vector.broadcast %145 : vector<8x1xf32> to vector<8x128xf32>
    %147 = arith.mulf %137, %146 : vector<8x128xf32>
    %148 = arith.truncf %147 : vector<8x128xf32> to vector<8x128xbf16>
    %cst_63 = arith.constant dense<0.000000e+00> : vector<128x128xf32>
    %149 = tpu.matmul %140, %148, %cst_63 {dimension_numbers = #tpu.dot_dimension_numbers<[1], [0], [0], [1], [0, 0, 1, 1], [], []>} : vector<128x8xbf16>, vector<8x128xbf16>, vector<128x128xf32> -> vector<128x128xf32>
    %150 = arith.addf %149, %143 : vector<128x128xf32>
    %cst_64 = arith.constant dense<0xFF800000> : vector<128xf32>
    %151 = vector.multi_reduction <maximumf>, %150, %cst_64 [0] : vector<128x128xf32> to vector<128xf32>
    %152 = vector.shape_cast %151 : vector<128xf32> to vector<1x128xf32>
    %153 = vector.broadcast %152 : vector<1x128xf32> to vector<128x128xf32>
    %154 = arith.subf %150, %153 : vector<128x128xf32>
    %155 = math.exp %154 : vector<128x128xf32>
    %cst_65 = arith.constant dense<0.000000e+00> : vector<128xf32>
    %156 = vector.multi_reduction <add>, %155, %cst_65 [0] : vector<128x128xf32> to vector<128xf32>
    %157 = vector.shape_cast %156 : vector<128xf32> to vector<1x128xf32>
    %158 = tpu.reciprocal %157 {approx = true} : vector<1x128xf32> -> vector<1x128xf32>
    %159 = arith.truncf %155 : vector<128x128xf32> to vector<128x128xbf16>
    %cst_66 = arith.constant dense<0.000000e+00> : vector<8x128xf32>
    %160 = tpu.matmul %141, %159, %cst_66 {dimension_numbers = #tpu.dot_dimension_numbers<[1], [0], [0], [1], [0, 0, 1, 1], [], []>} : vector<8x128xbf16>, vector<128x128xbf16>, vector<8x128xf32> -> vector<8x128xf32>
    %161 = vector.broadcast %158 : vector<1x128xf32> to vector<8x128xf32>
    %162 = arith.mulf %160, %161 : vector<8x128xf32>
    %163 = arith.truncf %137 : vector<8x128xf32> to vector<8x128xbf16>
    %cst_67 = arith.constant dense<0.000000e+00> : vector<128x128xf32>
    %164 = tpu.matmul %140, %163, %cst_67 {dimension_numbers = #tpu.dot_dimension_numbers<[1], [0], [0], [1], [0, 0, 1, 1], [], []>} : vector<128x8xbf16>, vector<8x128xbf16>, vector<128x128xf32> -> vector<128x128xf32>
    %165 = arith.addf %164, %143 : vector<128x128xf32>
    %cst_68 = arith.constant dense<0xFF800000> : vector<128xf32>
    %166 = vector.multi_reduction <maximumf>, %165, %cst_68 [0] : vector<128x128xf32> to vector<128xf32>
    %167 = vector.shape_cast %166 : vector<128xf32> to vector<1x128xf32>
    %168 = vector.broadcast %167 : vector<1x128xf32> to vector<128x128xf32>
    %169 = arith.subf %165, %168 : vector<128x128xf32>
    %170 = math.exp %169 : vector<128x128xf32>
    %cst_69 = arith.constant dense<0.000000e+00> : vector<128xf32>
    %171 = vector.multi_reduction <add>, %170, %cst_69 [0] : vector<128x128xf32> to vector<128xf32>
    %172 = vector.shape_cast %171 : vector<128xf32> to vector<1x128xf32>
    %173 = tpu.reciprocal %172 {approx = true} : vector<1x128xf32> -> vector<1x128xf32>
    %174 = arith.truncf %170 : vector<128x128xf32> to vector<128x128xbf16>
    %cst_70 = arith.constant dense<0.000000e+00> : vector<8x128xf32>
    %175 = tpu.matmul %141, %174, %cst_70 {dimension_numbers = #tpu.dot_dimension_numbers<[1], [0], [0], [1], [0, 0, 1, 1], [], []>} : vector<8x128xbf16>, vector<128x128xbf16>, vector<8x128xf32> -> vector<8x128xf32>
    %176 = vector.broadcast %173 : vector<1x128xf32> to vector<8x128xf32>
    %177 = arith.mulf %175, %176 : vector<8x128xf32>
    %178 = tpu.concatenate %39, %80, %121, %162, %54, %95, %136, %177 in 0 : vector<8x128xf32>, vector<8x128xf32>, vector<8x128xf32>, vector<8x128xf32>, vector<8x128xf32>, vector<8x128xf32>, vector<8x128xf32>, vector<8x128xf32> -> vector<64x128xf32>
    %c0_71 = arith.constant 0 : index
    %c0_72 = arith.constant 0 : index
    %179 = vector.load %arg9[%c0_71, %c0_72] : memref<32x64xf32, #tpu.memory_space<vmem>>, vector<32x64xf32>
    %180 = arith.truncf %179 : vector<32x64xf32> to vector<32x64xbf16>
    %181 = arith.truncf %178 : vector<64x128xf32> to vector<64x128xbf16>
    %cst_73 = arith.constant dense<0.000000e+00> : vector<32x128xf32>
    %182 = tpu.matmul %180, %181, %cst_73 {dimension_numbers = #tpu.dot_dimension_numbers<[1], [0], [0], [1], [0, 0, 1, 1], [], []>} : vector<32x64xbf16>, vector<64x128xbf16>, vector<32x128xf32> -> vector<32x128xf32>
    %c0_74 = arith.constant 0 : index
    %c0_75 = arith.constant 0 : index
    %183 = vector.load %arg10[%c0_74, %c0_75] : memref<32x1xf32, #tpu.memory_space<vmem>>, vector<32x1xf32>
    %184 = vector.broadcast %183 : vector<32x1xf32> to vector<32x128xf32>
    %185 = arith.addf %182, %184 : vector<32x128xf32>
    %c0_76 = arith.constant 0 : index
    %c0_77 = arith.constant 0 : index
    %c0_78 = arith.constant 0 : index
    %186 = vector.load %arg11[%c0_76, %c0_77, %c0_78] : memref<1x32x128xf32, #tpu.memory_space<vmem>>, vector<1x32x128xf32>
    %187 = vector.shape_cast %186 : vector<1x32x128xf32> to vector<32x128xf32>
    %188 = vector.shape_cast %185 : vector<32x128xf32> to vector<1x32x128xf32>
    tpu.vector_store %arg11[%c0_76, %c0_77, %c0_78], %188 {strides = array<i32>} : memref<1x32x128xf32, #tpu.memory_space<vmem>>, vector<1x32x128xf32>,
    return
  }
  func.func @transform_0(%arg0: i32) -> (i32, i32, i32) {
    %c0_i32 = arith.constant 0 : i32
    %c0_i32_0 = arith.constant 0 : i32
    %c0_i32_1 = arith.constant 0 : i32
    return %arg0, %c0_i32, %c0_i32_0 : i32, i32, i32
  }
  func.func @transform_1(%arg0: i32) -> (i32, i32, i32) {
    %c0_i32 = arith.constant 0 : i32
    %c0_i32_0 = arith.constant 0 : i32
    %c0_i32_1 = arith.constant 0 : i32
    return %arg0, %c0_i32, %c0_i32_0 : i32, i32, i32
  }
  func.func @transform_2(%arg0: i32) -> (i32, i32) {
    %c0_i32 = arith.constant 0 : i32
    %c0_i32_0 = arith.constant 0 : i32
    %c0_i32_1 = arith.constant 0 : i32
    return %c0_i32, %c0_i32_0 : i32, i32
  }
  func.func @transform_3(%arg0: i32) -> (i32, i32) {
    %c0_i32 = arith.constant 0 : i32
    %c0_i32_0 = arith.constant 0 : i32
    %c0_i32_1 = arith.constant 0 : i32
    return %c0_i32, %c0_i32_0 : i32, i32
  }
  func.func @transform_4(%arg0: i32) -> (i32, i32) {
    %c0_i32 = arith.constant 0 : i32
    %c0_i32_0 = arith.constant 0 : i32
    %c0_i32_1 = arith.constant 0 : i32
    return %c0_i32, %c0_i32_0 : i32, i32
  }
  func.func @transform_5(%arg0: i32) -> (i32, i32) {
    %c0_i32 = arith.constant 0 : i32
    %c0_i32_0 = arith.constant 0 : i32
    %c0_i32_1 = arith.constant 0 : i32
    return %c0_i32, %c0_i32_0 : i32, i32
  }
  func.func @transform_6(%arg0: i32) -> (i32, i32, i32, i32) {
    %c0_i32 = arith.constant 0 : i32
    %c0_i32_0 = arith.constant 0 : i32
    %c0_i32_1 = arith.constant 0 : i32
    %c0_i32_2 = arith.constant 0 : i32
    return %arg0, %c0_i32, %c0_i32_0, %c0_i32_1 : i32, i32, i32, i32
  }
  func.func @transform_7(%arg0: i32) -> (i32, i32, i32) {
    %c0_i32 = arith.constant 0 : i32
    %c0_i32_0 = arith.constant 0 : i32
    %c0_i32_1 = arith.constant 0 : i32
    %c0_i32_2 = arith.constant 0 : i32
    return %c0_i32, %c0_i32_0, %c0_i32_1 : i32, i32, i32
  }
  func.func @transform_8(%arg0: i32) -> (i32, i32) {
    %c0_i32 = arith.constant 0 : i32
    %c0_i32_0 = arith.constant 0 : i32
    %c0_i32_1 = arith.constant 0 : i32
    return %c0_i32, %c0_i32_0 : i32, i32
  }
  func.func @transform_9(%arg0: i32) -> (i32, i32) {
    %c0_i32 = arith.constant 0 : i32
    %c0_i32_0 = arith.constant 0 : i32
    %c0_i32_1 = arith.constant 0 : i32
    return %c0_i32, %c0_i32_0 : i32, i32
  }
  func.func @transform_10(%arg0: i32) -> (i32, i32, i32) {
    %c0_i32 = arith.constant 0 : i32
    %c0_i32_0 = arith.constant 0 : i32
    %c0_i32_1 = arith.constant 0 : i32
    return %arg0, %c0_i32, %c0_i32_0 : i32, i32, i32
  }
}

</mosaic_0001>

<llo_original>
// kernel: tpu_custom_call.1
$region0: #{tpu_custom_call.1}
  #allocation0 [shape = 'u32[]', space=smem, size = 0x4, offset = 0x4, fixed_abs, tag = 'smem constant byte address 0x4 - core index']
  #allocation1 [shape = 'u32[144,128]{1,0:T(1,128)}', space=vmem, size = 0x12000, scoped, tag = 'internal scratch']
  %s0 = inlined_call_operand.vmem [shape: f32[1,32,128], index: 0, kind: input, shape index: {}]
  %s1 = inlined_call_operand.vmem [shape: f32[1,128,32], index: 1, kind: input, shape index: {}]
  %s2 = inlined_call_operand.vmem [shape: f32[64,32], index: 2, kind: input, shape index: {}]
  %s3 = inlined_call_operand.vmem [shape: f32[64,1], index: 3, kind: input, shape index: {}]
  %s4 = inlined_call_operand.vmem [shape: f32[32,32], index: 4, kind: input, shape index: {}]
  %s5 = inlined_call_operand.vmem [shape: f32[1,32], index: 5, kind: input, shape index: {}]
  %s6 = inlined_call_operand.hbm [shape: f32[1,4,128,128], index: 6, kind: input, shape index: {}]
  %s7 = inlined_call_operand.vmem [shape: f32[2,8,1], index: 7, kind: input, shape index: {}]
  %s8 = inlined_call_operand.vmem [shape: f32[32,64], index: 8, kind: input, shape index: {}]
  %s9 = inlined_call_operand.vmem [shape: f32[32,1], index: 9, kind: input, shape index: {}]
  %s10 = inlined_call_operand.hbm [shape: f32[1,32,128], index: 10, kind: output, shape index: {}]
  %s11 = sld [smem:[#allocation0]]
  $region54: #{tpu_custom_call.1} parent=0
    _
  %s13 = ssub.s32 1, %s11
  %s14 = scalar_select 0, %s13, %s11
  $region1: #{tpu_custom_call.1} parent=0
    #allocation2 [shape = 'u8[262144]{0}', space=vmem, size = 0x40000, scoped, tag = 'input window, operand 6, single buffered']
    #allocation3 [shape = 's32[1]{0}', space=sflag, size = 0x4, scoped, tag = 'scoped memory for tpu_custom_call.1']
    #allocation4 [shape = 's32[1]{0}', space=sflag, size = 0x4, scoped, tag = 'scoped memory for tpu_custom_call.1']
    #allocation5 [shape = 'u8[16384]{0}', space=vmem, size = 0x4000, scoped, tag = 'output window, operand 0, single buffered']
    %15 = vsyncpa [#allocation3], 0
    %16 = vsyncpa [#allocation4], 0
    // Predicated region
    $region2: #{tpu_custom_call.1} parent=1 // pred_check
      _
    $region3: #{tpu_custom_call.1} parent=1 // pred_check_branch
      %18 = sbr.rel (0) target = $region5
    $region4: #{tpu_custom_call.1} parent=1 // pred_region
      _
    $region5: #{tpu_custom_call.1} parent=1 // pred_fallthru
      _
    // Predicated region
    $region6: #{tpu_custom_call.1} parent=1 // pred_check
      _
    $region7: #{tpu_custom_call.1} parent=1 // pred_check_branch
      %20 = sbr.rel (0) target = $region9
    $region8: #{tpu_custom_call.1} parent=1 // pred_region
      _
    $region9: #{tpu_custom_call.1} parent=1 // pred_fallthru
      _
    // Predicated region
    $region10: #{tpu_custom_call.1} parent=1 // pred_check
      _
    $region11: #{tpu_custom_call.1} parent=1 // pred_check_branch
      %22 = sbr.rel (0) target = $region13
    $region12: #{tpu_custom_call.1} parent=1 // pred_region
      _
    $region13: #{tpu_custom_call.1} parent=1 // pred_fallthru
      _
    // Predicated region
    $region14: #{tpu_custom_call.1} parent=1 // pred_check
      _
    $region15: #{tpu_custom_call.1} parent=1 // pred_check_branch
      %24 = sbr.rel (0) target = $region17
    $region16: #{tpu_custom_call.1} parent=1 // pred_region
      _
    $region17: #{tpu_custom_call.1} parent=1 // pred_fallthru
      _
    // Predicated region
    $region18: #{tpu_custom_call.1} parent=1 // pred_check
      _
    $region19: #{tpu_custom_call.1} parent=1 // pred_check_branch
      %26 = sbr.rel (0) target = $region21
    $region20: #{tpu_custom_call.1} parent=1 // pred_region
      _
    $region21: #{tpu_custom_call.1} parent=1 // pred_fallthru
      _
    // Predicated region
    $region22: #{tpu_custom_call.1} parent=1 // pred_check
      _
    $region23: #{tpu_custom_call.1} parent=1 // pred_check_branch
      %28 = sbr.rel (0) target = $region25
    $region24: #{tpu_custom_call.1} parent=1 // pred_region
      _
    $region25: #{tpu_custom_call.1} parent=1 // pred_fallthru
      _
    // Predicated region
    $region26: #{tpu_custom_call.1} parent=1 // pred_check
      _
    $region27: #{tpu_custom_call.1} parent=1 // pred_check_branch
      %30 = sbr.rel (0) target = $region29
    $region28: #{tpu_custom_call.1} parent=1 // pred_region
      %s32 = ssub.s32 8192, 8192
      %33 = vsyncadd [#allocation3], %s32
      %s34 = sshll.u32 [#allocation2], 4
      %s35 = int_to_ptr.vmem [resolvable:$true] %s34
      %40 = dma.hbm_to_vmem [thread:$0]  %s6, 8192, %s35, [#allocation3], 128, 128, 8
    $region29: #{tpu_custom_call.1} parent=1 // pred_fallthru
      _
    // Predicated region
    $region30: #{tpu_custom_call.1} parent=1 // pred_check
      _
    $region31: #{tpu_custom_call.1} parent=1 // pred_check_branch
      %42 = sbr.rel (0) target = $region33
    $region32: #{tpu_custom_call.1} parent=1 // pred_region
      _
    $region33: #{tpu_custom_call.1} parent=1 // pred_fallthru
      _
    // Predicated region
    $region34: #{tpu_custom_call.1} parent=1 // pred_check
      _
    $region35: #{tpu_custom_call.1} parent=1 // pred_check_branch
      %44 = sbr.rel (0) target = $region37
    $region36: #{tpu_custom_call.1} parent=1 // pred_region
      _
    $region37: #{tpu_custom_call.1} parent=1 // pred_fallthru
      _
    // Predicated region
    $region38: #{tpu_custom_call.1} parent=1 // pred_check
      _
    $region39: #{tpu_custom_call.1} parent=1 // pred_check_branch
      %46 = sbr.rel (0) target = $region41
    $region40: #{tpu_custom_call.1} parent=1 // pred_region
      _
    $region41: #{tpu_custom_call.1} parent=1 // pred_fallthru
      _
    // Predicated region
    $region42: #{tpu_custom_call.1} parent=1 // pred_check
      _
    $region43: #{tpu_custom_call.1} parent=1 // pred_check_branch
      %48 = sbr.rel (0) target = $region45
    $region44: #{tpu_custom_call.1} parent=1 // pred_region
      %49 = dma.done [#allocation3], 8192
    $region45: #{tpu_custom_call.1} parent=1 // pred_fallthru
      _
    %v51 = vld [vmem:[%s0] sm:$0xff]
    %v52 = vld [vmem:[%s0 + $0x8] sm:$0xff]
    %v53 = vld [vmem:[%s0 + $0x10] sm:$0xff]
    %v54 = vld [vmem:[%s0 + $0x18] sm:$0xff]
    %v55 = vld [vmem:[%s1] sm:$0xff]
    %v56 = vld [vmem:[%s1 + $0x8] sm:$0xff]
    %v57 = vld [vmem:[%s1 + $0x10] sm:$0xff]
    %v58 = vld [vmem:[%s1 + $0x18] sm:$0xff]
    %v59 = vld [vmem:[%s1 + $0x20] sm:$0xff]
    %v60 = vld [vmem:[%s1 + $0x28] sm:$0xff]
    %v61 = vld [vmem:[%s1 + $0x30] sm:$0xff]
    %v62 = vld [vmem:[%s1 + $0x38] sm:$0xff]
    %v63 = vld [vmem:[%s1 + $0x40] sm:$0xff]
    %v64 = vld [vmem:[%s1 + $0x48] sm:$0xff]
    %v65 = vld [vmem:[%s1 + $0x50] sm:$0xff]
    %v66 = vld [vmem:[%s1 + $0x58] sm:$0xff]
    %v67 = vld [vmem:[%s1 + $0x60] sm:$0xff]
    %v68 = vld [vmem:[%s1 + $0x68] sm:$0xff]
    %v69 = vld [vmem:[%s1 + $0x70] sm:$0xff]
    %v70 = vld [vmem:[%s1 + $0x78] sm:$0xff]
    %v71 = vld [vmem:[%s2] sm:$0xff]
    %v72 = vld [vmem:[%s2 + $0x8] sm:$0xff]
    %v73 = vld [vmem:[%s2 + $0x10] sm:$0xff]
    %v74 = vld [vmem:[%s2 + $0x18] sm:$0xff]
    %v75 = vld [vmem:[%s2 + $0x20] sm:$0xff]
    %v76 = vld [vmem:[%s2 + $0x28] sm:$0xff]
    %v77 = vld [vmem:[%s2 + $0x30] sm:$0xff]
    %v78 = vld [vmem:[%s2 + $0x38] sm:$0xff]
    %v79 = vld [vmem:[%s3] sm:$0xff]
    %v80 = vld [vmem:[%s3 + $0x8] sm:$0xff]
    %v81 = vld [vmem:[%s3 + $0x10] sm:$0xff]
    %v82 = vld [vmem:[%s3 + $0x18] sm:$0xff]
    %v83 = vld [vmem:[%s3 + $0x20] sm:$0xff]
    %v84 = vld [vmem:[%s3 + $0x28] sm:$0xff]
    %v85 = vld [vmem:[%s3 + $0x30] sm:$0xff]
    %v86 = vld [vmem:[%s3 + $0x38] sm:$0xff]
    %88 = vset.pattern.permute.xlu0 0
    %89 = vperm.xlu0 %88, %v79
    %v90 = vpop.permute.xlu0 %89
    %93 = vset.pattern.permute.xlu0 0
    %94 = vperm.xlu0 %93, %v80
    %v95 = vpop.permute.xlu0 %94
    %98 = vset.pattern.permute.xlu0 0
    %99 = vperm.xlu0 %98, %v81
    %v100 = vpop.permute.xlu0 %99
    %103 = vset.pattern.permute.xlu0 0
    %104 = vperm.xlu0 %103, %v82
    %v105 = vpop.permute.xlu0 %104
    %108 = vset.pattern.permute.xlu0 0
    %109 = vperm.xlu0 %108, %v83
    %v110 = vpop.permute.xlu0 %109
    %113 = vset.pattern.permute.xlu0 0
    %114 = vperm.xlu0 %113, %v84
    %v115 = vpop.permute.xlu0 %114
    %118 = vset.pattern.permute.xlu0 0
    %119 = vperm.xlu0 %118, %v85
    %v120 = vpop.permute.xlu0 %119
    %123 = vset.pattern.permute.xlu0 0
    %124 = vperm.xlu0 %123, %v86
    %v125 = vpop.permute.xlu0 %124
    %vm127 = vcmask 261120
    %v129 = vsel %vm127, %v71, 0
    %v132 = vsel %vm127, %v72, 0
    %v135 = vsel %vm127, %v73, 0
    %v138 = vsel %vm127, %v74, 0
    %v141 = vsel %vm127, %v75, 0
    %v144 = vsel %vm127, %v76, 0
    %v147 = vsel %vm127, %v77, 0
    %v150 = vsel %vm127, %v78, 0
    %152 = vmatprep.subr.mxu0 0.0
    %153 = vmatpush1.msra.mxu0 0.0
    %154 = vmatprep.subr.mxu0 0.0
    %155 = vmatpush1.msra.mxu0 0.0
    %156 = vmatprep.subr.mxu0 0.0
    %157 = vmatpush1.msra.mxu0 0.0
    %158 = vmatprep.subr.mxu0 0.0
    %159 = vmatpush1.msra.mxu0 0.0
    %160 = vmatprep.subr.mxu0 0.0
    %161 = vmatpush1.msra.mxu0 0.0
    %162 = vmatprep.subr.mxu0 0.0
    %163 = vmatpush1.msra.mxu0 0.0
    %164 = vmatprep.subr.mxu0 0.0
    %165 = vmatpush1.msra.mxu0 0.0
    %166 = vmatprep.subr.mxu0 0.0
    %167 = vmatpush1.msra.mxu0 0.0
    %168 = vmatprep.subr.mxu0 0.0
    %169 = vmatpush1.msra.mxu0 0.0
    %170 = vmatprep.subr.mxu0 0.0
    %171 = vmatpush1.msra.mxu0 0.0
    %172 = vmatprep.subr.mxu0 0.0
    %173 = vmatpush1.msra.mxu0 0.0
    %174 = vmatprep.subr.mxu0 0.0
    %175 = vmatpush1.msra.mxu0 0.0
    %176 = vmatprep.subr.mxu0 0.0
    %177 = vmatpush1.msra.mxu0 %v54
    %178 = vmatprep.subr.mxu0 0.0
    %179 = vmatpush1.msra.mxu0 %v53
    %180 = vmatprep.subr.mxu0 0.0
    %181 = vmatpush1.msra.mxu0 %v52
    %182 = vmatprep.subr.mxu0 0.0
    %183 = vmatpush1.msra.mxu0 %v51
    %184 = vmatprep.subr.mxu0 0.0
    %185 = vmatpush2.msra.mxu0 0.0
    %186 = vmatprep.subr.mxu0 0.0
    %187 = vmatpush2.msra.mxu0 0.0
    %188 = vmatprep.subr.mxu0 0.0
    %189 = vmatpush2.msra.mxu0 0.0
    %190 = vmatprep.subr.mxu0 0.0
    %191 = vmatpush2.msra.mxu0 0.0
    %192 = vmatprep.subr.mxu0 0.0
    %193 = vmatpush2.msra.mxu0 0.0
    %194 = vmatprep.subr.mxu0 0.0
    %195 = vmatpush2.msra.mxu0 0.0
    %196 = vmatprep.subr.mxu0 0.0
    %197 = vmatpush2.msra.mxu0 0.0
    %198 = vmatprep.subr.mxu0 0.0
    %199 = vmatpush2.msra.mxu0 0.0
    %200 = vmatprep.subr.mxu0 0.0
    %201 = vmatpush2.msra.mxu0 0.0
    %202 = vmatprep.subr.mxu0 0.0
    %203 = vmatpush2.msra.mxu0 0.0
    %204 = vmatprep.subr.mxu0 0.0
    %205 = vmatpush2.msra.mxu0 0.0
    %206 = vmatprep.subr.mxu0 0.0
    %207 = vmatpush2.msra.mxu0 0.0
    %208 = vmatprep.subr.mxu0 0.0
    %209 = vmatpush2.msra.mxu0 0.0
    %210 = vmatprep.subr.mxu0 0.0
    %211 = vmatpush2.msra.mxu0 0.0
    %212 = vmatprep.subr.mxu0 0.0
    %213 = vmatpush2.msra.mxu0 0.0
    %214 = vmatprep.subr.mxu0 0.0
    %215 = vmatpush2.msra.mxu0 0.0
    %216 = vmatprep.mubr.f32.mxu0 0.0
    %217 = vmatmul.mubr.f32.gmra.mxu0 %v129
    %v218 = vpop.f32.mrf.mxu0
    %v219 = vadd.f32 %v90, %v218
    %v220 = vpop.f32.mrf.mxu0
    %221 = vmatprep.mubr.f32.mxu0 0.0
    %222 = vmatmul.mubr.f32.gmra.mxu0 %v132
    %v223 = vpop.f32.mrf.mxu0
    %v224 = vadd.f32 %v95, %v223
    %v225 = vpop.f32.mrf.mxu0
    %226 = vmatprep.mubr.f32.mxu0 0.0
    %227 = vmatmul.mubr.f32.gmra.mxu0 %v135
    %v228 = vpop.f32.mrf.mxu0
    %v229 = vadd.f32 %v100, %v228
    %v230 = vpop.f32.mrf.mxu0
    %231 = vmatprep.mubr.f32.mxu0 0.0
    %232 = vmatmul.mubr.f32.gmra.mxu0 %v138
    %v233 = vpop.f32.mrf.mxu0
    %v234 = vadd.f32 %v105, %v233
    %v235 = vpop.f32.mrf.mxu0
    %236 = vmatprep.mubr.f32.mxu0 0.0
    %237 = vmatmul.mubr.f32.gmra.mxu0 %v141
    %v238 = vpop.f32.mrf.mxu0
    %v239 = vadd.f32 %v110, %v238
    %v240 = vpop.f32.mrf.mxu0
    %241 = vmatprep.mubr.f32.mxu0 0.0
    %242 = vmatmul.mubr.f32.gmra.mxu0 %v144
    %v243 = vpop.f32.mrf.mxu0
    %v244 = vadd.f32 %v115, %v243
    %v245 = vpop.f32.mrf.mxu0
    %246 = vmatprep.mubr.f32.mxu0 0.0
    %247 = vmatmul.mubr.f32.gmra.mxu0 %v147
    %v248 = vpop.f32.mrf.mxu0
    %v249 = vadd.f32 %v120, %v248
    %v250 = vpop.f32.mrf.mxu0
    %251 = vmatprep.mubr.f32.mxu0 0.0
    %252 = vmatmul.mubr.f32.gmra.mxu0 %v150
    %v253 = vpop.f32.mrf.mxu0
    %v254 = vadd.f32 %v125, %v253
    %v255 = vpop.f32.mrf.mxu0
    %256 = vdwg.mxu0
    %v257 = vld [vmem:[%s4] sm:$0xff]
    %v258 = vld [vmem:[%s4 + $0x8] sm:$0xff]
    %v259 = vld [vmem:[%s4 + $0x10] sm:$0xff]
    %v260 = vld [vmem:[%s4 + $0x18] sm:$0xff]
    %v261 = vld [vmem:[%s5] sm:$0x1]
    %v263 = vlaneseq
    %v264 = vshrl.u32 %v263, 7
    %v265 = vsub.s32 0, %v264
    %v266 = vrot.slane %v261, %v265
    %v269 = vsel %vm127, %v55, 0
    %v272 = vsel %vm127, %v56, 0
    %v275 = vsel %vm127, %v57, 0
    %v278 = vsel %vm127, %v58, 0
    %v281 = vsel %vm127, %v59, 0
    %v284 = vsel %vm127, %v60, 0
    %v287 = vsel %vm127, %v61, 0
    %v290 = vsel %vm127, %v62, 0
    %v293 = vsel %vm127, %v63, 0
    %v296 = vsel %vm127, %v64, 0
    %v299 = vsel %vm127, %v65, 0
    %v302 = vsel %vm127, %v66, 0
    %v305 = vsel %vm127, %v67, 0
    %v308 = vsel %vm127, %v68, 0
    %v311 = vsel %vm127, %v69, 0
    %v314 = vsel %vm127, %v70, 0
    %316 = vmatprep.subr.mxu0 0.0
    %317 = vmatpush1.msra.mxu0 0.0
    %318 = vmatprep.subr.mxu0 0.0
    %319 = vmatpush1.msra.mxu0 0.0
    %320 = vmatprep.subr.mxu0 0.0
    %321 = vmatpush1.msra.mxu0 0.0
    %322 = vmatprep.subr.mxu0 0.0
    %323 = vmatpush1.msra.mxu0 0.0
    %324 = vmatprep.subr.mxu0 0.0
    %325 = vmatpush1.msra.mxu0 0.0
    %326 = vmatprep.subr.mxu0 0.0
    %327 = vmatpush1.msra.mxu0 0.0
    %328 = vmatprep.subr.mxu0 0.0
    %329 = vmatpush1.msra.mxu0 0.0
    %330 = vmatprep.subr.mxu0 0.0
    %331 = vmatpush1.msra.mxu0 0.0
    %332 = vmatprep.subr.mxu0 0.0
    %333 = vmatpush1.msra.mxu0 0.0
    %334 = vmatprep.subr.mxu0 0.0
    %335 = vmatpush1.msra.mxu0 0.0
    %336 = vmatprep.subr.mxu0 0.0
    %337 = vmatpush1.msra.mxu0 0.0
    %338 = vmatprep.subr.mxu0 0.0
    %339 = vmatpush1.msra.mxu0 0.0
    %340 = vmatprep.subr.mxu0 0.0
    %341 = vmatpush1.msra.mxu0 %v260
    %342 = vmatprep.subr.mxu0 0.0
    %343 = vmatpush1.msra.mxu0 %v259
    %344 = vmatprep.subr.mxu0 0.0
    %345 = vmatpush1.msra.mxu0 %v258
    %346 = vmatprep.subr.mxu0 0.0
    %347 = vmatpush1.msra.mxu0 %v257
    %348 = vmatprep.subr.mxu0 0.0
    %349 = vmatpush2.msra.mxu0 0.0
    %350 = vmatprep.subr.mxu0 0.0
    %351 = vmatpush2.msra.mxu0 0.0
    %352 = vmatprep.subr.mxu0 0.0
    %353 = vmatpush2.msra.mxu0 0.0
    %354 = vmatprep.subr.mxu0 0.0
    %355 = vmatpush2.msra.mxu0 0.0
    %356 = vmatprep.subr.mxu0 0.0
    %357 = vmatpush2.msra.mxu0 0.0
    %358 = vmatprep.subr.mxu0 0.0
    %359 = vmatpush2.msra.mxu0 0.0
    %360 = vmatprep.subr.mxu0 0.0
    %361 = vmatpush2.msra.mxu0 0.0
    %362 = vmatprep.subr.mxu0 0.0
    %363 = vmatpush2.msra.mxu0 0.0
    %364 = vmatprep.subr.mxu0 0.0
    %365 = vmatpush2.msra.mxu0 0.0
    %366 = vmatprep.subr.mxu0 0.0
    %367 = vmatpush2.msra.mxu0 0.0
    %368 = vmatprep.subr.mxu0 0.0
    %369 = vmatpush2.msra.mxu0 0.0
    %370 = vmatprep.subr.mxu0 0.0
    %371 = vmatpush2.msra.mxu0 0.0
    %372 = vmatprep.subr.mxu0 0.0
    %373 = vmatpush2.msra.mxu0 0.0
    %374 = vmatprep.subr.mxu0 0.0
    %375 = vmatpush2.msra.mxu0 0.0
    %376 = vmatprep.subr.mxu0 0.0
    %377 = vmatpush2.msra.mxu0 0.0
    %378 = vmatprep.subr.mxu0 0.0
    %379 = vmatpush2.msra.mxu0 0.0
    %380 = vmatprep.mubr.f32.mxu0 0.0
    %381 = vmatmul.mubr.f32.gmra.mxu0 %v269
    %v382 = vpop.f32.mrf.mxu0
    %v383 = vadd.f32 %v266, %v382
    %v384 = vpop.f32.mrf.mxu0
    %385 = vmatprep.mubr.f32.mxu0 0.0
    %386 = vmatmul.mubr.f32.gmra.mxu0 %v272
    %v387 = vpop.f32.mrf.mxu0
    %v388 = vadd.f32 %v266, %v387
    %v389 = vpop.f32.mrf.mxu0
    %390 = vmatprep.mubr.f32.mxu0 0.0
    %391 = vmatmul.mubr.f32.gmra.mxu0 %v275
    %v392 = vpop.f32.mrf.mxu0
    %v393 = vadd.f32 %v266, %v392
    %v394 = vpop.f32.mrf.mxu0
    %395 = vmatprep.mubr.f32.mxu0 0.0
    %396 = vmatmul.mubr.f32.gmra.mxu0 %v278
    %v397 = vpop.f32.mrf.mxu0
    %v398 = vadd.f32 %v266, %v397
    %v399 = vpop.f32.mrf.mxu0
    %400 = vmatprep.mubr.f32.mxu0 0.0
    %401 = vmatmul.mubr.f32.gmra.mxu0 %v281
    %v402 = vpop.f32.mrf.mxu0
    %v403 = vadd.f32 %v266, %v402
    %v404 = vpop.f32.mrf.mxu0
    %405 = vmatprep.mubr.f32.mxu0 0.0
    %406 = vmatmul.mubr.f32.gmra.mxu0 %v284
    %v407 = vpop.f32.mrf.mxu0
    %v408 = vadd.f32 %v266, %v407
    %v409 = vpop.f32.mrf.mxu0
    %410 = vmatprep.mubr.f32.mxu0 0.0
    %411 = vmatmul.mubr.f32.gmra.mxu0 %v287
    %v412 = vpop.f32.mrf.mxu0
    %v413 = vadd.f32 %v266, %v412
    %v414 = vpop.f32.mrf.mxu0
    %415 = vmatprep.mubr.f32.mxu0 0.0
    %416 = vmatmul.mubr.f32.gmra.mxu0 %v290
    %v417 = vpop.f32.mrf.mxu0
    %v418 = vadd.f32 %v266, %v417
    %v419 = vpop.f32.mrf.mxu0
    %420 = vmatprep.mubr.f32.mxu0 0.0
    %421 = vmatmul.mubr.f32.gmra.mxu0 %v293
    %v422 = vpop.f32.mrf.mxu0
    %v423 = vadd.f32 %v266, %v422
    %v424 = vpop.f32.mrf.mxu0
    %425 = vmatprep.mubr.f32.mxu0 0.0
    %426 = vmatmul.mubr.f32.gmra.mxu0 %v296
    %v427 = vpop.f32.mrf.mxu0
    %v428 = vadd.f32 %v266, %v427
    %v429 = vpop.f32.mrf.mxu0
    %430 = vmatprep.mubr.f32.mxu0 0.0
    %431 = vmatmul.mubr.f32.gmra.mxu0 %v299
    %v432 = vpop.f32.mrf.mxu0
    %v433 = vadd.f32 %v266, %v432
    %v434 = vpop.f32.mrf.mxu0
    %435 = vmatprep.mubr.f32.mxu0 0.0
    %436 = vmatmul.mubr.f32.gmra.mxu0 %v302
    %v437 = vpop.f32.mrf.mxu0
    %v438 = vadd.f32 %v266, %v437
    %v439 = vpop.f32.mrf.mxu0
    %440 = vmatprep.mubr.f32.mxu0 0.0
    %441 = vmatmul.mubr.f32.gmra.mxu0 %v305
    %v442 = vpop.f32.mrf.mxu0
    %v443 = vadd.f32 %v266, %v442
    %v444 = vpop.f32.mrf.mxu0
    %445 = vmatprep.mubr.f32.mxu0 0.0
    %446 = vmatmul.mubr.f32.gmra.mxu0 %v308
    %v447 = vpop.f32.mrf.mxu0
    %v448 = vadd.f32 %v266, %v447
    %v449 = vpop.f32.mrf.mxu0
    %450 = vmatprep.mubr.f32.mxu0 0.0
    %451 = vmatmul.mubr.f32.gmra.mxu0 %v311
    %v452 = vpop.f32.mrf.mxu0
    %v453 = vadd.f32 %v266, %v452
    %v454 = vpop.f32.mrf.mxu0
    %455 = vmatprep.mubr.f32.mxu0 0.0
    %456 = vmatmul.mubr.f32.gmra.mxu0 %v314
    %v457 = vpop.f32.mrf.mxu0
    %v458 = vadd.f32 %v266, %v457
    %v459 = vpop.f32.mrf.mxu0
    %460 = vdwg.mxu0
    %v461 = vpack.c.bf16 %v388, %v383
    %v462 = vpack.c.bf16 %v398, %v393
    %v463 = vpack.c.bf16 %v408, %v403
    %v464 = vpack.c.bf16 %v418, %v413
    %v465 = vpack.c.bf16 %v428, %v423
    %v466 = vpack.c.bf16 %v438, %v433
    %v467 = vpack.c.bf16 %v448, %v443
    %v468 = vpack.c.bf16 %v458, %v453
    %v469 = vpack.c.bf16 %v239, %v239
    %v470 = vld [vmem:[#allocation2] sm:$0xff]
    %v471 = vld [vmem:[#allocation2 + $0x8] sm:$0xff]
    %v472 = vld [vmem:[#allocation2 + $0x10] sm:$0xff]
    %v473 = vld [vmem:[#allocation2 + $0x18] sm:$0xff]
    %v474 = vld [vmem:[#allocation2 + $0x20] sm:$0xff]
    %v475 = vld [vmem:[#allocation2 + $0x28] sm:$0xff]
    %v476 = vld [vmem:[#allocation2 + $0x30] sm:$0xff]
    %v477 = vld [vmem:[#allocation2 + $0x38] sm:$0xff]
    %v478 = vld [vmem:[#allocation2 + $0x40] sm:$0xff]
    %v479 = vld [vmem:[#allocation2 + $0x48] sm:$0xff]
    %v480 = vld [vmem:[#allocation2 + $0x50] sm:$0xff]
    %v481 = vld [vmem:[#allocation2 + $0x58] sm:$0xff]
    %v482 = vld [vmem:[#allocation2 + $0x60] sm:$0xff]
    %v483 = vld [vmem:[#allocation2 + $0x68] sm:$0xff]
    %v484 = vld [vmem:[#allocation2 + $0x70] sm:$0xff]
    %v485 = vld [vmem:[#allocation2 + $0x78] sm:$0xff]
    %v486 = vld [vmem:[%s7] sm:$0xff]
    %488 = vset.pattern.permute.xlu0 0
    %489 = vperm.xlu0 %488, %v486
    %v490 = vpop.permute.xlu0 %489
    %v492 = vmul.f32 %v219, %v490
    %v493 = vpack.c.bf16 %v492, %v492
    %vm494 = vcmask 64512
    %v496 = vsel %vm494, %v461, 0
    %v499 = vsel %vm494, %v462, 0
    %v502 = vsel %vm494, %v463, 0
    %v505 = vsel %vm494, %v464, 0
    %v508 = vsel %vm494, %v465, 0
    %v511 = vsel %vm494, %v466, 0
    %v514 = vsel %vm494, %v467, 0
    %v517 = vsel %vm494, %v468, 0
    %vm519 = vcmask 1043456
    %v521 = vsel %vm519, %v493, 0
    %523 = vmatprep.subr.bf16.mxu0 0
    %524 = vmatpush1.bf16.msra.mxu0 0
    %525 = vmatprep.subr.bf16.mxu0 0
    %526 = vmatpush1.bf16.msra.mxu0 0
    %527 = vmatprep.subr.bf16.mxu0 0
    %528 = vmatpush1.bf16.msra.mxu0 0
    %529 = vmatprep.subr.bf16.mxu0 0
    %530 = vmatpush1.bf16.msra.mxu0 0
    %531 = vmatprep.subr.bf16.mxu0 0
    %532 = vmatpush1.bf16.msra.mxu0 0
    %533 = vmatprep.subr.bf16.mxu0 0
    %534 = vmatpush1.bf16.msra.mxu0 0
    %535 = vmatprep.subr.bf16.mxu0 0
    %536 = vmatpush1.bf16.msra.mxu0 0
    %537 = vmatprep.subr.bf16.mxu0 0
    %538 = vmatpush1.bf16.msra.mxu0 %v521
    %539 = vmatprep.subr.bf16.mxu0 0
    %540 = vmatpush2.bf16.msra.mxu0 0
    %541 = vmatprep.subr.bf16.mxu0 0
    %542 = vmatpush2.bf16.msra.mxu0 0
    %543 = vmatprep.subr.bf16.mxu0 0
    %544 = vmatpush2.bf16.msra.mxu0 0
    %545 = vmatprep.subr.bf16.mxu0 0
    %546 = vmatpush2.bf16.msra.mxu0 0
    %547 = vmatprep.subr.bf16.mxu0 0
    %548 = vmatpush2.bf16.msra.mxu0 0
    %549 = vmatprep.subr.bf16.mxu0 0
    %550 = vmatpush2.bf16.msra.mxu0 0
    %551 = vmatprep.subr.bf16.mxu0 0
    %552 = vmatpush2.bf16.msra.mxu0 0
    %553 = vmatprep.subr.bf16.mxu0 0
    %554 = vmatpush2.bf16.msra.mxu0 0
    %555 = vmatprep.mubr.bf16.mxu0 0
    %556 = vmatmul.mubr.bf16.gmra.mxu0 %v496
    %v557 = vpop.f32.mrf.mxu0
    %v558 = vadd.f32 %v470, %v557
    %v559 = vpop.f32.mrf.mxu0
    %v560 = vpop.f32.mrf.mxu0
    %v561 = vadd.f32 %v471, %v560
    %v562 = vpop.f32.mrf.mxu0
    %563 = vmatprep.mubr.bf16.mxu0 0
    %564 = vmatmul.mubr.bf16.gmra.mxu0 %v499
    %v565 = vpop.f32.mrf.mxu0
    %v566 = vadd.f32 %v472, %v565
    %v567 = vpop.f32.mrf.mxu0
    %v568 = vpop.f32.mrf.mxu0
    %v569 = vadd.f32 %v473, %v568
    %v570 = vpop.f32.mrf.mxu0
    %571 = vmatprep.mubr.bf16.mxu0 0
    %572 = vmatmul.mubr.bf16.gmra.mxu0 %v502
    %v573 = vpop.f32.mrf.mxu0
    %v574 = vadd.f32 %v474, %v573
    %v575 = vpop.f32.mrf.mxu0
    %v576 = vpop.f32.mrf.mxu0
    %v577 = vadd.f32 %v475, %v576
    %v578 = vpop.f32.mrf.mxu0
    %579 = vmatprep.mubr.bf16.mxu0 0
    %580 = vmatmul.mubr.bf16.gmra.mxu0 %v505
    %v581 = vpop.f32.mrf.mxu0
    %v582 = vadd.f32 %v476, %v581
    %v583 = vpop.f32.mrf.mxu0
    %v584 = vpop.f32.mrf.mxu0
    %v585 = vadd.f32 %v477, %v584
    %v586 = vpop.f32.mrf.mxu0
    %587 = vmatprep.mubr.bf16.mxu0 0
    %588 = vmatmul.mubr.bf16.gmra.mxu0 %v508
    %v589 = vpop.f32.mrf.mxu0
    %v590 = vadd.f32 %v478, %v589
    %v591 = vpop.f32.mrf.mxu0
    %v592 = vpop.f32.mrf.mxu0
    %v593 = vadd.f32 %v479, %v592
    %v594 = vpop.f32.mrf.mxu0
    %595 = vmatprep.mubr.bf16.mxu0 0
    %596 = vmatmul.mubr.bf16.gmra.mxu0 %v511
    %v597 = vpop.f32.mrf.mxu0
    %v598 = vadd.f32 %v480, %v597
    %v599 = vpop.f32.mrf.mxu0
    %v600 = vpop.f32.mrf.mxu0
    %v601 = vadd.f32 %v481, %v600
    %v602 = vpop.f32.mrf.mxu0
    %603 = vmatprep.mubr.bf16.mxu0 0
    %604 = vmatmul.mubr.bf16.gmra.mxu0 %v514
    %v605 = vpop.f32.mrf.mxu0
    %v606 = vadd.f32 %v482, %v605
    %v607 = vpop.f32.mrf.mxu0
    %v608 = vpop.f32.mrf.mxu0
    %v609 = vadd.f32 %v483, %v608
    %v610 = vpop.f32.mrf.mxu0
    %611 = vmatprep.mubr.bf16.mxu0 0
    %612 = vmatmul.mubr.bf16.gmra.mxu0 %v517
    %v613 = vpop.f32.mrf.mxu0
    %v614 = vadd.f32 %v484, %v613
    %v615 = vpop.f32.mrf.mxu0
    %v616 = vpop.f32.mrf.mxu0
    %v617 = vadd.f32 %v485, %v616
    %v618 = vpop.f32.mrf.mxu0
    %619 = vdwg.mxu0
    %v620 = vmax.f32 %v558, %v574
    %v621 = vmax.f32 %v561, %v577
    %v622 = vmax.f32 %v566, %v582
    %v623 = vmax.f32 %v569, %v585
    %v624 = vmax.f32 %v620, %v590
    %v625 = vmax.f32 %v621, %v593
    %v626 = vmax.f32 %v622, %v598
    %v627 = vmax.f32 %v623, %v601
    %v628 = vmax.f32 %v624, %v606
    %v629 = vmax.f32 %v625, %v609
    %v630 = vmax.f32 %v626, %v614
    %v631 = vmax.f32 %v627, %v617
    %v632 = vmax.f32 %v628, %v629
    %v633 = vmax.f32 %v630, %v631
    %v634 = vmax.f32 %v632, %v633
    %v635 = vrot.slane %v634, 4
    %v636 = vmax.f32 %v634, %v635
    %v637 = vrot.slane %v636, 2
    %v638 = vmax.f32 %v636, %v637
    %v639 = vrot.slane %v638, 1
    %v640 = vmax.f32 %v638, %v639
    %v641 = vsub.f32 %v558, %v640
    %v642 = vsub.f32 %v561, %v640
    %v643 = vsub.f32 %v566, %v640
    %v644 = vsub.f32 %v569, %v640
    %v645 = vsub.f32 %v574, %v640
    %v646 = vsub.f32 %v577, %v640
    %v647 = vsub.f32 %v582, %v640
    %v648 = vsub.f32 %v585, %v640
    %v649 = vsub.f32 %v590, %v640
    %v650 = vsub.f32 %v593, %v640
    %v651 = vsub.f32 %v598, %v640
    %v652 = vsub.f32 %v601, %v640
    %v653 = vsub.f32 %v606, %v640
    %v654 = vsub.f32 %v609, %v640
    %v655 = vsub.f32 %v614, %v640
    %v656 = vsub.f32 %v617, %v640
    %v657 = vmul.f32 %v641, 1.442695
    %v658 = vpow.pop %v657
    %v659 = vmul.f32 %v642, 1.442695
    %v660 = vpow.pop %v659
    %v661 = vmul.f32 %v643, 1.442695
    %v662 = vpow.pop %v661
    %v663 = vmul.f32 %v644, 1.442695
    %v664 = vpow.pop %v663
    %v665 = vmul.f32 %v645, 1.442695
    %v666 = vpow.pop %v665
    %v667 = vmul.f32 %v646, 1.442695
    %v668 = vpow.pop %v667
    %v669 = vmul.f32 %v647, 1.442695
    %v670 = vpow.pop %v669
    %v671 = vmul.f32 %v648, 1.442695
    %v672 = vpow.pop %v671
    %v673 = vmul.f32 %v649, 1.442695
    %v674 = vpow.pop %v673
    %v675 = vmul.f32 %v650, 1.442695
    %v676 = vpow.pop %v675
    %v677 = vmul.f32 %v651, 1.442695
    %v678 = vpow.pop %v677
    %v679 = vmul.f32 %v652, 1.442695
    %v680 = vpow.pop %v679
    %v681 = vmul.f32 %v653, 1.442695
    %v682 = vpow.pop %v681
    %v683 = vmul.f32 %v654, 1.442695
    %v684 = vpow.pop %v683
    %v685 = vmul.f32 %v655, 1.442695
    %v686 = vpow.pop %v685
    %v687 = vmul.f32 %v656, 1.442695
    %v688 = vpow.pop %v687
    %v689 = vadd.f32 %v658, %v660
    %v690 = vadd.f32 %v689, %v662
    %v691 = vadd.f32 %v690, %v664
    %v692 = vadd.f32 %v691, %v666
    %v693 = vadd.f32 %v692, %v668
    %v694 = vadd.f32 %v693, %v670
    %v695 = vadd.f32 %v694, %v672
    %v696 = vadd.f32 %v695, %v674
    %v697 = vadd.f32 %v696, %v676
    %v698 = vadd.f32 %v697, %v678
    %v699 = vadd.f32 %v698, %v680
    %v700 = vadd.f32 %v699, %v682
    %v701 = vadd.f32 %v700, %v684
    %v702 = vadd.f32 %v701, %v686
    %v703 = vadd.f32 %v702, %v688
    %v704 = vrot.slane %v703, 4
    %v705 = vadd.f32 %v703, %v704
    %v706 = vrot.slane %v705, 2
    %v707 = vadd.f32 %v705, %v706
    %v708 = vrot.slane %v707, 1
    %v709 = vadd.f32 %v707, %v708
    %v710 = vrcp.pop %v709
    %v711 = vpack.c.bf16 %v660, %v658
    %v712 = vpack.c.bf16 %v664, %v662
    %v713 = vpack.c.bf16 %v668, %v666
    %v714 = vpack.c.bf16 %v672, %v670
    %v715 = vpack.c.bf16 %v676, %v674
    %v716 = vpack.c.bf16 %v680, %v678
    %v717 = vpack.c.bf16 %v684, %v682
    %v718 = vpack.c.bf16 %v688, %v686
    %719 = vmatprep.subr.bf16.mxu0 0
    %720 = vmatpush1.bf16.msra.mxu0 %v718
    %721 = vmatprep.subr.bf16.mxu0 0
    %722 = vmatpush1.bf16.msra.mxu0 %v717
    %723 = vmatprep.subr.bf16.mxu0 0
    %724 = vmatpush1.bf16.msra.mxu0 %v716
    %725 = vmatprep.subr.bf16.mxu0 0
    %726 = vmatpush1.bf16.msra.mxu0 %v715
    %727 = vmatprep.subr.bf16.mxu0 0
    %728 = vmatpush1.bf16.msra.mxu0 %v714
    %729 = vmatprep.subr.bf16.mxu0 0
    %730 = vmatpush1.bf16.msra.mxu0 %v713
    %731 = vmatprep.subr.bf16.mxu0 0
    %732 = vmatpush1.bf16.msra.mxu0 %v712
    %733 = vmatprep.subr.bf16.mxu0 0
    %734 = vmatpush1.bf16.msra.mxu0 %v711
    %735 = vmatprep.subr.bf16.mxu0 0
    %736 = vmatpush2.bf16.msra.mxu0 0
    %737 = vmatprep.subr.bf16.mxu0 0
    %738 = vmatpush2.bf16.msra.mxu0 0
    %739 = vmatprep.subr.bf16.mxu0 0
    %740 = vmatpush2.bf16.msra.mxu0 0
    %741 = vmatprep.subr.bf16.mxu0 0
    %742 = vmatpush2.bf16.msra.mxu0 0
    %743 = vmatprep.subr.bf16.mxu0 0
    %744 = vmatpush2.bf16.msra.mxu0 0
    %745 = vmatprep.subr.bf16.mxu0 0
    %746 = vmatpush2.bf16.msra.mxu0 0
    %747 = vmatprep.subr.bf16.mxu0 0
    %748 = vmatpush2.bf16.msra.mxu0 0
    %749 = vmatprep.subr.bf16.mxu0 0
    %750 = vmatpush2.bf16.msra.mxu0 0
    %751 = vmatprep.mubr.bf16.mxu0 0
    %752 = vmatmul.mubr.bf16.gmra.mxu0 %v469
    %v753 = vpop.f32.mrf.mxu0
    %v754 = vadd.f32 0.0, %v753
    %v755 = vpop.f32.mrf.mxu0
    %v756 = vpop.f32.mrf.mxu0
    %v757 = vpop.f32.mrf.mxu0
    %758 = vdwg.mxu0
    %v759 = vmul.f32 %v754, %v710
    %v760 = vpack.c.bf16 %v219, %v219
    %v762 = vsel %vm519, %v760, 0
    %764 = vmatprep.subr.bf16.mxu0 0
    %765 = vmatpush1.bf16.msra.mxu0 0
    %766 = vmatprep.subr.bf16.mxu0 0
    %767 = vmatpush1.bf16.msra.mxu0 0
    %768 = vmatprep.subr.bf16.mxu0 0
    %769 = vmatpush1.bf16.msra.mxu0 0
    %770 = vmatprep.subr.bf16.mxu0 0
    %771 = vmatpush1.bf16.msra.mxu0 0
    %772 = vmatprep.subr.bf16.mxu0 0
    %773 = vmatpush1.bf16.msra.mxu0 0
    %774 = vmatprep.subr.bf16.mxu0 0
    %775 = vmatpush1.bf16.msra.mxu0 0
    %776 = vmatprep.subr.bf16.mxu0 0
    %777 = vmatpush1.bf16.msra.mxu0 0
    %778 = vmatprep.subr.bf16.mxu0 0
    %779 = vmatpush1.bf16.msra.mxu0 %v762
    %780 = vmatprep.subr.bf16.mxu0 0
    %781 = vmatpush2.bf16.msra.mxu0 0
    %782 = vmatprep.subr.bf16.mxu0 0
    %783 = vmatpush2.bf16.msra.mxu0 0
    %784 = vmatprep.subr.bf16.mxu0 0
    %785 = vmatpush2.bf16.msra.mxu0 0
    %786 = vmatprep.subr.bf16.mxu0 0
    %787 = vmatpush2.bf16.msra.mxu0 0
    %788 = vmatprep.subr.bf16.mxu0 0
    %789 = vmatpush2.bf16.msra.mxu0 0
    %790 = vmatprep.subr.bf16.mxu0 0
    %791 = vmatpush2.bf16.msra.mxu0 0
    %792 = vmatprep.subr.bf16.mxu0 0
    %793 = vmatpush2.bf16.msra.mxu0 0
    %794 = vmatprep.subr.bf16.mxu0 0
    %795 = vmatpush2.bf16.msra.mxu0 0
    %796 = vmatprep.mubr.bf16.mxu0 0
    %797 = vmatmul.mubr.bf16.gmra.mxu0 %v496
    %v798 = vpop.f32.mrf.mxu0
    %v799 = vadd.f32 %v470, %v798
    %v800 = vpop.f32.mrf.mxu0
    %v801 = vpop.f32.mrf.mxu0
    %v802 = vadd.f32 %v471, %v801
    %v803 = vpop.f32.mrf.mxu0
    %804 = vmatprep.mubr.bf16.mxu0 0
    %805 = vmatmul.mubr.bf16.gmra.mxu0 %v499
    %v806 = vpop.f32.mrf.mxu0
    %v807 = vadd.f32 %v472, %v806
    %v808 = vpop.f32.mrf.mxu0
    %v809 = vpop.f32.mrf.mxu0
    %v810 = vadd.f32 %v473, %v809
    %v811 = vpop.f32.mrf.mxu0
    %812 = vmatprep.mubr.bf16.mxu0 0
    %813 = vmatmul.mubr.bf16.gmra.mxu0 %v502
    %v814 = vpop.f32.mrf.mxu0
    %v815 = vadd.f32 %v474, %v814
    %v816 = vpop.f32.mrf.mxu0
    %v817 = vpop.f32.mrf.mxu0
    %v818 = vadd.f32 %v475, %v817
    %v819 = vpop.f32.mrf.mxu0
    %820 = vmatprep.mubr.bf16.mxu0 0
    %821 = vmatmul.mubr.bf16.gmra.mxu0 %v505
    %v822 = vpop.f32.mrf.mxu0
    %v823 = vadd.f32 %v476, %v822
    %v824 = vpop.f32.mrf.mxu0
    %v825 = vpop.f32.mrf.mxu0
    %v826 = vadd.f32 %v477, %v825
    %v827 = vpop.f32.mrf.mxu0
    %828 = vmatprep.mubr.bf16.mxu0 0
    %829 = vmatmul.mubr.bf16.gmra.mxu0 %v508
    %v830 = vpop.f32.mrf.mxu0
    %v831 = vadd.f32 %v478, %v830
    %v832 = vpop.f32.mrf.mxu0
    %v833 = vpop.f32.mrf.mxu0
    %v834 = vadd.f32 %v479, %v833
    %v835 = vpop.f32.mrf.mxu0
    %836 = vmatprep.mubr.bf16.mxu0 0
    %837 = vmatmul.mubr.bf16.gmra.mxu0 %v511
    %v838 = vpop.f32.mrf.mxu0
    %v839 = vadd.f32 %v480, %v838
    %v840 = vpop.f32.mrf.mxu0
    %v841 = vpop.f32.mrf.mxu0
    %v842 = vadd.f32 %v481, %v841
    %v843 = vpop.f32.mrf.mxu0
    %844 = vmatprep.mubr.bf16.mxu0 0
    %845 = vmatmul.mubr.bf16.gmra.mxu0 %v514
    %v846 = vpop.f32.mrf.mxu0
    %v847 = vadd.f32 %v482, %v846
    %v848 = vpop.f32.mrf.mxu0
    %v849 = vpop.f32.mrf.mxu0
    %v850 = vadd.f32 %v483, %v849
    %v851 = vpop.f32.mrf.mxu0
    %852 = vmatprep.mubr.bf16.mxu0 0
    %853 = vmatmul.mubr.bf16.gmra.mxu0 %v517
    %v854 = vpop.f32.mrf.mxu0
    %v855 = vadd.f32 %v484, %v854
    %v856 = vpop.f32.mrf.mxu0
    %v857 = vpop.f32.mrf.mxu0
    %v858 = vadd.f32 %v485, %v857
    %v859 = vpop.f32.mrf.mxu0
    %860 = vdwg.mxu0
    %v861 = vmax.f32 %v799, %v815
    %v862 = vmax.f32 %v802, %v818
    %v863 = vmax.f32 %v807, %v823
    %v864 = vmax.f32 %v810, %v826
    %v865 = vmax.f32 %v861, %v831
    %v866 = vmax.f32 %v862, %v834
    %v867 = vmax.f32 %v863, %v839
    %v868 = vmax.f32 %v864, %v842
    %v869 = vmax.f32 %v865, %v847
    %v870 = vmax.f32 %v866, %v850
    %v871 = vmax.f32 %v867, %v855
    %v872 = vmax.f32 %v868, %v858
    %v873 = vmax.f32 %v869, %v870
    %v874 = vmax.f32 %v871, %v872
    %v875 = vmax.f32 %v873, %v874
    %v876 = vrot.slane %v875, 4
    %v877 = vmax.f32 %v875, %v876
    %v878 = vrot.slane %v877, 2
    %v879 = vmax.f32 %v877, %v878
    %v880 = vrot.slane %v879, 1
    %v881 = vmax.f32 %v879, %v880
    %v882 = vsub.f32 %v799, %v881
    %v883 = vsub.f32 %v802, %v881
    %v884 = vsub.f32 %v807, %v881
    %v885 = vsub.f32 %v810, %v881
    %v886 = vsub.f32 %v815, %v881
    %v887 = vsub.f32 %v818, %v881
    %v888 = vsub.f32 %v823, %v881
    %v889 = vsub.f32 %v826, %v881
    %v890 = vsub.f32 %v831, %v881
    %v891 = vsub.f32 %v834, %v881
    %v892 = vsub.f32 %v839, %v881
    %v893 = vsub.f32 %v842, %v881
    %v894 = vsub.f32 %v847, %v881
    %v895 = vsub.f32 %v850, %v881
    %v896 = vsub.f32 %v855, %v881
    %v897 = vsub.f32 %v858, %v881
    %v898 = vmul.f32 %v882, 1.442695
    %v899 = vpow.pop %v898
    %v900 = vmul.f32 %v883, 1.442695
    %v901 = vpow.pop %v900
    %v902 = vmul.f32 %v884, 1.442695
    %v903 = vpow.pop %v902
    %v904 = vmul.f32 %v885, 1.442695
    %v905 = vpow.pop %v904
    %v906 = vmul.f32 %v886, 1.442695
    %v907 = vpow.pop %v906
    %v908 = vmul.f32 %v887, 1.442695
    %v909 = vpow.pop %v908
    %v910 = vmul.f32 %v888, 1.442695
    %v911 = vpow.pop %v910
    %v912 = vmul.f32 %v889, 1.442695
    %v913 = vpow.pop %v912
    %v914 = vmul.f32 %v890, 1.442695
    %v915 = vpow.pop %v914
    %v916 = vmul.f32 %v891, 1.442695
    %v917 = vpow.pop %v916
    %v918 = vmul.f32 %v892, 1.442695
    %v919 = vpow.pop %v918
    %v920 = vmul.f32 %v893, 1.442695
    %v921 = vpow.pop %v920
    %v922 = vmul.f32 %v894, 1.442695
    %v923 = vpow.pop %v922
    %v924 = vmul.f32 %v895, 1.442695
    %v925 = vpow.pop %v924
    %v926 = vmul.f32 %v896, 1.442695
    %v927 = vpow.pop %v926
    %v928 = vmul.f32 %v897, 1.442695
    %v929 = vpow.pop %v928
    %v930 = vadd.f32 %v899, %v901
    %v931 = vadd.f32 %v930, %v903
    %v932 = vadd.f32 %v931, %v905
    %v933 = vadd.f32 %v932, %v907
    %v934 = vadd.f32 %v933, %v909
    %v935 = vadd.f32 %v934, %v911
    %v936 = vadd.f32 %v935, %v913
    %v937 = vadd.f32 %v936, %v915
    %v938 = vadd.f32 %v937, %v917
    %v939 = vadd.f32 %v938, %v919
    %v940 = vadd.f32 %v939, %v921
    %v941 = vadd.f32 %v940, %v923
    %v942 = vadd.f32 %v941, %v925
    %v943 = vadd.f32 %v942, %v927
    %v944 = vadd.f32 %v943, %v929
    %v945 = vrot.slane %v944, 4
    %v946 = vadd.f32 %v944, %v945
    %v947 = vrot.slane %v946, 2
    %v948 = vadd.f32 %v946, %v947
    %v949 = vrot.slane %v948, 1
    %v950 = vadd.f32 %v948, %v949
    %v951 = vrcp.pop %v950
    %v952 = vpack.c.bf16 %v901, %v899
    %v953 = vpack.c.bf16 %v905, %v903
    %v954 = vpack.c.bf16 %v909, %v907
    %v955 = vpack.c.bf16 %v913, %v911
    %v956 = vpack.c.bf16 %v917, %v915
    %v957 = vpack.c.bf16 %v921, %v919
    %v958 = vpack.c.bf16 %v925, %v923
    %v959 = vpack.c.bf16 %v929, %v927
    %960 = vmatprep.subr.bf16.mxu0 0
    %961 = vmatpush1.bf16.msra.mxu0 %v959
    %962 = vmatprep.subr.bf16.mxu0 0
    %963 = vmatpush1.bf16.msra.mxu0 %v958
    %964 = vmatprep.subr.bf16.mxu0 0
    %965 = vmatpush1.bf16.msra.mxu0 %v957
    %966 = vmatprep.subr.bf16.mxu0 0
    %967 = vmatpush1.bf16.msra.mxu0 %v956
    %968 = vmatprep.subr.bf16.mxu0 0
    %969 = vmatpush1.bf16.msra.mxu0 %v955
    %970 = vmatprep.subr.bf16.mxu0 0
    %971 = vmatpush1.bf16.msra.mxu0 %v954
    %972 = vmatprep.subr.bf16.mxu0 0
    %973 = vmatpush1.bf16.msra.mxu0 %v953
    %974 = vmatprep.subr.bf16.mxu0 0
    %975 = vmatpush1.bf16.msra.mxu0 %v952
    %976 = vmatprep.subr.bf16.mxu0 0
    %977 = vmatpush2.bf16.msra.mxu0 0
    %978 = vmatprep.subr.bf16.mxu0 0
    %979 = vmatpush2.bf16.msra.mxu0 0
    %980 = vmatprep.subr.bf16.mxu0 0
    %981 = vmatpush2.bf16.msra.mxu0 0
    %982 = vmatprep.subr.bf16.mxu0 0
    %983 = vmatpush2.bf16.msra.mxu0 0
    %984 = vmatprep.subr.bf16.mxu0 0
    %985 = vmatpush2.bf16.msra.mxu0 0
    %986 = vmatprep.subr.bf16.mxu0 0
    %987 = vmatpush2.bf16.msra.mxu0 0
    %988 = vmatprep.subr.bf16.mxu0 0
    %989 = vmatpush2.bf16.msra.mxu0 0
    %990 = vmatprep.subr.bf16.mxu0 0
    %991 = vmatpush2.bf16.msra.mxu0 0
    %992 = vmatprep.mubr.bf16.mxu0 0
    %993 = vmatmul.mubr.bf16.gmra.mxu0 %v469
    %v994 = vpop.f32.mrf.mxu0
    %v995 = vadd.f32 0.0, %v994
    %v996 = vpop.f32.mrf.mxu0
    %v997 = vpop.f32.mrf.mxu0
    %v998 = vpop.f32.mrf.mxu0
    %999 = vdwg.mxu0
    %v1000 = vmul.f32 %v995, %v951
    %v1001 = vpack.c.bf16 %v244, %v244
    %s1002 = scalar_lea.vmem [#allocation2], 128
    %v1003 = vld [vmem:[%s1002] sm:$0xff]
    %v1004 = vld [vmem:[%s1002 + $0x8] sm:$0xff]
    %v1005 = vld [vmem:[%s1002 + $0x10] sm:$0xff]
    %v1006 = vld [vmem:[%s1002 + $0x18] sm:$0xff]
    %v1007 = vld [vmem:[%s1002 + $0x20] sm:$0xff]
    %v1008 = vld [vmem:[%s1002 + $0x28] sm:$0xff]
    %v1009 = vld [vmem:[%s1002 + $0x30] sm:$0xff]
    %v1010 = vld [vmem:[%s1002 + $0x38] sm:$0xff]
    %v1011 = vld [vmem:[%s1002 + $0x40] sm:$0xff]
    %v1012 = vld [vmem:[%s1002 + $0x48] sm:$0xff]
    %v1013 = vld [vmem:[%s1002 + $0x50] sm:$0xff]
    %v1014 = vld [vmem:[%s1002 + $0x58] sm:$0xff]
    %v1015 = vld [vmem:[%s1002 + $0x60] sm:$0xff]
    %v1016 = vld [vmem:[%s1002 + $0x68] sm:$0xff]
    %v1017 = vld [vmem:[%s1002 + $0x70] sm:$0xff]
    %v1018 = vld [vmem:[%s1002 + $0x78] sm:$0xff]
    %v1019 = vmul.f32 %v224, %v490
    %v1020 = vpack.c.bf16 %v1019, %v1019
    %1029 = vrot.lane.b32.xlu0 %v461, 120
    %v1030 = vpop.permute.xlu0 %1029
    %1031 = vrot.lane.b32.xlu0 %v462, 120
    %v1032 = vpop.permute.xlu0 %1031
    %1033 = vrot.lane.b32.xlu0 %v463, 120
    %v1034 = vpop.permute.xlu0 %1033
    %1035 = vrot.lane.b32.xlu0 %v464, 120
    %v1036 = vpop.permute.xlu0 %1035
    %1037 = vrot.lane.b32.xlu0 %v465, 120
    %v1038 = vpop.permute.xlu0 %1037
    %1039 = vrot.lane.b32.xlu0 %v466, 120
    %v1040 = vpop.permute.xlu0 %1039
    %1041 = vrot.lane.b32.xlu0 %v467, 120
    %v1042 = vpop.permute.xlu0 %1041
    %1043 = vrot.lane.b32.xlu0 %v468, 120
    %v1044 = vpop.permute.xlu0 %1043
    %v1046 = vsel %vm494, %v1030, 0
    %v1049 = vsel %vm494, %v1032, 0
    %v1052 = vsel %vm494, %v1034, 0
    %v1055 = vsel %vm494, %v1036, 0
    %v1058 = vsel %vm494, %v1038, 0
    %v1061 = vsel %vm494, %v1040, 0
    %v1064 = vsel %vm494, %v1042, 0
    %v1067 = vsel %vm494, %v1044, 0
    %v1070 = vsel %vm519, %v1020, 0
    %1072 = vmatprep.subr.bf16.mxu0 0
    %1073 = vmatpush1.bf16.msra.mxu0 0
    %1074 = vmatprep.subr.bf16.mxu0 0
    %1075 = vmatpush1.bf16.msra.mxu0 0
    %1076 = vmatprep.subr.bf16.mxu0 0
    %1077 = vmatpush1.bf16.msra.mxu0 0
    %1078 = vmatprep.subr.bf16.mxu0 0
    %1079 = vmatpush1.bf16.msra.mxu0 0
    %1080 = vmatprep.subr.bf16.mxu0 0
    %1081 = vmatpush1.bf16.msra.mxu0 0
    %1082 = vmatprep.subr.bf16.mxu0 0
    %1083 = vmatpush1.bf16.msra.mxu0 0
    %1084 = vmatprep.subr.bf16.mxu0 0
    %1085 = vmatpush1.bf16.msra.mxu0 0
    %1086 = vmatprep.subr.bf16.mxu0 0
    %1087 = vmatpush1.bf16.msra.mxu0 %v1070
    %1088 = vmatprep.subr.bf16.mxu0 0
    %1089 = vmatpush2.bf16.msra.mxu0 0
    %1090 = vmatprep.subr.bf16.mxu0 0
    %1091 = vmatpush2.bf16.msra.mxu0 0
    %1092 = vmatprep.subr.bf16.mxu0 0
    %1093 = vmatpush2.bf16.msra.mxu0 0
    %1094 = vmatprep.subr.bf16.mxu0 0
    %1095 = vmatpush2.bf16.msra.mxu0 0
    %1096 = vmatprep.subr.bf16.mxu0 0
    %1097 = vmatpush2.bf16.msra.mxu0 0
    %1098 = vmatprep.subr.bf16.mxu0 0
    %1099 = vmatpush2.bf16.msra.mxu0 0
    %1100 = vmatprep.subr.bf16.mxu0 0
    %1101 = vmatpush2.bf16.msra.mxu0 0
    %1102 = vmatprep.subr.bf16.mxu0 0
    %1103 = vmatpush2.bf16.msra.mxu0 0
    %1104 = vmatprep.mubr.bf16.mxu0 0
    %1105 = vmatmul.mubr.bf16.gmra.mxu0 %v1046
    %v1106 = vpop.f32.mrf.mxu0
    %v1107 = vadd.f32 %v1003, %v1106
    %v1108 = vpop.f32.mrf.mxu0
    %v1109 = vpop.f32.mrf.mxu0
    %v1110 = vadd.f32 %v1004, %v1109
    %v1111 = vpop.f32.mrf.mxu0
    %1112 = vmatprep.mubr.bf16.mxu0 0
    %1113 = vmatmul.mubr.bf16.gmra.mxu0 %v1049
    %v1114 = vpop.f32.mrf.mxu0
    %v1115 = vadd.f32 %v1005, %v1114
    %v1116 = vpop.f32.mrf.mxu0
    %v1117 = vpop.f32.mrf.mxu0
    %v1118 = vadd.f32 %v1006, %v1117
    %v1119 = vpop.f32.mrf.mxu0
    %1120 = vmatprep.mubr.bf16.mxu0 0
    %1121 = vmatmul.mubr.bf16.gmra.mxu0 %v1052
    %v1122 = vpop.f32.mrf.mxu0
    %v1123 = vadd.f32 %v1007, %v1122
    %v1124 = vpop.f32.mrf.mxu0
    %v1125 = vpop.f32.mrf.mxu0
    %v1126 = vadd.f32 %v1008, %v1125
    %v1127 = vpop.f32.mrf.mxu0
    %1128 = vmatprep.mubr.bf16.mxu0 0
    %1129 = vmatmul.mubr.bf16.gmra.mxu0 %v1055
    %v1130 = vpop.f32.mrf.mxu0
    %v1131 = vadd.f32 %v1009, %v1130
    %v1132 = vpop.f32.mrf.mxu0
    %v1133 = vpop.f32.mrf.mxu0
    %v1134 = vadd.f32 %v1010, %v1133
    %v1135 = vpop.f32.mrf.mxu0
    %1136 = vmatprep.mubr.bf16.mxu0 0
    %1137 = vmatmul.mubr.bf16.gmra.mxu0 %v1058
    %v1138 = vpop.f32.mrf.mxu0
    %v1139 = vadd.f32 %v1011, %v1138
    %v1140 = vpop.f32.mrf.mxu0
    %v1141 = vpop.f32.mrf.mxu0
    %v1142 = vadd.f32 %v1012, %v1141
    %v1143 = vpop.f32.mrf.mxu0
    %1144 = vmatprep.mubr.bf16.mxu0 0
    %1145 = vmatmul.mubr.bf16.gmra.mxu0 %v1061
    %v1146 = vpop.f32.mrf.mxu0
    %v1147 = vadd.f32 %v1013, %v1146
    %v1148 = vpop.f32.mrf.mxu0
    %v1149 = vpop.f32.mrf.mxu0
    %v1150 = vadd.f32 %v1014, %v1149
    %v1151 = vpop.f32.mrf.mxu0
    %1152 = vmatprep.mubr.bf16.mxu0 0
    %1153 = vmatmul.mubr.bf16.gmra.mxu0 %v1064
    %v1154 = vpop.f32.mrf.mxu0
    %v1155 = vadd.f32 %v1015, %v1154
    %v1156 = vpop.f32.mrf.mxu0
    %v1157 = vpop.f32.mrf.mxu0
    %v1158 = vadd.f32 %v1016, %v1157
    %v1159 = vpop.f32.mrf.mxu0
    %1160 = vmatprep.mubr.bf16.mxu0 0
    %1161 = vmatmul.mubr.bf16.gmra.mxu0 %v1067
    %v1162 = vpop.f32.mrf.mxu0
    %v1163 = vadd.f32 %v1017, %v1162
    %v1164 = vpop.f32.mrf.mxu0
    %v1165 = vpop.f32.mrf.mxu0
    %v1166 = vadd.f32 %v1018, %v1165
    %v1167 = vpop.f32.mrf.mxu0
    %1168 = vdwg.mxu0
    %v1169 = vmax.f32 %v1107, %v1123
    %v1170 = vmax.f32 %v1110, %v1126
    %v1171 = vmax.f32 %v1115, %v1131
    %v1172 = vmax.f32 %v1118, %v1134
    %v1173 = vmax.f32 %v1169, %v1139
    %v1174 = vmax.f32 %v1170, %v1142
    %v1175 = vmax.f32 %v1171, %v1147
    %v1176 = vmax.f32 %v1172, %v1150
    %v1177 = vmax.f32 %v1173, %v1155
    %v1178 = vmax.f32 %v1174, %v1158
    %v1179 = vmax.f32 %v1175, %v1163
    %v1180 = vmax.f32 %v1176, %v1166
    %v1181 = vmax.f32 %v1177, %v1178
    %v1182 = vmax.f32 %v1179, %v1180
    %v1183 = vmax.f32 %v1181, %v1182
    %v1184 = vrot.slane %v1183, 4
    %v1185 = vmax.f32 %v1183, %v1184
    %v1186 = vrot.slane %v1185, 2
    %v1187 = vmax.f32 %v1185, %v1186
    %v1188 = vrot.slane %v1187, 1
    %v1189 = vmax.f32 %v1187, %v1188
    %v1190 = vsub.f32 %v1107, %v1189
    %v1191 = vsub.f32 %v1110, %v1189
    %v1192 = vsub.f32 %v1115, %v1189
    %v1193 = vsub.f32 %v1118, %v1189
    %v1194 = vsub.f32 %v1123, %v1189
    %v1195 = vsub.f32 %v1126, %v1189
    %v1196 = vsub.f32 %v1131, %v1189
    %v1197 = vsub.f32 %v1134, %v1189
    %v1198 = vsub.f32 %v1139, %v1189
    %v1199 = vsub.f32 %v1142, %v1189
    %v1200 = vsub.f32 %v1147, %v1189
    %v1201 = vsub.f32 %v1150, %v1189
    %v1202 = vsub.f32 %v1155, %v1189
    %v1203 = vsub.f32 %v1158, %v1189
    %v1204 = vsub.f32 %v1163, %v1189
    %v1205 = vsub.f32 %v1166, %v1189
    %v1206 = vmul.f32 %v1190, 1.442695
    %v1207 = vpow.pop %v1206
    %v1208 = vmul.f32 %v1191, 1.442695
    %v1209 = vpow.pop %v1208
    %v1210 = vmul.f32 %v1192, 1.442695
    %v1211 = vpow.pop %v1210
    %v1212 = vmul.f32 %v1193, 1.442695
    %v1213 = vpow.pop %v1212
    %v1214 = vmul.f32 %v1194, 1.442695
    %v1215 = vpow.pop %v1214
    %v1216 = vmul.f32 %v1195, 1.442695
    %v1217 = vpow.pop %v1216
    %v1218 = vmul.f32 %v1196, 1.442695
    %v1219 = vpow.pop %v1218
    %v1220 = vmul.f32 %v1197, 1.442695
    %v1221 = vpow.pop %v1220
    %v1222 = vmul.f32 %v1198, 1.442695
    %v1223 = vpow.pop %v1222
    %v1224 = vmul.f32 %v1199, 1.442695
    %v1225 = vpow.pop %v1224
    %v1226 = vmul.f32 %v1200, 1.442695
    %v1227 = vpow.pop %v1226
    %v1228 = vmul.f32 %v1201, 1.442695
    %v1229 = vpow.pop %v1228
    %v1230 = vmul.f32 %v1202, 1.442695
    %v1231 = vpow.pop %v1230
    %v1232 = vmul.f32 %v1203, 1.442695
    %v1233 = vpow.pop %v1232
    %v1234 = vmul.f32 %v1204, 1.442695
    %v1235 = vpow.pop %v1234
    %v1236 = vmul.f32 %v1205, 1.442695
    %v1237 = vpow.pop %v1236
    %v1238 = vadd.f32 %v1207, %v1209
    %v1239 = vadd.f32 %v1238, %v1211
    %v1240 = vadd.f32 %v1239, %v1213
    %v1241 = vadd.f32 %v1240, %v1215
    %v1242 = vadd.f32 %v1241, %v1217
    %v1243 = vadd.f32 %v1242, %v1219
    %v1244 = vadd.f32 %v1243, %v1221
    %v1245 = vadd.f32 %v1244, %v1223
    %v1246 = vadd.f32 %v1245, %v1225
    %v1247 = vadd.f32 %v1246, %v1227
    %v1248 = vadd.f32 %v1247, %v1229
    %v1249 = vadd.f32 %v1248, %v1231
    %v1250 = vadd.f32 %v1249, %v1233
    %v1251 = vadd.f32 %v1250, %v1235
    %v1252 = vadd.f32 %v1251, %v1237
    %v1253 = vrot.slane %v1252, 4
    %v1254 = vadd.f32 %v1252, %v1253
    %v1255 = vrot.slane %v1254, 2
    %v1256 = vadd.f32 %v1254, %v1255
    %v1257 = vrot.slane %v1256, 1
    %v1258 = vadd.f32 %v1256, %v1257
    %v1259 = vrcp.pop %v1258
    %v1260 = vpack.c.bf16 %v1209, %v1207
    %v1261 = vpack.c.bf16 %v1213, %v1211
    %v1262 = vpack.c.bf16 %v1217, %v1215
    %v1263 = vpack.c.bf16 %v1221, %v1219
    %v1264 = vpack.c.bf16 %v1225, %v1223
    %v1265 = vpack.c.bf16 %v1229, %v1227
    %v1266 = vpack.c.bf16 %v1233, %v1231
    %v1267 = vpack.c.bf16 %v1237, %v1235
    %1268 = vmatprep.subr.bf16.mxu0 0
    %1269 = vmatpush1.bf16.msra.mxu0 %v1267
    %1270 = vmatprep.subr.bf16.mxu0 0
    %1271 = vmatpush1.bf16.msra.mxu0 %v1266
    %1272 = vmatprep.subr.bf16.mxu0 0
    %1273 = vmatpush1.bf16.msra.mxu0 %v1265
    %1274 = vmatprep.subr.bf16.mxu0 0
    %1275 = vmatpush1.bf16.msra.mxu0 %v1264
    %1276 = vmatprep.subr.bf16.mxu0 0
    %1277 = vmatpush1.bf16.msra.mxu0 %v1263
    %1278 = vmatprep.subr.bf16.mxu0 0
    %1279 = vmatpush1.bf16.msra.mxu0 %v1262
    %1280 = vmatprep.subr.bf16.mxu0 0
    %1281 = vmatpush1.bf16.msra.mxu0 %v1261
    %1282 = vmatprep.subr.bf16.mxu0 0
    %1283 = vmatpush1.bf16.msra.mxu0 %v1260
    %1284 = vmatprep.subr.bf16.mxu0 0
    %1285 = vmatpush2.bf16.msra.mxu0 0
    %1286 = vmatprep.subr.bf16.mxu0 0
    %1287 = vmatpush2.bf16.msra.mxu0 0
    %1288 = vmatprep.subr.bf16.mxu0 0
    %1289 = vmatpush2.bf16.msra.mxu0 0
    %1290 = vmatprep.subr.bf16.mxu0 0
    %1291 = vmatpush2.bf16.msra.mxu0 0
    %1292 = vmatprep.subr.bf16.mxu0 0
    %1293 = vmatpush2.bf16.msra.mxu0 0
    %1294 = vmatprep.subr.bf16.mxu0 0
    %1295 = vmatpush2.bf16.msra.mxu0 0
    %1296 = vmatprep.subr.bf16.mxu0 0
    %1297 = vmatpush2.bf16.msra.mxu0 0
    %1298 = vmatprep.subr.bf16.mxu0 0
    %1299 = vmatpush2.bf16.msra.mxu0 0
    %1300 = vmatprep.mubr.bf16.mxu0 0
    %1301 = vmatmul.mubr.bf16.gmra.mxu0 %v1001
    %v1302 = vpop.f32.mrf.mxu0
    %v1303 = vadd.f32 0.0, %v1302
    %v1304 = vpop.f32.mrf.mxu0
    %v1305 = vpop.f32.mrf.mxu0
    %v1306 = vpop.f32.mrf.mxu0
    %1307 = vdwg.mxu0
    %v1308 = vmul.f32 %v1303, %v1259
    %v1309 = vpack.c.bf16 %v224, %v224
    %v1311 = vsel %vm519, %v1309, 0
    %1313 = vmatprep.subr.bf16.mxu0 0
    %1314 = vmatpush1.bf16.msra.mxu0 0
    %1315 = vmatprep.subr.bf16.mxu0 0
    %1316 = vmatpush1.bf16.msra.mxu0 0
    %1317 = vmatprep.subr.bf16.mxu0 0
    %1318 = vmatpush1.bf16.msra.mxu0 0
    %1319 = vmatprep.subr.bf16.mxu0 0
    %1320 = vmatpush1.bf16.msra.mxu0 0
    %1321 = vmatprep.subr.bf16.mxu0 0
    %1322 = vmatpush1.bf16.msra.mxu0 0
    %1323 = vmatprep.subr.bf16.mxu0 0
    %1324 = vmatpush1.bf16.msra.mxu0 0
    %1325 = vmatprep.subr.bf16.mxu0 0
    %1326 = vmatpush1.bf16.msra.mxu0 0
    %1327 = vmatprep.subr.bf16.mxu0 0
    %1328 = vmatpush1.bf16.msra.mxu0 %v1311
    %1329 = vmatprep.subr.bf16.mxu0 0
    %1330 = vmatpush2.bf16.msra.mxu0 0
    %1331 = vmatprep.subr.bf16.mxu0 0
    %1332 = vmatpush2.bf16.msra.mxu0 0
    %1333 = vmatprep.subr.bf16.mxu0 0
    %1334 = vmatpush2.bf16.msra.mxu0 0
    %1335 = vmatprep.subr.bf16.mxu0 0
    %1336 = vmatpush2.bf16.msra.mxu0 0
    %1337 = vmatprep.subr.bf16.mxu0 0
    %1338 = vmatpush2.bf16.msra.mxu0 0
    %1339 = vmatprep.subr.bf16.mxu0 0
    %1340 = vmatpush2.bf16.msra.mxu0 0
    %1341 = vmatprep.subr.bf16.mxu0 0
    %1342 = vmatpush2.bf16.msra.mxu0 0
    %1343 = vmatprep.subr.bf16.mxu0 0
    %1344 = vmatpush2.bf16.msra.mxu0 0
    %1345 = vmatprep.mubr.bf16.mxu0 0
    %1346 = vmatmul.mubr.bf16.gmra.mxu0 %v1046
    %v1347 = vpop.f32.mrf.mxu0
    %v1348 = vadd.f32 %v1003, %v1347
    %v1349 = vpop.f32.mrf.mxu0
    %v1350 = vpop.f32.mrf.mxu0
    %v1351 = vadd.f32 %v1004, %v1350
    %v1352 = vpop.f32.mrf.mxu0
    %1353 = vmatprep.mubr.bf16.mxu0 0
    %1354 = vmatmul.mubr.bf16.gmra.mxu0 %v1049
    %v1355 = vpop.f32.mrf.mxu0
    %v1356 = vadd.f32 %v1005, %v1355
    %v1357 = vpop.f32.mrf.mxu0
    %v1358 = vpop.f32.mrf.mxu0
    %v1359 = vadd.f32 %v1006, %v1358
    %v1360 = vpop.f32.mrf.mxu0
    %1361 = vmatprep.mubr.bf16.mxu0 0
    %1362 = vmatmul.mubr.bf16.gmra.mxu0 %v1052
    %v1363 = vpop.f32.mrf.mxu0
    %v1364 = vadd.f32 %v1007, %v1363
    %v1365 = vpop.f32.mrf.mxu0
    %v1366 = vpop.f32.mrf.mxu0
    %v1367 = vadd.f32 %v1008, %v1366
    %v1368 = vpop.f32.mrf.mxu0
    %1369 = vmatprep.mubr.bf16.mxu0 0
    %1370 = vmatmul.mubr.bf16.gmra.mxu0 %v1055
    %v1371 = vpop.f32.mrf.mxu0
    %v1372 = vadd.f32 %v1009, %v1371
    %v1373 = vpop.f32.mrf.mxu0
    %v1374 = vpop.f32.mrf.mxu0
    %v1375 = vadd.f32 %v1010, %v1374
    %v1376 = vpop.f32.mrf.mxu0
    %1377 = vmatprep.mubr.bf16.mxu0 0
    %1378 = vmatmul.mubr.bf16.gmra.mxu0 %v1058
    %v1379 = vpop.f32.mrf.mxu0
    %v1380 = vadd.f32 %v1011, %v1379
    %v1381 = vpop.f32.mrf.mxu0
    %v1382 = vpop.f32.mrf.mxu0
    %v1383 = vadd.f32 %v1012, %v1382
    %v1384 = vpop.f32.mrf.mxu0
    %1385 = vmatprep.mubr.bf16.mxu0 0
    %1386 = vmatmul.mubr.bf16.gmra.mxu0 %v1061
    %v1387 = vpop.f32.mrf.mxu0
    %v1388 = vadd.f32 %v1013, %v1387
    %v1389 = vpop.f32.mrf.mxu0
    %v1390 = vpop.f32.mrf.mxu0
    %v1391 = vadd.f32 %v1014, %v1390
    %v1392 = vpop.f32.mrf.mxu0
    %1393 = vmatprep.mubr.bf16.mxu0 0
    %1394 = vmatmul.mubr.bf16.gmra.mxu0 %v1064
    %v1395 = vpop.f32.mrf.mxu0
    %v1396 = vadd.f32 %v1015, %v1395
    %v1397 = vpop.f32.mrf.mxu0
    %v1398 = vpop.f32.mrf.mxu0
    %v1399 = vadd.f32 %v1016, %v1398
    %v1400 = vpop.f32.mrf.mxu0
    %1401 = vmatprep.mubr.bf16.mxu0 0
    %1402 = vmatmul.mubr.bf16.gmra.mxu0 %v1067
    %v1403 = vpop.f32.mrf.mxu0
    %v1404 = vadd.f32 %v1017, %v1403
    %v1405 = vpop.f32.mrf.mxu0
    %v1406 = vpop.f32.mrf.mxu0
    %v1407 = vadd.f32 %v1018, %v1406
    %v1408 = vpop.f32.mrf.mxu0
    %1409 = vdwg.mxu0
    %v1410 = vmax.f32 %v1348, %v1364
    %v1411 = vmax.f32 %v1351, %v1367
    %v1412 = vmax.f32 %v1356, %v1372
    %v1413 = vmax.f32 %v1359, %v1375
    %v1414 = vmax.f32 %v1410, %v1380
    %v1415 = vmax.f32 %v1411, %v1383
    %v1416 = vmax.f32 %v1412, %v1388
    %v1417 = vmax.f32 %v1413, %v1391
    %v1418 = vmax.f32 %v1414, %v1396
    %v1419 = vmax.f32 %v1415, %v1399
    %v1420 = vmax.f32 %v1416, %v1404
    %v1421 = vmax.f32 %v1417, %v1407
    %v1422 = vmax.f32 %v1418, %v1419
    %v1423 = vmax.f32 %v1420, %v1421
    %v1424 = vmax.f32 %v1422, %v1423
    %v1425 = vrot.slane %v1424, 4
    %v1426 = vmax.f32 %v1424, %v1425
    %v1427 = vrot.slane %v1426, 2
    %v1428 = vmax.f32 %v1426, %v1427
    %v1429 = vrot.slane %v1428, 1
    %v1430 = vmax.f32 %v1428, %v1429
    %v1431 = vsub.f32 %v1348, %v1430
    %v1432 = vsub.f32 %v1351, %v1430
    %v1433 = vsub.f32 %v1356, %v1430
    %v1434 = vsub.f32 %v1359, %v1430
    %v1435 = vsub.f32 %v1364, %v1430
    %v1436 = vsub.f32 %v1367, %v1430
    %v1437 = vsub.f32 %v1372, %v1430
    %v1438 = vsub.f32 %v1375, %v1430
    %v1439 = vsub.f32 %v1380, %v1430
    %v1440 = vsub.f32 %v1383, %v1430
    %v1441 = vsub.f32 %v1388, %v1430
    %v1442 = vsub.f32 %v1391, %v1430
    %v1443 = vsub.f32 %v1396, %v1430
    %v1444 = vsub.f32 %v1399, %v1430
    %v1445 = vsub.f32 %v1404, %v1430
    %v1446 = vsub.f32 %v1407, %v1430
    %v1447 = vmul.f32 %v1431, 1.442695
    %v1448 = vpow.pop %v1447
    %v1449 = vmul.f32 %v1432, 1.442695
    %v1450 = vpow.pop %v1449
    %v1451 = vmul.f32 %v1433, 1.442695
    %v1452 = vpow.pop %v1451
    %v1453 = vmul.f32 %v1434, 1.442695
    %v1454 = vpow.pop %v1453
    %v1455 = vmul.f32 %v1435, 1.442695
    %v1456 = vpow.pop %v1455
    %v1457 = vmul.f32 %v1436, 1.442695
    %v1458 = vpow.pop %v1457
    %v1459 = vmul.f32 %v1437, 1.442695
    %v1460 = vpow.pop %v1459
    %v1461 = vmul.f32 %v1438, 1.442695
    %v1462 = vpow.pop %v1461
    %v1463 = vmul.f32 %v1439, 1.442695
    %v1464 = vpow.pop %v1463
    %v1465 = vmul.f32 %v1440, 1.442695
    %v1466 = vpow.pop %v1465
    %v1467 = vmul.f32 %v1441, 1.442695
    %v1468 = vpow.pop %v1467
    %v1469 = vmul.f32 %v1442, 1.442695
    %v1470 = vpow.pop %v1469
    %v1471 = vmul.f32 %v1443, 1.442695
    %v1472 = vpow.pop %v1471
    %v1473 = vmul.f32 %v1444, 1.442695
    %v1474 = vpow.pop %v1473
    %v1475 = vmul.f32 %v1445, 1.442695
    %v1476 = vpow.pop %v1475
    %v1477 = vmul.f32 %v1446, 1.442695
    %v1478 = vpow.pop %v1477
    %v1479 = vadd.f32 %v1448, %v1450
    %v1480 = vadd.f32 %v1479, %v1452
    %v1481 = vadd.f32 %v1480, %v1454
    %v1482 = vadd.f32 %v1481, %v1456
    %v1483 = vadd.f32 %v1482, %v1458
    %v1484 = vadd.f32 %v1483, %v1460
    %v1485 = vadd.f32 %v1484, %v1462
    %v1486 = vadd.f32 %v1485, %v1464
    %v1487 = vadd.f32 %v1486, %v1466
    %v1488 = vadd.f32 %v1487, %v1468
    %v1489 = vadd.f32 %v1488, %v1470
    %v1490 = vadd.f32 %v1489, %v1472
    %v1491 = vadd.f32 %v1490, %v1474
    %v1492 = vadd.f32 %v1491, %v1476
    %v1493 = vadd.f32 %v1492, %v1478
    %v1494 = vrot.slane %v1493, 4
    %v1495 = vadd.f32 %v1493, %v1494
    %v1496 = vrot.slane %v1495, 2
    %v1497 = vadd.f32 %v1495, %v1496
    %v1498 = vrot.slane %v1497, 1
    %v1499 = vadd.f32 %v1497, %v1498
    %v1500 = vrcp.pop %v1499
    %v1501 = vpack.c.bf16 %v1450, %v1448
    %v1502 = vpack.c.bf16 %v1454, %v1452
    %v1503 = vpack.c.bf16 %v1458, %v1456
    %v1504 = vpack.c.bf16 %v1462, %v1460
    %v1505 = vpack.c.bf16 %v1466, %v1464
    %v1506 = vpack.c.bf16 %v1470, %v1468
    %v1507 = vpack.c.bf16 %v1474, %v1472
    %v1508 = vpack.c.bf16 %v1478, %v1476
    %1509 = vmatprep.subr.bf16.mxu0 0
    %1510 = vmatpush1.bf16.msra.mxu0 %v1508
    %1511 = vmatprep.subr.bf16.mxu0 0
    %1512 = vmatpush1.bf16.msra.mxu0 %v1507
    %1513 = vmatprep.subr.bf16.mxu0 0
    %1514 = vmatpush1.bf16.msra.mxu0 %v1506
    %1515 = vmatprep.subr.bf16.mxu0 0
    %1516 = vmatpush1.bf16.msra.mxu0 %v1505
    %1517 = vmatprep.subr.bf16.mxu0 0
    %1518 = vmatpush1.bf16.msra.mxu0 %v1504
    %1519 = vmatprep.subr.bf16.mxu0 0
    %1520 = vmatpush1.bf16.msra.mxu0 %v1503
    %1521 = vmatprep.subr.bf16.mxu0 0
    %1522 = vmatpush1.bf16.msra.mxu0 %v1502
    %1523 = vmatprep.subr.bf16.mxu0 0
    %1524 = vmatpush1.bf16.msra.mxu0 %v1501
    %1525 = vmatprep.subr.bf16.mxu0 0
    %1526 = vmatpush2.bf16.msra.mxu0 0
    %1527 = vmatprep.subr.bf16.mxu0 0
    %1528 = vmatpush2.bf16.msra.mxu0 0
    %1529 = vmatprep.subr.bf16.mxu0 0
    %1530 = vmatpush2.bf16.msra.mxu0 0
    %1531 = vmatprep.subr.bf16.mxu0 0
    %1532 = vmatpush2.bf16.msra.mxu0 0
    %1533 = vmatprep.subr.bf16.mxu0 0
    %1534 = vmatpush2.bf16.msra.mxu0 0
    %1535 = vmatprep.subr.bf16.mxu0 0
    %1536 = vmatpush2.bf16.msra.mxu0 0
    %1537 = vmatprep.subr.bf16.mxu0 0
    %1538 = vmatpush2.bf16.msra.mxu0 0
    %1539 = vmatprep.subr.bf16.mxu0 0
    %1540 = vmatpush2.bf16.msra.mxu0 0
    %1541 = vmatprep.mubr.bf16.mxu0 0
    %1542 = vmatmul.mubr.bf16.gmra.mxu0 %v1001
    %v1543 = vpop.f32.mrf.mxu0
    %v1544 = vadd.f32 0.0, %v1543
    %v1545 = vpop.f32.mrf.mxu0
    %v1546 = vpop.f32.mrf.mxu0
    %v1547 = vpop.f32.mrf.mxu0
    %1548 = vdwg.mxu0
    %v1549 = vmul.f32 %v1544, %v1500
    %v1550 = vpack.c.bf16 %v249, %v249
    %s1551 = scalar_lea.vmem [#allocation2], 256
    %v1552 = vld [vmem:[%s1551] sm:$0xff]
    %v1553 = vld [vmem:[%s1551 + $0x8] sm:$0xff]
    %v1554 = vld [vmem:[%s1551 + $0x10] sm:$0xff]
    %v1555 = vld [vmem:[%s1551 + $0x18] sm:$0xff]
    %v1556 = vld [vmem:[%s1551 + $0x20] sm:$0xff]
    %v1557 = vld [vmem:[%s1551 + $0x28] sm:$0xff]
    %v1558 = vld [vmem:[%s1551 + $0x30] sm:$0xff]
    %v1559 = vld [vmem:[%s1551 + $0x38] sm:$0xff]
    %v1560 = vld [vmem:[%s1551 + $0x40] sm:$0xff]
    %v1561 = vld [vmem:[%s1551 + $0x48] sm:$0xff]
    %v1562 = vld [vmem:[%s1551 + $0x50] sm:$0xff]
    %v1563 = vld [vmem:[%s1551 + $0x58] sm:$0xff]
    %v1564 = vld [vmem:[%s1551 + $0x60] sm:$0xff]
    %v1565 = vld [vmem:[%s1551 + $0x68] sm:$0xff]
    %v1566 = vld [vmem:[%s1551 + $0x70] sm:$0xff]
    %v1567 = vld [vmem:[%s1551 + $0x78] sm:$0xff]
    %v1568 = vmul.f32 %v229, %v490
    %v1569 = vpack.c.bf16 %v1568, %v1568
    %1570 = vrot.lane.b32.xlu0 %v461, 112
    %v1571 = vpop.permute.xlu0 %1570
    %1572 = vrot.lane.b32.xlu0 %v462, 112
    %v1573 = vpop.permute.xlu0 %1572
    %1574 = vrot.lane.b32.xlu0 %v463, 112
    %v1575 = vpop.permute.xlu0 %1574
    %1576 = vrot.lane.b32.xlu0 %v464, 112
    %v1577 = vpop.permute.xlu0 %1576
    %1578 = vrot.lane.b32.xlu0 %v465, 112
    %v1579 = vpop.permute.xlu0 %1578
    %1580 = vrot.lane.b32.xlu0 %v466, 112
    %v1581 = vpop.permute.xlu0 %1580
    %1582 = vrot.lane.b32.xlu0 %v467, 112
    %v1583 = vpop.permute.xlu0 %1582
    %1584 = vrot.lane.b32.xlu0 %v468, 112
    %v1585 = vpop.permute.xlu0 %1584
    %v1587 = vsel %vm494, %v1571, 0
    %v1590 = vsel %vm494, %v1573, 0
    %v1593 = vsel %vm494, %v1575, 0
    %v1596 = vsel %vm494, %v1577, 0
    %v1599 = vsel %vm494, %v1579, 0
    %v1602 = vsel %vm494, %v1581, 0
    %v1605 = vsel %vm494, %v1583, 0
    %v1608 = vsel %vm494, %v1585, 0
    %v1611 = vsel %vm519, %v1569, 0
    %1613 = vmatprep.subr.bf16.mxu0 0
    %1614 = vmatpush1.bf16.msra.mxu0 0
    %1615 = vmatprep.subr.bf16.mxu0 0
    %1616 = vmatpush1.bf16.msra.mxu0 0
    %1617 = vmatprep.subr.bf16.mxu0 0
    %1618 = vmatpush1.bf16.msra.mxu0 0
    %1619 = vmatprep.subr.bf16.mxu0 0
    %1620 = vmatpush1.bf16.msra.mxu0 0
    %1621 = vmatprep.subr.bf16.mxu0 0
    %1622 = vmatpush1.bf16.msra.mxu0 0
    %1623 = vmatprep.subr.bf16.mxu0 0
    %1624 = vmatpush1.bf16.msra.mxu0 0
    %1625 = vmatprep.subr.bf16.mxu0 0
    %1626 = vmatpush1.bf16.msra.mxu0 0
    %1627 = vmatprep.subr.bf16.mxu0 0
    %1628 = vmatpush1.bf16.msra.mxu0 %v1611
    %1629 = vmatprep.subr.bf16.mxu0 0
    %1630 = vmatpush2.bf16.msra.mxu0 0
    %1631 = vmatprep.subr.bf16.mxu0 0
    %1632 = vmatpush2.bf16.msra.mxu0 0
    %1633 = vmatprep.subr.bf16.mxu0 0
    %1634 = vmatpush2.bf16.msra.mxu0 0
    %1635 = vmatprep.subr.bf16.mxu0 0
    %1636 = vmatpush2.bf16.msra.mxu0 0
    %1637 = vmatprep.subr.bf16.mxu0 0
    %1638 = vmatpush2.bf16.msra.mxu0 0
    %1639 = vmatprep.subr.bf16.mxu0 0
    %1640 = vmatpush2.bf16.msra.mxu0 0
    %1641 = vmatprep.subr.bf16.mxu0 0
    %1642 = vmatpush2.bf16.msra.mxu0 0
    %1643 = vmatprep.subr.bf16.mxu0 0
    %1644 = vmatpush2.bf16.msra.mxu0 0
    %1645 = vmatprep.mubr.bf16.mxu0 0
    %1646 = vmatmul.mubr.bf16.gmra.mxu0 %v1587
    %v1647 = vpop.f32.mrf.mxu0
    %v1648 = vadd.f32 %v1552, %v1647
    %v1649 = vpop.f32.mrf.mxu0
    %v1650 = vpop.f32.mrf.mxu0
    %v1651 = vadd.f32 %v1553, %v1650
    %v1652 = vpop.f32.mrf.mxu0
    %1653 = vmatprep.mubr.bf16.mxu0 0
    %1654 = vmatmul.mubr.bf16.gmra.mxu0 %v1590
    %v1655 = vpop.f32.mrf.mxu0
    %v1656 = vadd.f32 %v1554, %v1655
    %v1657 = vpop.f32.mrf.mxu0
    %v1658 = vpop.f32.mrf.mxu0
    %v1659 = vadd.f32 %v1555, %v1658
    %v1660 = vpop.f32.mrf.mxu0
    %1661 = vmatprep.mubr.bf16.mxu0 0
    %1662 = vmatmul.mubr.bf16.gmra.mxu0 %v1593
    %v1663 = vpop.f32.mrf.mxu0
    %v1664 = vadd.f32 %v1556, %v1663
    %v1665 = vpop.f32.mrf.mxu0
    %v1666 = vpop.f32.mrf.mxu0
    %v1667 = vadd.f32 %v1557, %v1666
    %v1668 = vpop.f32.mrf.mxu0
    %1669 = vmatprep.mubr.bf16.mxu0 0
    %1670 = vmatmul.mubr.bf16.gmra.mxu0 %v1596
    %v1671 = vpop.f32.mrf.mxu0
    %v1672 = vadd.f32 %v1558, %v1671
    %v1673 = vpop.f32.mrf.mxu0
    %v1674 = vpop.f32.mrf.mxu0
    %v1675 = vadd.f32 %v1559, %v1674
    %v1676 = vpop.f32.mrf.mxu0
    %1677 = vmatprep.mubr.bf16.mxu0 0
    %1678 = vmatmul.mubr.bf16.gmra.mxu0 %v1599
    %v1679 = vpop.f32.mrf.mxu0
    %v1680 = vadd.f32 %v1560, %v1679
    %v1681 = vpop.f32.mrf.mxu0
    %v1682 = vpop.f32.mrf.mxu0
    %v1683 = vadd.f32 %v1561, %v1682
    %v1684 = vpop.f32.mrf.mxu0
    %1685 = vmatprep.mubr.bf16.mxu0 0
    %1686 = vmatmul.mubr.bf16.gmra.mxu0 %v1602
    %v1687 = vpop.f32.mrf.mxu0
    %v1688 = vadd.f32 %v1562, %v1687
    %v1689 = vpop.f32.mrf.mxu0
    %v1690 = vpop.f32.mrf.mxu0
    %v1691 = vadd.f32 %v1563, %v1690
    %v1692 = vpop.f32.mrf.mxu0
    %1693 = vmatprep.mubr.bf16.mxu0 0
    %1694 = vmatmul.mubr.bf16.gmra.mxu0 %v1605
    %v1695 = vpop.f32.mrf.mxu0
    %v1696 = vadd.f32 %v1564, %v1695
    %v1697 = vpop.f32.mrf.mxu0
    %v1698 = vpop.f32.mrf.mxu0
    %v1699 = vadd.f32 %v1565, %v1698
    %v1700 = vpop.f32.mrf.mxu0
    %1701 = vmatprep.mubr.bf16.mxu0 0
    %1702 = vmatmul.mubr.bf16.gmra.mxu0 %v1608
    %v1703 = vpop.f32.mrf.mxu0
    %v1704 = vadd.f32 %v1566, %v1703
    %v1705 = vpop.f32.mrf.mxu0
    %v1706 = vpop.f32.mrf.mxu0
    %v1707 = vadd.f32 %v1567, %v1706
    %v1708 = vpop.f32.mrf.mxu0
    %1709 = vdwg.mxu0
    %v1710 = vmax.f32 %v1648, %v1664
    %v1711 = vmax.f32 %v1651, %v1667
    %v1712 = vmax.f32 %v1656, %v1672
    %v1713 = vmax.f32 %v1659, %v1675
    %v1714 = vmax.f32 %v1710, %v1680
    %v1715 = vmax.f32 %v1711, %v1683
    %v1716 = vmax.f32 %v1712, %v1688
    %v1717 = vmax.f32 %v1713, %v1691
    %v1718 = vmax.f32 %v1714, %v1696
    %v1719 = vmax.f32 %v1715, %v1699
    %v1720 = vmax.f32 %v1716, %v1704
    %v1721 = vmax.f32 %v1717, %v1707
    %v1722 = vmax.f32 %v1718, %v1719
    %v1723 = vmax.f32 %v1720, %v1721
    %v1724 = vmax.f32 %v1722, %v1723
    %v1725 = vrot.slane %v1724, 4
    %v1726 = vmax.f32 %v1724, %v1725
    %v1727 = vrot.slane %v1726, 2
    %v1728 = vmax.f32 %v1726, %v1727
    %v1729 = vrot.slane %v1728, 1
    %v1730 = vmax.f32 %v1728, %v1729
    %v1731 = vsub.f32 %v1648, %v1730
    %v1732 = vsub.f32 %v1651, %v1730
    %v1733 = vsub.f32 %v1656, %v1730
    %v1734 = vsub.f32 %v1659, %v1730
    %v1735 = vsub.f32 %v1664, %v1730
    %v1736 = vsub.f32 %v1667, %v1730
    %v1737 = vsub.f32 %v1672, %v1730
    %v1738 = vsub.f32 %v1675, %v1730
    %v1739 = vsub.f32 %v1680, %v1730
    %v1740 = vsub.f32 %v1683, %v1730
    %v1741 = vsub.f32 %v1688, %v1730
    %v1742 = vsub.f32 %v1691, %v1730
    %v1743 = vsub.f32 %v1696, %v1730
    %v1744 = vsub.f32 %v1699, %v1730
    %v1745 = vsub.f32 %v1704, %v1730
    %v1746 = vsub.f32 %v1707, %v1730
    %v1747 = vmul.f32 %v1731, 1.442695
    %v1748 = vpow.pop %v1747
    %v1749 = vmul.f32 %v1732, 1.442695
    %v1750 = vpow.pop %v1749
    %v1751 = vmul.f32 %v1733, 1.442695
    %v1752 = vpow.pop %v1751
    %v1753 = vmul.f32 %v1734, 1.442695
    %v1754 = vpow.pop %v1753
    %v1755 = vmul.f32 %v1735, 1.442695
    %v1756 = vpow.pop %v1755
    %v1757 = vmul.f32 %v1736, 1.442695
    %v1758 = vpow.pop %v1757
    %v1759 = vmul.f32 %v1737, 1.442695
    %v1760 = vpow.pop %v1759
    %v1761 = vmul.f32 %v1738, 1.442695
    %v1762 = vpow.pop %v1761
    %v1763 = vmul.f32 %v1739, 1.442695
    %v1764 = vpow.pop %v1763
    %v1765 = vmul.f32 %v1740, 1.442695
    %v1766 = vpow.pop %v1765
    %v1767 = vmul.f32 %v1741, 1.442695
    %v1768 = vpow.pop %v1767
    %v1769 = vmul.f32 %v1742, 1.442695
    %v1770 = vpow.pop %v1769
    %v1771 = vmul.f32 %v1743, 1.442695
    %v1772 = vpow.pop %v1771
    %v1773 = vmul.f32 %v1744, 1.442695
    %v1774 = vpow.pop %v1773
    %v1775 = vmul.f32 %v1745, 1.442695
    %v1776 = vpow.pop %v1775
    %v1777 = vmul.f32 %v1746, 1.442695
    %v1778 = vpow.pop %v1777
    %v1779 = vadd.f32 %v1748, %v1750
    %v1780 = vadd.f32 %v1779, %v1752
    %v1781 = vadd.f32 %v1780, %v1754
    %v1782 = vadd.f32 %v1781, %v1756
    %v1783 = vadd.f32 %v1782, %v1758
    %v1784 = vadd.f32 %v1783, %v1760
    %v1785 = vadd.f32 %v1784, %v1762
    %v1786 = vadd.f32 %v1785, %v1764
    %v1787 = vadd.f32 %v1786, %v1766
    %v1788 = vadd.f32 %v1787, %v1768
    %v1789 = vadd.f32 %v1788, %v1770
    %v1790 = vadd.f32 %v1789, %v1772
    %v1791 = vadd.f32 %v1790, %v1774
    %v1792 = vadd.f32 %v1791, %v1776
    %v1793 = vadd.f32 %v1792, %v1778
    %v1794 = vrot.slane %v1793, 4
    %v1795 = vadd.f32 %v1793, %v1794
    %v1796 = vrot.slane %v1795, 2
    %v1797 = vadd.f32 %v1795, %v1796
    %v1798 = vrot.slane %v1797, 1
    %v1799 = vadd.f32 %v1797, %v1798
    %v1800 = vrcp.pop %v1799
    %v1801 = vpack.c.bf16 %v1750, %v1748
    %v1802 = vpack.c.bf16 %v1754, %v1752
    %v1803 = vpack.c.bf16 %v1758, %v1756
    %v1804 = vpack.c.bf16 %v1762, %v1760
    %v1805 = vpack.c.bf16 %v1766, %v1764
    %v1806 = vpack.c.bf16 %v1770, %v1768
    %v1807 = vpack.c.bf16 %v1774, %v1772
    %v1808 = vpack.c.bf16 %v1778, %v1776
    %1809 = vmatprep.subr.bf16.mxu0 0
    %1810 = vmatpush1.bf16.msra.mxu0 %v1808
    %1811 = vmatprep.subr.bf16.mxu0 0
    %1812 = vmatpush1.bf16.msra.mxu0 %v1807
    %1813 = vmatprep.subr.bf16.mxu0 0
    %1814 = vmatpush1.bf16.msra.mxu0 %v1806
    %1815 = vmatprep.subr.bf16.mxu0 0
    %1816 = vmatpush1.bf16.msra.mxu0 %v1805
    %1817 = vmatprep.subr.bf16.mxu0 0
    %1818 = vmatpush1.bf16.msra.mxu0 %v1804
    %1819 = vmatprep.subr.bf16.mxu0 0
    %1820 = vmatpush1.bf16.msra.mxu0 %v1803
    %1821 = vmatprep.subr.bf16.mxu0 0
    %1822 = vmatpush1.bf16.msra.mxu0 %v1802
    %1823 = vmatprep.subr.bf16.mxu0 0
    %1824 = vmatpush1.bf16.msra.mxu0 %v1801
    %1825 = vmatprep.subr.bf16.mxu0 0
    %1826 = vmatpush2.bf16.msra.mxu0 0
    %1827 = vmatprep.subr.bf16.mxu0 0
    %1828 = vmatpush2.bf16.msra.mxu0 0
    %1829 = vmatprep.subr.bf16.mxu0 0
    %1830 = vmatpush2.bf16.msra.mxu0 0
    %1831 = vmatprep.subr.bf16.mxu0 0
    %1832 = vmatpush2.bf16.msra.mxu0 0
    %1833 = vmatprep.subr.bf16.mxu0 0
    %1834 = vmatpush2.bf16.msra.mxu0 0
    %1835 = vmatprep.subr.bf16.mxu0 0
    %1836 = vmatpush2.bf16.msra.mxu0 0
    %1837 = vmatprep.subr.bf16.mxu0 0
    %1838 = vmatpush2.bf16.msra.mxu0 0
    %1839 = vmatprep.subr.bf16.mxu0 0
    %1840 = vmatpush2.bf16.msra.mxu0 0
    %1841 = vmatprep.mubr.bf16.mxu0 0
    %1842 = vmatmul.mubr.bf16.gmra.mxu0 %v1550
    %v1843 = vpop.f32.mrf.mxu0
    %v1844 = vadd.f32 0.0, %v1843
    %v1845 = vpop.f32.mrf.mxu0
    %v1846 = vpop.f32.mrf.mxu0
    %v1847 = vpop.f32.mrf.mxu0
    %1848 = vdwg.mxu0
    %v1849 = vmul.f32 %v1844, %v1800
    %v1850 = vpack.c.bf16 %v229, %v229
    %v1852 = vsel %vm519, %v1850, 0
    %1854 = vmatprep.subr.bf16.mxu0 0
    %1855 = vmatpush1.bf16.msra.mxu0 0
    %1856 = vmatprep.subr.bf16.mxu0 0
    %1857 = vmatpush1.bf16.msra.mxu0 0
    %1858 = vmatprep.subr.bf16.mxu0 0
    %1859 = vmatpush1.bf16.msra.mxu0 0
    %1860 = vmatprep.subr.bf16.mxu0 0
    %1861 = vmatpush1.bf16.msra.mxu0 0
    %1862 = vmatprep.subr.bf16.mxu0 0
    %1863 = vmatpush1.bf16.msra.mxu0 0
    %1864 = vmatprep.subr.bf16.mxu0 0
    %1865 = vmatpush1.bf16.msra.mxu0 0
    %1866 = vmatprep.subr.bf16.mxu0 0
    %1867 = vmatpush1.bf16.msra.mxu0 0
    %1868 = vmatprep.subr.bf16.mxu0 0
    %1869 = vmatpush1.bf16.msra.mxu0 %v1852
    %1870 = vmatprep.subr.bf16.mxu0 0
    %1871 = vmatpush2.bf16.msra.mxu0 0
    %1872 = vmatprep.subr.bf16.mxu0 0
    %1873 = vmatpush2.bf16.msra.mxu0 0
    %1874 = vmatprep.subr.bf16.mxu0 0
    %1875 = vmatpush2.bf16.msra.mxu0 0
    %1876 = vmatprep.subr.bf16.mxu0 0
    %1877 = vmatpush2.bf16.msra.mxu0 0
    %1878 = vmatprep.subr.bf16.mxu0 0
    %1879 = vmatpush2.bf16.msra.mxu0 0
    %1880 = vmatprep.subr.bf16.mxu0 0
    %1881 = vmatpush2.bf16.msra.mxu0 0
    %1882 = vmatprep.subr.bf16.mxu0 0
    %1883 = vmatpush2.bf16.msra.mxu0 0
    %1884 = vmatprep.subr.bf16.mxu0 0
    %1885 = vmatpush2.bf16.msra.mxu0 0
    %1886 = vmatprep.mubr.bf16.mxu0 0
    %1887 = vmatmul.mubr.bf16.gmra.mxu0 %v1587
    %v1888 = vpop.f32.mrf.mxu0
    %v1889 = vadd.f32 %v1552, %v1888
    %v1890 = vpop.f32.mrf.mxu0
    %v1891 = vpop.f32.mrf.mxu0
    %v1892 = vadd.f32 %v1553, %v1891
    %v1893 = vpop.f32.mrf.mxu0
    %1894 = vmatprep.mubr.bf16.mxu0 0
    %1895 = vmatmul.mubr.bf16.gmra.mxu0 %v1590
    %v1896 = vpop.f32.mrf.mxu0
    %v1897 = vadd.f32 %v1554, %v1896
    %v1898 = vpop.f32.mrf.mxu0
    %v1899 = vpop.f32.mrf.mxu0
    %v1900 = vadd.f32 %v1555, %v1899
    %v1901 = vpop.f32.mrf.mxu0
    %1902 = vmatprep.mubr.bf16.mxu0 0
    %1903 = vmatmul.mubr.bf16.gmra.mxu0 %v1593
    %v1904 = vpop.f32.mrf.mxu0
    %v1905 = vadd.f32 %v1556, %v1904
    %v1906 = vpop.f32.mrf.mxu0
    %v1907 = vpop.f32.mrf.mxu0
    %v1908 = vadd.f32 %v1557, %v1907
    %v1909 = vpop.f32.mrf.mxu0
    %1910 = vmatprep.mubr.bf16.mxu0 0
    %1911 = vmatmul.mubr.bf16.gmra.mxu0 %v1596
    %v1912 = vpop.f32.mrf.mxu0
    %v1913 = vadd.f32 %v1558, %v1912
    %v1914 = vpop.f32.mrf.mxu0
    %v1915 = vpop.f32.mrf.mxu0
    %v1916 = vadd.f32 %v1559, %v1915
    %v1917 = vpop.f32.mrf.mxu0
    %1918 = vmatprep.mubr.bf16.mxu0 0
    %1919 = vmatmul.mubr.bf16.gmra.mxu0 %v1599
    %v1920 = vpop.f32.mrf.mxu0
    %v1921 = vadd.f32 %v1560, %v1920
    %v1922 = vpop.f32.mrf.mxu0
    %v1923 = vpop.f32.mrf.mxu0
    %v1924 = vadd.f32 %v1561, %v1923
    %v1925 = vpop.f32.mrf.mxu0
    %1926 = vmatprep.mubr.bf16.mxu0 0
    %1927 = vmatmul.mubr.bf16.gmra.mxu0 %v1602
    %v1928 = vpop.f32.mrf.mxu0
    %v1929 = vadd.f32 %v1562, %v1928
    %v1930 = vpop.f32.mrf.mxu0
    %v1931 = vpop.f32.mrf.mxu0
    %v1932 = vadd.f32 %v1563, %v1931
    %v1933 = vpop.f32.mrf.mxu0
    %1934 = vmatprep.mubr.bf16.mxu0 0
    %1935 = vmatmul.mubr.bf16.gmra.mxu0 %v1605
    %v1936 = vpop.f32.mrf.mxu0
    %v1937 = vadd.f32 %v1564, %v1936
    %v1938 = vpop.f32.mrf.mxu0
    %v1939 = vpop.f32.mrf.mxu0
    %v1940 = vadd.f32 %v1565, %v1939
    %v1941 = vpop.f32.mrf.mxu0
    %1942 = vmatprep.mubr.bf16.mxu0 0
    %1943 = vmatmul.mubr.bf16.gmra.mxu0 %v1608
    %v1944 = vpop.f32.mrf.mxu0
    %v1945 = vadd.f32 %v1566, %v1944
    %v1946 = vpop.f32.mrf.mxu0
    %v1947 = vpop.f32.mrf.mxu0
    %v1948 = vadd.f32 %v1567, %v1947
    %v1949 = vpop.f32.mrf.mxu0
    %1950 = vdwg.mxu0
    %v1951 = vmax.f32 %v1889, %v1905
    %v1952 = vmax.f32 %v1892, %v1908
    %v1953 = vmax.f32 %v1897, %v1913
    %v1954 = vmax.f32 %v1900, %v1916
    %v1955 = vmax.f32 %v1951, %v1921
    %v1956 = vmax.f32 %v1952, %v1924
    %v1957 = vmax.f32 %v1953, %v1929
    %v1958 = vmax.f32 %v1954, %v1932
    %v1959 = vmax.f32 %v1955, %v1937
    %v1960 = vmax.f32 %v1956, %v1940
    %v1961 = vmax.f32 %v1957, %v1945
    %v1962 = vmax.f32 %v1958, %v1948
    %v1963 = vmax.f32 %v1959, %v1960
    %v1964 = vmax.f32 %v1961, %v1962
    %v1965 = vmax.f32 %v1963, %v1964
    %v1966 = vrot.slane %v1965, 4
    %v1967 = vmax.f32 %v1965, %v1966
    %v1968 = vrot.slane %v1967, 2
    %v1969 = vmax.f32 %v1967, %v1968
    %v1970 = vrot.slane %v1969, 1
    %v1971 = vmax.f32 %v1969, %v1970
    %v1972 = vsub.f32 %v1889, %v1971
    %v1973 = vsub.f32 %v1892, %v1971
    %v1974 = vsub.f32 %v1897, %v1971
    %v1975 = vsub.f32 %v1900, %v1971
    %v1976 = vsub.f32 %v1905, %v1971
    %v1977 = vsub.f32 %v1908, %v1971
    %v1978 = vsub.f32 %v1913, %v1971
    %v1979 = vsub.f32 %v1916, %v1971
    %v1980 = vsub.f32 %v1921, %v1971
    %v1981 = vsub.f32 %v1924, %v1971
    %v1982 = vsub.f32 %v1929, %v1971
    %v1983 = vsub.f32 %v1932, %v1971
    %v1984 = vsub.f32 %v1937, %v1971
    %v1985 = vsub.f32 %v1940, %v1971
    %v1986 = vsub.f32 %v1945, %v1971
    %v1987 = vsub.f32 %v1948, %v1971
    %v1988 = vmul.f32 %v1972, 1.442695
    %v1989 = vpow.pop %v1988
    %v1990 = vmul.f32 %v1973, 1.442695
    %v1991 = vpow.pop %v1990
    %v1992 = vmul.f32 %v1974, 1.442695
    %v1993 = vpow.pop %v1992
    %v1994 = vmul.f32 %v1975, 1.442695
    %v1995 = vpow.pop %v1994
    %v1996 = vmul.f32 %v1976, 1.442695
    %v1997 = vpow.pop %v1996
    %v1998 = vmul.f32 %v1977, 1.442695
    %v1999 = vpow.pop %v1998
    %v2000 = vmul.f32 %v1978, 1.442695
    %v2001 = vpow.pop %v2000
    %v2002 = vmul.f32 %v1979, 1.442695
    %v2003 = vpow.pop %v2002
    %v2004 = vmul.f32 %v1980, 1.442695
    %v2005 = vpow.pop %v2004
    %v2006 = vmul.f32 %v1981, 1.442695
    %v2007 = vpow.pop %v2006
    %v2008 = vmul.f32 %v1982, 1.442695
    %v2009 = vpow.pop %v2008
    %v2010 = vmul.f32 %v1983, 1.442695
    %v2011 = vpow.pop %v2010
    %v2012 = vmul.f32 %v1984, 1.442695
    %v2013 = vpow.pop %v2012
    %v2014 = vmul.f32 %v1985, 1.442695
    %v2015 = vpow.pop %v2014
    %v2016 = vmul.f32 %v1986, 1.442695
    %v2017 = vpow.pop %v2016
    %v2018 = vmul.f32 %v1987, 1.442695
    %v2019 = vpow.pop %v2018
    %v2020 = vadd.f32 %v1989, %v1991
    %v2021 = vadd.f32 %v2020, %v1993
    %v2022 = vadd.f32 %v2021, %v1995
    %v2023 = vadd.f32 %v2022, %v1997
    %v2024 = vadd.f32 %v2023, %v1999
    %v2025 = vadd.f32 %v2024, %v2001
    %v2026 = vadd.f32 %v2025, %v2003
    %v2027 = vadd.f32 %v2026, %v2005
    %v2028 = vadd.f32 %v2027, %v2007
    %v2029 = vadd.f32 %v2028, %v2009
    %v2030 = vadd.f32 %v2029, %v2011
    %v2031 = vadd.f32 %v2030, %v2013
    %v2032 = vadd.f32 %v2031, %v2015
    %v2033 = vadd.f32 %v2032, %v2017
    %v2034 = vadd.f32 %v2033, %v2019
    %v2035 = vrot.slane %v2034, 4
    %v2036 = vadd.f32 %v2034, %v2035
    %v2037 = vrot.slane %v2036, 2
    %v2038 = vadd.f32 %v2036, %v2037
    %v2039 = vrot.slane %v2038, 1
    %v2040 = vadd.f32 %v2038, %v2039
    %v2041 = vrcp.pop %v2040
    %v2042 = vpack.c.bf16 %v1991, %v1989
    %v2043 = vpack.c.bf16 %v1995, %v1993
    %v2044 = vpack.c.bf16 %v1999, %v1997
    %v2045 = vpack.c.bf16 %v2003, %v2001
    %v2046 = vpack.c.bf16 %v2007, %v2005
    %v2047 = vpack.c.bf16 %v2011, %v2009
    %v2048 = vpack.c.bf16 %v2015, %v2013
    %v2049 = vpack.c.bf16 %v2019, %v2017
    %2050 = vmatprep.subr.bf16.mxu0 0
    %2051 = vmatpush1.bf16.msra.mxu0 %v2049
    %2052 = vmatprep.subr.bf16.mxu0 0
    %2053 = vmatpush1.bf16.msra.mxu0 %v2048
    %2054 = vmatprep.subr.bf16.mxu0 0
    %2055 = vmatpush1.bf16.msra.mxu0 %v2047
    %2056 = vmatprep.subr.bf16.mxu0 0
    %2057 = vmatpush1.bf16.msra.mxu0 %v2046
    %2058 = vmatprep.subr.bf16.mxu0 0
    %2059 = vmatpush1.bf16.msra.mxu0 %v2045
    %2060 = vmatprep.subr.bf16.mxu0 0
    %2061 = vmatpush1.bf16.msra.mxu0 %v2044
    %2062 = vmatprep.subr.bf16.mxu0 0
    %2063 = vmatpush1.bf16.msra.mxu0 %v2043
    %2064 = vmatprep.subr.bf16.mxu0 0
    %2065 = vmatpush1.bf16.msra.mxu0 %v2042
    %2066 = vmatprep.subr.bf16.mxu0 0
    %2067 = vmatpush2.bf16.msra.mxu0 0
    %2068 = vmatprep.subr.bf16.mxu0 0
    %2069 = vmatpush2.bf16.msra.mxu0 0
    %2070 = vmatprep.subr.bf16.mxu0 0
    %2071 = vmatpush2.bf16.msra.mxu0 0
    %2072 = vmatprep.subr.bf16.mxu0 0
    %2073 = vmatpush2.bf16.msra.mxu0 0
    %2074 = vmatprep.subr.bf16.mxu0 0
    %2075 = vmatpush2.bf16.msra.mxu0 0
    %2076 = vmatprep.subr.bf16.mxu0 0
    %2077 = vmatpush2.bf16.msra.mxu0 0
    %2078 = vmatprep.subr.bf16.mxu0 0
    %2079 = vmatpush2.bf16.msra.mxu0 0
    %2080 = vmatprep.subr.bf16.mxu0 0
    %2081 = vmatpush2.bf16.msra.mxu0 0
    %2082 = vmatprep.mubr.bf16.mxu0 0
    %2083 = vmatmul.mubr.bf16.gmra.mxu0 %v1550
    %v2084 = vpop.f32.mrf.mxu0
    %v2085 = vadd.f32 0.0, %v2084
    %v2086 = vpop.f32.mrf.mxu0
    %v2087 = vpop.f32.mrf.mxu0
    %v2088 = vpop.f32.mrf.mxu0
    %2089 = vdwg.mxu0
    %v2090 = vmul.f32 %v2085, %v2041
    %v2091 = vpack.c.bf16 %v254, %v254
    %s2092 = scalar_lea.vmem [#allocation2], 384
    %v2093 = vld [vmem:[%s2092] sm:$0xff]
    %v2094 = vld [vmem:[%s2092 + $0x8] sm:$0xff]
    %v2095 = vld [vmem:[%s2092 + $0x10] sm:$0xff]
    %v2096 = vld [vmem:[%s2092 + $0x18] sm:$0xff]
    %v2097 = vld [vmem:[%s2092 + $0x20] sm:$0xff]
    %v2098 = vld [vmem:[%s2092 + $0x28] sm:$0xff]
    %v2099 = vld [vmem:[%s2092 + $0x30] sm:$0xff]
    %v2100 = vld [vmem:[%s2092 + $0x38] sm:$0xff]
    %v2101 = vld [vmem:[%s2092 + $0x40] sm:$0xff]
    %v2102 = vld [vmem:[%s2092 + $0x48] sm:$0xff]
    %v2103 = vld [vmem:[%s2092 + $0x50] sm:$0xff]
    %v2104 = vld [vmem:[%s2092 + $0x58] sm:$0xff]
    %v2105 = vld [vmem:[%s2092 + $0x60] sm:$0xff]
    %v2106 = vld [vmem:[%s2092 + $0x68] sm:$0xff]
    %v2107 = vld [vmem:[%s2092 + $0x70] sm:$0xff]
    %v2108 = vld [vmem:[%s2092 + $0x78] sm:$0xff]
    %v2109 = vmul.f32 %v234, %v490
    %v2110 = vpack.c.bf16 %v2109, %v2109
    %2111 = vrot.lane.b32.xlu0 %v461, 104
    %v2112 = vpop.permute.xlu0 %2111
    %2113 = vrot.lane.b32.xlu0 %v462, 104
    %v2114 = vpop.permute.xlu0 %2113
    %2115 = vrot.lane.b32.xlu0 %v463, 104
    %v2116 = vpop.permute.xlu0 %2115
    %2117 = vrot.lane.b32.xlu0 %v464, 104
    %v2118 = vpop.permute.xlu0 %2117
    %2119 = vrot.lane.b32.xlu0 %v465, 104
    %v2120 = vpop.permute.xlu0 %2119
    %2121 = vrot.lane.b32.xlu0 %v466, 104
    %v2122 = vpop.permute.xlu0 %2121
    %2123 = vrot.lane.b32.xlu0 %v467, 104
    %v2124 = vpop.permute.xlu0 %2123
    %2125 = vrot.lane.b32.xlu0 %v468, 104
    %v2126 = vpop.permute.xlu0 %2125
    %v2128 = vsel %vm494, %v2112, 0
    %v2131 = vsel %vm494, %v2114, 0
    %v2134 = vsel %vm494, %v2116, 0
    %v2137 = vsel %vm494, %v2118, 0
    %v2140 = vsel %vm494, %v2120, 0
    %v2143 = vsel %vm494, %v2122, 0
    %v2146 = vsel %vm494, %v2124, 0
    %v2149 = vsel %vm494, %v2126, 0
    %v2152 = vsel %vm519, %v2110, 0
    %2154 = vmatprep.subr.bf16.mxu0 0
    %2155 = vmatpush1.bf16.msra.mxu0 0
    %2156 = vmatprep.subr.bf16.mxu0 0
    %2157 = vmatpush1.bf16.msra.mxu0 0
    %2158 = vmatprep.subr.bf16.mxu0 0
    %2159 = vmatpush1.bf16.msra.mxu0 0
    %2160 = vmatprep.subr.bf16.mxu0 0
    %2161 = vmatpush1.bf16.msra.mxu0 0
    %2162 = vmatprep.subr.bf16.mxu0 0
    %2163 = vmatpush1.bf16.msra.mxu0 0
    %2164 = vmatprep.subr.bf16.mxu0 0
    %2165 = vmatpush1.bf16.msra.mxu0 0
    %2166 = vmatprep.subr.bf16.mxu0 0
    %2167 = vmatpush1.bf16.msra.mxu0 0
    %2168 = vmatprep.subr.bf16.mxu0 0
    %2169 = vmatpush1.bf16.msra.mxu0 %v2152
    %2170 = vmatprep.subr.bf16.mxu0 0
    %2171 = vmatpush2.bf16.msra.mxu0 0
    %2172 = vmatprep.subr.bf16.mxu0 0
    %2173 = vmatpush2.bf16.msra.mxu0 0
    %2174 = vmatprep.subr.bf16.mxu0 0
    %2175 = vmatpush2.bf16.msra.mxu0 0
    %2176 = vmatprep.subr.bf16.mxu0 0
    %2177 = vmatpush2.bf16.msra.mxu0 0
    %2178 = vmatprep.subr.bf16.mxu0 0
    %2179 = vmatpush2.bf16.msra.mxu0 0
    %2180 = vmatprep.subr.bf16.mxu0 0
    %2181 = vmatpush2.bf16.msra.mxu0 0
    %2182 = vmatprep.subr.bf16.mxu0 0
    %2183 = vmatpush2.bf16.msra.mxu0 0
    %2184 = vmatprep.subr.bf16.mxu0 0
    %2185 = vmatpush2.bf16.msra.mxu0 0
    %2186 = vmatprep.mubr.bf16.mxu0 0
    %2187 = vmatmul.mubr.bf16.gmra.mxu0 %v2128
    %v2188 = vpop.f32.mrf.mxu0
    %v2189 = vadd.f32 %v2093, %v2188
    %v2190 = vpop.f32.mrf.mxu0
    %v2191 = vpop.f32.mrf.mxu0
    %v2192 = vadd.f32 %v2094, %v2191
    %v2193 = vpop.f32.mrf.mxu0
    %2194 = vmatprep.mubr.bf16.mxu0 0
    %2195 = vmatmul.mubr.bf16.gmra.mxu0 %v2131
    %v2196 = vpop.f32.mrf.mxu0
    %v2197 = vadd.f32 %v2095, %v2196
    %v2198 = vpop.f32.mrf.mxu0
    %v2199 = vpop.f32.mrf.mxu0
    %v2200 = vadd.f32 %v2096, %v2199
    %v2201 = vpop.f32.mrf.mxu0
    %2202 = vmatprep.mubr.bf16.mxu0 0
    %2203 = vmatmul.mubr.bf16.gmra.mxu0 %v2134
    %v2204 = vpop.f32.mrf.mxu0
    %v2205 = vadd.f32 %v2097, %v2204
    %v2206 = vpop.f32.mrf.mxu0
    %v2207 = vpop.f32.mrf.mxu0
    %v2208 = vadd.f32 %v2098, %v2207
    %v2209 = vpop.f32.mrf.mxu0
    %2210 = vmatprep.mubr.bf16.mxu0 0
    %2211 = vmatmul.mubr.bf16.gmra.mxu0 %v2137
    %v2212 = vpop.f32.mrf.mxu0
    %v2213 = vadd.f32 %v2099, %v2212
    %v2214 = vpop.f32.mrf.mxu0
    %v2215 = vpop.f32.mrf.mxu0
    %v2216 = vadd.f32 %v2100, %v2215
    %v2217 = vpop.f32.mrf.mxu0
    %2218 = vmatprep.mubr.bf16.mxu0 0
    %2219 = vmatmul.mubr.bf16.gmra.mxu0 %v2140
    %v2220 = vpop.f32.mrf.mxu0
    %v2221 = vadd.f32 %v2101, %v2220
    %v2222 = vpop.f32.mrf.mxu0
    %v2223 = vpop.f32.mrf.mxu0
    %v2224 = vadd.f32 %v2102, %v2223
    %v2225 = vpop.f32.mrf.mxu0
    %2226 = vmatprep.mubr.bf16.mxu0 0
    %2227 = vmatmul.mubr.bf16.gmra.mxu0 %v2143
    %v2228 = vpop.f32.mrf.mxu0
    %v2229 = vadd.f32 %v2103, %v2228
    %v2230 = vpop.f32.mrf.mxu0
    %v2231 = vpop.f32.mrf.mxu0
    %v2232 = vadd.f32 %v2104, %v2231
    %v2233 = vpop.f32.mrf.mxu0
    %2234 = vmatprep.mubr.bf16.mxu0 0
    %2235 = vmatmul.mubr.bf16.gmra.mxu0 %v2146
    %v2236 = vpop.f32.mrf.mxu0
    %v2237 = vadd.f32 %v2105, %v2236
    %v2238 = vpop.f32.mrf.mxu0
    %v2239 = vpop.f32.mrf.mxu0
    %v2240 = vadd.f32 %v2106, %v2239
    %v2241 = vpop.f32.mrf.mxu0
    %2242 = vmatprep.mubr.bf16.mxu0 0
    %2243 = vmatmul.mubr.bf16.gmra.mxu0 %v2149
    %v2244 = vpop.f32.mrf.mxu0
    %v2245 = vadd.f32 %v2107, %v2244
    %v2246 = vpop.f32.mrf.mxu0
    %v2247 = vpop.f32.mrf.mxu0
    %v2248 = vadd.f32 %v2108, %v2247
    %v2249 = vpop.f32.mrf.mxu0
    %2250 = vdwg.mxu0
    %v2251 = vmax.f32 %v2189, %v2205
    %v2252 = vmax.f32 %v2192, %v2208
    %v2253 = vmax.f32 %v2197, %v2213
    %v2254 = vmax.f32 %v2200, %v2216
    %v2255 = vmax.f32 %v2251, %v2221
    %v2256 = vmax.f32 %v2252, %v2224
    %v2257 = vmax.f32 %v2253, %v2229
    %v2258 = vmax.f32 %v2254, %v2232
    %v2259 = vmax.f32 %v2255, %v2237
    %v2260 = vmax.f32 %v2256, %v2240
    %v2261 = vmax.f32 %v2257, %v2245
    %v2262 = vmax.f32 %v2258, %v2248
    %v2263 = vmax.f32 %v2259, %v2260
    %v2264 = vmax.f32 %v2261, %v2262
    %v2265 = vmax.f32 %v2263, %v2264
    %v2266 = vrot.slane %v2265, 4
    %v2267 = vmax.f32 %v2265, %v2266
    %v2268 = vrot.slane %v2267, 2
    %v2269 = vmax.f32 %v2267, %v2268
    %v2270 = vrot.slane %v2269, 1
    %v2271 = vmax.f32 %v2269, %v2270
    %v2272 = vsub.f32 %v2189, %v2271
    %v2273 = vsub.f32 %v2192, %v2271
    %v2274 = vsub.f32 %v2197, %v2271
    %v2275 = vsub.f32 %v2200, %v2271
    %v2276 = vsub.f32 %v2205, %v2271
    %v2277 = vsub.f32 %v2208, %v2271
    %v2278 = vsub.f32 %v2213, %v2271
    %v2279 = vsub.f32 %v2216, %v2271
    %v2280 = vsub.f32 %v2221, %v2271
    %v2281 = vsub.f32 %v2224, %v2271
    %v2282 = vsub.f32 %v2229, %v2271
    %v2283 = vsub.f32 %v2232, %v2271
    %v2284 = vsub.f32 %v2237, %v2271
    %v2285 = vsub.f32 %v2240, %v2271
    %v2286 = vsub.f32 %v2245, %v2271
    %v2287 = vsub.f32 %v2248, %v2271
    %v2288 = vmul.f32 %v2272, 1.442695
    %v2289 = vpow.pop %v2288
    %v2290 = vmul.f32 %v2273, 1.442695
    %v2291 = vpow.pop %v2290
    %v2292 = vmul.f32 %v2274, 1.442695
    %v2293 = vpow.pop %v2292
    %v2294 = vmul.f32 %v2275, 1.442695
    %v2295 = vpow.pop %v2294
    %v2296 = vmul.f32 %v2276, 1.442695
    %v2297 = vpow.pop %v2296
    %v2298 = vmul.f32 %v2277, 1.442695
    %v2299 = vpow.pop %v2298
    %v2300 = vmul.f32 %v2278, 1.442695
    %v2301 = vpow.pop %v2300
    %v2302 = vmul.f32 %v2279, 1.442695
    %v2303 = vpow.pop %v2302
    %v2304 = vmul.f32 %v2280, 1.442695
    %v2305 = vpow.pop %v2304
    %v2306 = vmul.f32 %v2281, 1.442695
    %v2307 = vpow.pop %v2306
    %v2308 = vmul.f32 %v2282, 1.442695
    %v2309 = vpow.pop %v2308
    %v2310 = vmul.f32 %v2283, 1.442695
    %v2311 = vpow.pop %v2310
    %v2312 = vmul.f32 %v2284, 1.442695
    %v2313 = vpow.pop %v2312
    %v2314 = vmul.f32 %v2285, 1.442695
    %v2315 = vpow.pop %v2314
    %v2316 = vmul.f32 %v2286, 1.442695
    %v2317 = vpow.pop %v2316
    %v2318 = vmul.f32 %v2287, 1.442695
    %v2319 = vpow.pop %v2318
    %v2320 = vadd.f32 %v2289, %v2291
    %v2321 = vadd.f32 %v2320, %v2293
    %v2322 = vadd.f32 %v2321, %v2295
    %v2323 = vadd.f32 %v2322, %v2297
    %v2324 = vadd.f32 %v2323, %v2299
    %v2325 = vadd.f32 %v2324, %v2301
    %v2326 = vadd.f32 %v2325, %v2303
    %v2327 = vadd.f32 %v2326, %v2305
    %v2328 = vadd.f32 %v2327, %v2307
    %v2329 = vadd.f32 %v2328, %v2309
    %v2330 = vadd.f32 %v2329, %v2311
    %v2331 = vadd.f32 %v2330, %v2313
    %v2332 = vadd.f32 %v2331, %v2315
    %v2333 = vadd.f32 %v2332, %v2317
    %v2334 = vadd.f32 %v2333, %v2319
    %v2335 = vrot.slane %v2334, 4
    %v2336 = vadd.f32 %v2334, %v2335
    %v2337 = vrot.slane %v2336, 2
    %v2338 = vadd.f32 %v2336, %v2337
    %v2339 = vrot.slane %v2338, 1
    %v2340 = vadd.f32 %v2338, %v2339
    %v2341 = vrcp.pop %v2340
    %v2342 = vpack.c.bf16 %v2291, %v2289
    %v2343 = vpack.c.bf16 %v2295, %v2293
    %v2344 = vpack.c.bf16 %v2299, %v2297
    %v2345 = vpack.c.bf16 %v2303, %v2301
    %v2346 = vpack.c.bf16 %v2307, %v2305
    %v2347 = vpack.c.bf16 %v2311, %v2309
    %v2348 = vpack.c.bf16 %v2315, %v2313
    %v2349 = vpack.c.bf16 %v2319, %v2317
    %2350 = vmatprep.subr.bf16.mxu0 0
    %2351 = vmatpush1.bf16.msra.mxu0 %v2349
    %2352 = vmatprep.subr.bf16.mxu0 0
    %2353 = vmatpush1.bf16.msra.mxu0 %v2348
    %2354 = vmatprep.subr.bf16.mxu0 0
    %2355 = vmatpush1.bf16.msra.mxu0 %v2347
    %2356 = vmatprep.subr.bf16.mxu0 0
    %2357 = vmatpush1.bf16.msra.mxu0 %v2346
    %2358 = vmatprep.subr.bf16.mxu0 0
    %2359 = vmatpush1.bf16.msra.mxu0 %v2345
    %2360 = vmatprep.subr.bf16.mxu0 0
    %2361 = vmatpush1.bf16.msra.mxu0 %v2344
    %2362 = vmatprep.subr.bf16.mxu0 0
    %2363 = vmatpush1.bf16.msra.mxu0 %v2343
    %2364 = vmatprep.subr.bf16.mxu0 0
    %2365 = vmatpush1.bf16.msra.mxu0 %v2342
    %2366 = vmatprep.subr.bf16.mxu0 0
    %2367 = vmatpush2.bf16.msra.mxu0 0
    %2368 = vmatprep.subr.bf16.mxu0 0
    %2369 = vmatpush2.bf16.msra.mxu0 0
    %2370 = vmatprep.subr.bf16.mxu0 0
    %2371 = vmatpush2.bf16.msra.mxu0 0
    %2372 = vmatprep.subr.bf16.mxu0 0
    %2373 = vmatpush2.bf16.msra.mxu0 0
    %2374 = vmatprep.subr.bf16.mxu0 0
    %2375 = vmatpush2.bf16.msra.mxu0 0
    %2376 = vmatprep.subr.bf16.mxu0 0
    %2377 = vmatpush2.bf16.msra.mxu0 0
    %2378 = vmatprep.subr.bf16.mxu0 0
    %2379 = vmatpush2.bf16.msra.mxu0 0
    %2380 = vmatprep.subr.bf16.mxu0 0
    %2381 = vmatpush2.bf16.msra.mxu0 0
    %2382 = vmatprep.mubr.bf16.mxu0 0
    %2383 = vmatmul.mubr.bf16.gmra.mxu0 %v2091
    %v2384 = vpop.f32.mrf.mxu0
    %v2385 = vadd.f32 0.0, %v2384
    %v2386 = vpop.f32.mrf.mxu0
    %v2387 = vpop.f32.mrf.mxu0
    %v2388 = vpop.f32.mrf.mxu0
    %2389 = vdwg.mxu0
    %v2390 = vmul.f32 %v2385, %v2341
    %v2391 = vpack.c.bf16 %v234, %v234
    %v2393 = vsel %vm519, %v2391, 0
    %2395 = vmatprep.subr.bf16.mxu0 0
    %2396 = vmatpush1.bf16.msra.mxu0 0
    %2397 = vmatprep.subr.bf16.mxu0 0
    %2398 = vmatpush1.bf16.msra.mxu0 0
    %2399 = vmatprep.subr.bf16.mxu0 0
    %2400 = vmatpush1.bf16.msra.mxu0 0
    %2401 = vmatprep.subr.bf16.mxu0 0
    %2402 = vmatpush1.bf16.msra.mxu0 0
    %2403 = vmatprep.subr.bf16.mxu0 0
    %2404 = vmatpush1.bf16.msra.mxu0 0
    %2405 = vmatprep.subr.bf16.mxu0 0
    %2406 = vmatpush1.bf16.msra.mxu0 0
    %2407 = vmatprep.subr.bf16.mxu0 0
    %2408 = vmatpush1.bf16.msra.mxu0 0
    %2409 = vmatprep.subr.bf16.mxu0 0
    %2410 = vmatpush1.bf16.msra.mxu0 %v2393
    %2411 = vmatprep.subr.bf16.mxu0 0
    %2412 = vmatpush2.bf16.msra.mxu0 0
    %2413 = vmatprep.subr.bf16.mxu0 0
    %2414 = vmatpush2.bf16.msra.mxu0 0
    %2415 = vmatprep.subr.bf16.mxu0 0
    %2416 = vmatpush2.bf16.msra.mxu0 0
    %2417 = vmatprep.subr.bf16.mxu0 0
    %2418 = vmatpush2.bf16.msra.mxu0 0
    %2419 = vmatprep.subr.bf16.mxu0 0
    %2420 = vmatpush2.bf16.msra.mxu0 0
    %2421 = vmatprep.subr.bf16.mxu0 0
    %2422 = vmatpush2.bf16.msra.mxu0 0
    %2423 = vmatprep.subr.bf16.mxu0 0
    %2424 = vmatpush2.bf16.msra.mxu0 0
    %2425 = vmatprep.subr.bf16.mxu0 0
    %2426 = vmatpush2.bf16.msra.mxu0 0
    %2427 = vmatprep.mubr.bf16.mxu0 0
    %2428 = vmatmul.mubr.bf16.gmra.mxu0 %v2128
    %v2429 = vpop.f32.mrf.mxu0
    %v2430 = vadd.f32 %v2093, %v2429
    %v2431 = vpop.f32.mrf.mxu0
    %v2432 = vpop.f32.mrf.mxu0
    %v2433 = vadd.f32 %v2094, %v2432
    %v2434 = vpop.f32.mrf.mxu0
    %2435 = vmatprep.mubr.bf16.mxu0 0
    %2436 = vmatmul.mubr.bf16.gmra.mxu0 %v2131
    %v2437 = vpop.f32.mrf.mxu0
    %v2438 = vadd.f32 %v2095, %v2437
    %v2439 = vpop.f32.mrf.mxu0
    %v2440 = vpop.f32.mrf.mxu0
    %v2441 = vadd.f32 %v2096, %v2440
    %v2442 = vpop.f32.mrf.mxu0
    %2443 = vmatprep.mubr.bf16.mxu0 0
    %2444 = vmatmul.mubr.bf16.gmra.mxu0 %v2134
    %v2445 = vpop.f32.mrf.mxu0
    %v2446 = vadd.f32 %v2097, %v2445
    %v2447 = vpop.f32.mrf.mxu0
    %v2448 = vpop.f32.mrf.mxu0
    %v2449 = vadd.f32 %v2098, %v2448
    %v2450 = vpop.f32.mrf.mxu0
    %2451 = vmatprep.mubr.bf16.mxu0 0
    %2452 = vmatmul.mubr.bf16.gmra.mxu0 %v2137
    %v2453 = vpop.f32.mrf.mxu0
    %v2454 = vadd.f32 %v2099, %v2453
    %v2455 = vpop.f32.mrf.mxu0
    %v2456 = vpop.f32.mrf.mxu0
    %v2457 = vadd.f32 %v2100, %v2456
    %v2458 = vpop.f32.mrf.mxu0
    %2459 = vmatprep.mubr.bf16.mxu0 0
    %2460 = vmatmul.mubr.bf16.gmra.mxu0 %v2140
    %v2461 = vpop.f32.mrf.mxu0
    %v2462 = vadd.f32 %v2101, %v2461
    %v2463 = vpop.f32.mrf.mxu0
    %v2464 = vpop.f32.mrf.mxu0
    %v2465 = vadd.f32 %v2102, %v2464
    %v2466 = vpop.f32.mrf.mxu0
    %2467 = vmatprep.mubr.bf16.mxu0 0
    %2468 = vmatmul.mubr.bf16.gmra.mxu0 %v2143
    %v2469 = vpop.f32.mrf.mxu0
    %v2470 = vadd.f32 %v2103, %v2469
    %v2471 = vpop.f32.mrf.mxu0
    %v2472 = vpop.f32.mrf.mxu0
    %v2473 = vadd.f32 %v2104, %v2472
    %v2474 = vpop.f32.mrf.mxu0
    %2475 = vmatprep.mubr.bf16.mxu0 0
    %2476 = vmatmul.mubr.bf16.gmra.mxu0 %v2146
    %v2477 = vpop.f32.mrf.mxu0
    %v2478 = vadd.f32 %v2105, %v2477
    %v2479 = vpop.f32.mrf.mxu0
    %v2480 = vpop.f32.mrf.mxu0
    %v2481 = vadd.f32 %v2106, %v2480
    %v2482 = vpop.f32.mrf.mxu0
    %2483 = vmatprep.mubr.bf16.mxu0 0
    %2484 = vmatmul.mubr.bf16.gmra.mxu0 %v2149
    %v2485 = vpop.f32.mrf.mxu0
    %v2486 = vadd.f32 %v2107, %v2485
    %v2487 = vpop.f32.mrf.mxu0
    %v2488 = vpop.f32.mrf.mxu0
    %v2489 = vadd.f32 %v2108, %v2488
    %v2490 = vpop.f32.mrf.mxu0
    %2491 = vdwg.mxu0
    %v2492 = vmax.f32 %v2430, %v2446
    %v2493 = vmax.f32 %v2433, %v2449
    %v2494 = vmax.f32 %v2438, %v2454
    %v2495 = vmax.f32 %v2441, %v2457
    %v2496 = vmax.f32 %v2492, %v2462
    %v2497 = vmax.f32 %v2493, %v2465
    %v2498 = vmax.f32 %v2494, %v2470
    %v2499 = vmax.f32 %v2495, %v2473
    %v2500 = vmax.f32 %v2496, %v2478
    %v2501 = vmax.f32 %v2497, %v2481
    %v2502 = vmax.f32 %v2498, %v2486
    %v2503 = vmax.f32 %v2499, %v2489
    %v2504 = vmax.f32 %v2500, %v2501
    %v2505 = vmax.f32 %v2502, %v2503
    %v2506 = vmax.f32 %v2504, %v2505
    %v2507 = vrot.slane %v2506, 4
    %v2508 = vmax.f32 %v2506, %v2507
    %v2509 = vrot.slane %v2508, 2
    %v2510 = vmax.f32 %v2508, %v2509
    %v2511 = vrot.slane %v2510, 1
    %v2512 = vmax.f32 %v2510, %v2511
    %v2513 = vsub.f32 %v2430, %v2512
    %v2514 = vsub.f32 %v2433, %v2512
    %v2515 = vsub.f32 %v2438, %v2512
    %v2516 = vsub.f32 %v2441, %v2512
    %v2517 = vsub.f32 %v2446, %v2512
    %v2518 = vsub.f32 %v2449, %v2512
    %v2519 = vsub.f32 %v2454, %v2512
    %v2520 = vsub.f32 %v2457, %v2512
    %v2521 = vsub.f32 %v2462, %v2512
    %v2522 = vsub.f32 %v2465, %v2512
    %v2523 = vsub.f32 %v2470, %v2512
    %v2524 = vsub.f32 %v2473, %v2512
    %v2525 = vsub.f32 %v2478, %v2512
    %v2526 = vsub.f32 %v2481, %v2512
    %v2527 = vsub.f32 %v2486, %v2512
    %v2528 = vsub.f32 %v2489, %v2512
    %v2529 = vmul.f32 %v2513, 1.442695
    %v2530 = vpow.pop %v2529
    %v2531 = vmul.f32 %v2514, 1.442695
    %v2532 = vpow.pop %v2531
    %v2533 = vmul.f32 %v2515, 1.442695
    %v2534 = vpow.pop %v2533
    %v2535 = vmul.f32 %v2516, 1.442695
    %v2536 = vpow.pop %v2535
    %v2537 = vmul.f32 %v2517, 1.442695
    %v2538 = vpow.pop %v2537
    %v2539 = vmul.f32 %v2518, 1.442695
    %v2540 = vpow.pop %v2539
    %v2541 = vmul.f32 %v2519, 1.442695
    %v2542 = vpow.pop %v2541
    %v2543 = vmul.f32 %v2520, 1.442695
    %v2544 = vpow.pop %v2543
    %v2545 = vmul.f32 %v2521, 1.442695
    %v2546 = vpow.pop %v2545
    %v2547 = vmul.f32 %v2522, 1.442695
    %v2548 = vpow.pop %v2547
    %v2549 = vmul.f32 %v2523, 1.442695
    %v2550 = vpow.pop %v2549
    %v2551 = vmul.f32 %v2524, 1.442695
    %v2552 = vpow.pop %v2551
    %v2553 = vmul.f32 %v2525, 1.442695
    %v2554 = vpow.pop %v2553
    %v2555 = vmul.f32 %v2526, 1.442695
    %v2556 = vpow.pop %v2555
    %v2557 = vmul.f32 %v2527, 1.442695
    %v2558 = vpow.pop %v2557
    %v2559 = vmul.f32 %v2528, 1.442695
    %v2560 = vpow.pop %v2559
    %v2561 = vadd.f32 %v2530, %v2532
    %v2562 = vadd.f32 %v2561, %v2534
    %v2563 = vadd.f32 %v2562, %v2536
    %v2564 = vadd.f32 %v2563, %v2538
    %v2565 = vadd.f32 %v2564, %v2540
    %v2566 = vadd.f32 %v2565, %v2542
    %v2567 = vadd.f32 %v2566, %v2544
    %v2568 = vadd.f32 %v2567, %v2546
    %v2569 = vadd.f32 %v2568, %v2548
    %v2570 = vadd.f32 %v2569, %v2550
    %v2571 = vadd.f32 %v2570, %v2552
    %v2572 = vadd.f32 %v2571, %v2554
    %v2573 = vadd.f32 %v2572, %v2556
    %v2574 = vadd.f32 %v2573, %v2558
    %v2575 = vadd.f32 %v2574, %v2560
    %v2576 = vrot.slane %v2575, 4
    %v2577 = vadd.f32 %v2575, %v2576
    %v2578 = vrot.slane %v2577, 2
    %v2579 = vadd.f32 %v2577, %v2578
    %v2580 = vrot.slane %v2579, 1
    %v2581 = vadd.f32 %v2579, %v2580
    %v2582 = vrcp.pop %v2581
    %v2583 = vpack.c.bf16 %v2532, %v2530
    %v2584 = vpack.c.bf16 %v2536, %v2534
    %v2585 = vpack.c.bf16 %v2540, %v2538
    %v2586 = vpack.c.bf16 %v2544, %v2542
    %v2587 = vpack.c.bf16 %v2548, %v2546
    %v2588 = vpack.c.bf16 %v2552, %v2550
    %v2589 = vpack.c.bf16 %v2556, %v2554
    %v2590 = vpack.c.bf16 %v2560, %v2558
    %2591 = vmatprep.subr.bf16.mxu0 0
    %2592 = vmatpush1.bf16.msra.mxu0 %v2590
    %2593 = vmatprep.subr.bf16.mxu0 0
    %2594 = vmatpush1.bf16.msra.mxu0 %v2589
    %2595 = vmatprep.subr.bf16.mxu0 0
    %2596 = vmatpush1.bf16.msra.mxu0 %v2588
    %2597 = vmatprep.subr.bf16.mxu0 0
    %2598 = vmatpush1.bf16.msra.mxu0 %v2587
    %2599 = vmatprep.subr.bf16.mxu0 0
    %2600 = vmatpush1.bf16.msra.mxu0 %v2586
    %2601 = vmatprep.subr.bf16.mxu0 0
    %2602 = vmatpush1.bf16.msra.mxu0 %v2585
    %2603 = vmatprep.subr.bf16.mxu0 0
    %2604 = vmatpush1.bf16.msra.mxu0 %v2584
    %2605 = vmatprep.subr.bf16.mxu0 0
    %2606 = vmatpush1.bf16.msra.mxu0 %v2583
    %2607 = vmatprep.subr.bf16.mxu0 0
    %2608 = vmatpush2.bf16.msra.mxu0 0
    %2609 = vmatprep.subr.bf16.mxu0 0
    %2610 = vmatpush2.bf16.msra.mxu0 0
    %2611 = vmatprep.subr.bf16.mxu0 0
    %2612 = vmatpush2.bf16.msra.mxu0 0
    %2613 = vmatprep.subr.bf16.mxu0 0
    %2614 = vmatpush2.bf16.msra.mxu0 0
    %2615 = vmatprep.subr.bf16.mxu0 0
    %2616 = vmatpush2.bf16.msra.mxu0 0
    %2617 = vmatprep.subr.bf16.mxu0 0
    %2618 = vmatpush2.bf16.msra.mxu0 0
    %2619 = vmatprep.subr.bf16.mxu0 0
    %2620 = vmatpush2.bf16.msra.mxu0 0
    %2621 = vmatprep.subr.bf16.mxu0 0
    %2622 = vmatpush2.bf16.msra.mxu0 0
    %2623 = vmatprep.mubr.bf16.mxu0 0
    %2624 = vmatmul.mubr.bf16.gmra.mxu0 %v2091
    %v2625 = vpop.f32.mrf.mxu0
    %v2626 = vadd.f32 0.0, %v2625
    %v2627 = vpop.f32.mrf.mxu0
    %v2628 = vpop.f32.mrf.mxu0
    %v2629 = vpop.f32.mrf.mxu0
    %2630 = vdwg.mxu0
    %v2631 = vmul.f32 %v2626, %v2582
    %v2632 = vld [vmem:[%s8] sm:$0xff]
    %v2633 = vld [vmem:[%s8 + $0x8] sm:$0xff]
    %v2634 = vld [vmem:[%s8 + $0x10] sm:$0xff]
    %v2635 = vld [vmem:[%s8 + $0x18] sm:$0xff]
    %v2636 = vpack.c.bf16 %v2633, %v2632
    %v2637 = vpack.c.bf16 %v2635, %v2634
    %v2638 = vpack.c.bf16 %v1308, %v759
    %v2639 = vpack.c.bf16 %v2390, %v1849
    %v2640 = vpack.c.bf16 %v1549, %v1000
    %v2641 = vpack.c.bf16 %v2631, %v2090
    %v2642 = vld [vmem:[%s9] sm:$0xff]
    %v2643 = vld [vmem:[%s9 + $0x8] sm:$0xff]
    %v2644 = vld [vmem:[%s9 + $0x10] sm:$0xff]
    %v2645 = vld [vmem:[%s9 + $0x18] sm:$0xff]
    %2647 = vset.pattern.permute.xlu0 0
    %2648 = vperm.xlu0 %2647, %v2642
    %v2649 = vpop.permute.xlu0 %2648
    %2652 = vset.pattern.permute.xlu0 0
    %2653 = vperm.xlu0 %2652, %v2643
    %v2654 = vpop.permute.xlu0 %2653
    %2657 = vset.pattern.permute.xlu0 0
    %2658 = vperm.xlu0 %2657, %v2644
    %v2659 = vpop.permute.xlu0 %2658
    %2662 = vset.pattern.permute.xlu0 0
    %2663 = vperm.xlu0 %2662, %v2645
    %v2664 = vpop.permute.xlu0 %2663
    %vm2666 = vcmask 523264
    %v2668 = vsel %vm2666, %v2636, 0
    %v2671 = vsel %vm2666, %v2637, 0
    %2673 = vmatprep.subr.bf16.mxu0 0
    %2674 = vmatpush1.bf16.msra.mxu0 0
    %2675 = vmatprep.subr.bf16.mxu0 0
    %2676 = vmatpush1.bf16.msra.mxu0 0
    %2677 = vmatprep.subr.bf16.mxu0 0
    %2678 = vmatpush1.bf16.msra.mxu0 0
    %2679 = vmatprep.subr.bf16.mxu0 0
    %2680 = vmatpush1.bf16.msra.mxu0 0
    %2681 = vmatprep.subr.bf16.mxu0 0
    %2682 = vmatpush1.bf16.msra.mxu0 %v2641
    %2683 = vmatprep.subr.bf16.mxu0 0
    %2684 = vmatpush1.bf16.msra.mxu0 %v2640
    %2685 = vmatprep.subr.bf16.mxu0 0
    %2686 = vmatpush1.bf16.msra.mxu0 %v2639
    %2687 = vmatprep.subr.bf16.mxu0 0
    %2688 = vmatpush1.bf16.msra.mxu0 %v2638
    %2689 = vmatprep.subr.bf16.mxu0 0
    %2690 = vmatpush2.bf16.msra.mxu0 0
    %2691 = vmatprep.subr.bf16.mxu0 0
    %2692 = vmatpush2.bf16.msra.mxu0 0
    %2693 = vmatprep.subr.bf16.mxu0 0
    %2694 = vmatpush2.bf16.msra.mxu0 0
    %2695 = vmatprep.subr.bf16.mxu0 0
    %2696 = vmatpush2.bf16.msra.mxu0 0
    %2697 = vmatprep.subr.bf16.mxu0 0
    %2698 = vmatpush2.bf16.msra.mxu0 0
    %2699 = vmatprep.subr.bf16.mxu0 0
    %2700 = vmatpush2.bf16.msra.mxu0 0
    %2701 = vmatprep.subr.bf16.mxu0 0
    %2702 = vmatpush2.bf16.msra.mxu0 0
    %2703 = vmatprep.subr.bf16.mxu0 0
    %2704 = vmatpush2.bf16.msra.mxu0 0
    %2705 = vmatprep.mubr.bf16.mxu0 0
    %2706 = vmatmul.mubr.bf16.gmra.mxu0 %v2668
    %v2707 = vpop.f32.mrf.mxu0
    %v2708 = vadd.f32 %v2649, %v2707
    %v2709 = vpop.f32.mrf.mxu0
    %v2710 = vpop.f32.mrf.mxu0
    %v2711 = vadd.f32 %v2654, %v2710
    %v2712 = vpop.f32.mrf.mxu0
    %2713 = vmatprep.mubr.bf16.mxu0 0
    %2714 = vmatmul.mubr.bf16.gmra.mxu0 %v2671
    %v2715 = vpop.f32.mrf.mxu0
    %v2716 = vadd.f32 %v2659, %v2715
    %v2717 = vpop.f32.mrf.mxu0
    %v2718 = vpop.f32.mrf.mxu0
    %v2719 = vadd.f32 %v2664, %v2718
    %v2720 = vpop.f32.mrf.mxu0
    %2721 = vdwg.mxu0
    %2722 = vst [vmem:[#allocation5] sm:$0xff] %v2708
    %2723 = vst [vmem:[#allocation5 + $0x8] sm:$0xff] %v2711
    %2724 = vst [vmem:[#allocation5 + $0x10] sm:$0xff] %v2716
    %2725 = vst [vmem:[#allocation5 + $0x18] sm:$0xff] %v2719
    // Predicated region
    $region46: #{tpu_custom_call.1} parent=1 // pred_check
      _
    $region47: #{tpu_custom_call.1} parent=1 // pred_check_branch
      %2727 = sbr.rel (0) target = $region49
    $region48: #{tpu_custom_call.1} parent=1 // pred_region
      %s2729 = ssub.s32 512, 512
      %2730 = vsyncadd [#allocation4], %s2729
      %s2731 = sshll.u32 [#allocation5], 4
      %s2732 = int_to_ptr.vmem [resolvable:$true] %s2731
      %2737 = dma.vmem_to_hbm [thread:$0]  %s2732, 512, %s10, [#allocation4], 128, 128, 8
    $region49: #{tpu_custom_call.1} parent=1 // pred_fallthru
      _
    // Predicated region
    $region50: #{tpu_custom_call.1} parent=1 // pred_check
      _
    $region51: #{tpu_custom_call.1} parent=1 // pred_check_branch
      %2739 = sbr.rel (0) target = $region53
    $region52: #{tpu_custom_call.1} parent=1 // pred_region
      %2740 = dma.done [#allocation4], 512
    $region53: #{tpu_custom_call.1} parent=1 // pred_fallthru
      _
    %2741 = vsyncpa [#allocation3], 1
    %2742 = vsyncpa [#allocation4], 1

</llo_original>
